<compile_context>
chip_gen: v7x
topology: tpu7x:2x2x1
jax: 0.10.0
libtpu: 0.0.40
codegen_flags: <defaults>
</compile_context>

<pallas_src>
import jax
import jax.numpy as jnp
from jax.experimental import pallas as pl
from jax.experimental.pallas import tpu as pltpu

BT = 8  # batch sublane tile


def _gru_kernel(x_ref, wi_ref, wh_ref, bi_ref, bhn_ref, wfc_ref, bfc_ref,
                out_ref, hbuf_ref, gx_ref):
    """One batch tile of the full 4-layer GRU + fused fc epilogue.

    Shapes (H = hidden, L = layers, Opad = fc out padded to 128):
      x_ref:    (S*BT, H)     layer-0 input slab (time-major, feature-padded)
      wi_ref:   (L, H, 3H)    fused input weights  [r|z|n], pre-transposed
      wh_ref:   (L, H, 3H)    fused recurrent weights [r|z|n], pre-transposed
      bi_ref:   (L, 1, 3H)    fused biases: [b_ir+b_hr | b_iz+b_hz | b_in]
      bhn_ref:  (L, 1, H)     b_hn (stays inside the r*(...) term)
      wfc_ref:  (H, Opad);  bfc_ref: (1, Opad)
      out_ref:  (S*BT, Opad)
      hbuf_ref: (S*BT, H)     current layer's output slab (scratch)
      gx_ref:   (S*BT, 3H)    fused input-projection slab (scratch)
    """
    num_layers = wi_ref.shape[0]
    hidden = wh_ref.shape[1]
    seq = x_ref.shape[0] // BT

    for layer in range(num_layers):                 # static unroll (L = 4)
        # Layer input slab: padded x for layer 0, previous layer's outputs
        # (already in hbuf_ref) afterwards.  Loaded before this layer's time
        # loop overwrites hbuf_ref.
        xin = x_ref[...] if layer == 0 else hbuf_ref[...]         # (S*BT, H)

        w_h = wh_ref[layer]                                       # (H, 3H)
        # Hoisted broadcast (JAX does not CSE broadcast_in_dim in the loop).
        b_hn = jnp.broadcast_to(bhn_ref[layer], (BT, hidden))     # (BT, H)

        # Fused input projections for ALL timesteps: one MXU matmul per layer.
        gx_ref[...] = jnp.dot(xin, wi_ref[layer],
                              preferred_element_type=jnp.float32) + bi_ref[layer]

        def step(t, h_prev):
            row = pl.multiple_of(t * BT, BT)                      # 8-aligned sublanes
            # ONE fused recurrent matmul per serialized step.
            gh = jnp.dot(h_prev, w_h,
                         preferred_element_type=jnp.float32)      # (BT, 3H)
            gx = gx_ref[pl.ds(row, BT), :]                        # (BT, 3H)
            rz = jax.nn.sigmoid(gx[:, : 2 * hidden] + gh[:, : 2 * hidden])
            r = rz[:, :hidden]
            z = rz[:, hidden:]
            n = jnp.tanh(gx[:, 2 * hidden:] + r * (gh[:, 2 * hidden:] + b_hn))
            h_new = (1.0 - z) * n + z * h_prev
            hbuf_ref[pl.ds(row, BT), :] = h_new                   # layer output slab
            return h_new                                          # h lives in the carry

        # h0 = 0 for every layer (matches torch.zeros(...) in forward()).
        jax.lax.fori_loop(0, seq, step,
                          jnp.zeros((BT, hidden), jnp.float32), unroll=True)

    # Fused fc epilogue over the last layer's whole output slab (lane-dense out).
    out_ref[...] = jnp.dot(hbuf_ref[...], wfc_ref[...],
                           preferred_element_type=jnp.float32) + bfc_ref[...]


def gru_model_forward(x, params):
    """x: (B, S, input_size) f32, batch_first like PyTorch -> (B, S, output_size)."""
    batch, seq, in_size = x.shape
    layers = params["layers"]
    hidden = layers[0]["W_hr"].shape[0]
    out_size = params["W_fc"].shape[0]
    num_layers = len(layers)
    assert in_size <= hidden, "kernel packs the layer-0 input into the hidden width"
    o_pad = ((out_size + 127) // 128) * 128          # lane-dense fc output

    bp = ((batch + BT - 1) // BT) * BT               # batch padded to sublane tile
    nbt = bp // BT                                   # number of batch tiles (grid)

    # Time-major, batch- and feature-padded, batch-tile-major input slab:
    #   (S, B, Din) -> (nbt, S*BT, H)
    xt = jnp.transpose(x, (1, 0, 2)).astype(jnp.float32)
    xt = jnp.pad(xt, ((0, 0), (0, bp - batch), (0, hidden - in_size)))
    x_slab = (xt.reshape(seq, nbt, BT, hidden)
                .transpose(1, 0, 2, 3)
                .reshape(nbt, seq * BT, hidden))

    def pad_ih(w):  # (H, in) -> (H, H): transpose for x @ W, zero-pad input rows
        wt = w.T
        return jnp.pad(wt, ((0, hidden - wt.shape[0]), (0, 0)))

    # Fused [r | z | n] weight / bias slabs.
    WI = jnp.stack([jnp.concatenate(
        [pad_ih(l["W_ir"]), pad_ih(l["W_iz"]), pad_ih(l["W_in"])], axis=1)
        for l in layers])                                              # (L, H, 3H)
    WH = jnp.stack([jnp.concatenate(
        [l["W_hr"].T, l["W_hz"].T, l["W_hn"].T], axis=1)
        for l in layers])                                              # (L, H, 3H)
    BI = jnp.stack([jnp.concatenate(
        [l["b_ir"] + l["b_hr"], l["b_iz"] + l["b_hz"], l["b_in"]])[None, :]
        for l in layers])                                              # (L, 1, 3H)
    BHN = jnp.stack([l["b_hn"][None, :] for l in layers])              # (L, 1, H)
    WFC = jnp.pad(params["W_fc"].T, ((0, 0), (0, o_pad - out_size)))   # (H, Opad)
    BFC = jnp.pad(params["b_fc"], (0, o_pad - out_size))[None, :]      # (1, Opad)

    vmem = pl.BlockSpec(memory_space=pltpu.MemorySpace.VMEM)

    flops = (num_layers * 4 * seq * bp * hidden * 3 * hidden       # in-proj + recurrence
             + 2 * seq * bp * hidden * o_pad)                      # fc epilogue
    transcendentals = num_layers * seq * bp * 3 * hidden           # sigmoid(2H) + tanh(H)
    bytes_accessed = 4 * (x_slab.size + WI.size + WH.size + BI.size + BHN.size
                          + WFC.size + BFC.size + nbt * seq * BT * o_pad)

    out_slab = pl.pallas_call(
        _gru_kernel,
        out_shape=jax.ShapeDtypeStruct((nbt, seq * BT, o_pad), jnp.float32),
        grid=(nbt,),
        in_specs=[
            pl.BlockSpec((None, seq * BT, hidden), lambda i: (i, 0, 0)),  # x tile
            vmem, vmem, vmem, vmem, vmem, vmem,                            # weights/biases
        ],
        out_specs=pl.BlockSpec((None, seq * BT, o_pad), lambda i: (i, 0, 0)),
        scratch_shapes=[
            pltpu.VMEM((seq * BT, hidden), jnp.float32),       # hbuf: layer output slab
            pltpu.VMEM((seq * BT, 3 * hidden), jnp.float32),   # fused gate slab
        ],
        compiler_params=pltpu.CompilerParams(dimension_semantics=("parallel",)),
        cost_estimate=pl.CostEstimate(flops=flops,
                                      transcendentals=transcendentals,
                                      bytes_accessed=bytes_accessed),
    )(x_slab, WI, WH, BI, BHN, WFC, BFC)

    out = (out_slab.reshape(nbt, seq, BT, o_pad)
                   .transpose(1, 0, 2, 3)
                   .reshape(seq, bp, o_pad))[:, :batch, :out_size]
    return jnp.transpose(out, (1, 0, 2))                               # (B, S, O)


def init_gru_params(key, input_size, hidden_size, num_layers, output_size):
    """Random parameters in the PyTorch nn.GRU / nn.Linear layout (gate order r,z,n)."""
    bound = 1.0 / float(jnp.sqrt(jnp.float32(hidden_size)))

    def u(k, shape):
        return jax.random.uniform(k, shape, jnp.float32, -bound, bound)

    layers = []
    for layer in range(num_layers):
        in_size = input_size if layer == 0 else hidden_size
        ks = jax.random.split(jax.random.fold_in(key, layer), 12)
        layers.append({
            "W_ir": u(ks[0], (hidden_size, in_size)),
            "W_iz": u(ks[1], (hidden_size, in_size)),
            "W_in": u(ks[2], (hidden_size, in_size)),
            "W_hr": u(ks[3], (hidden_size, hidden_size)),
            "W_hz": u(ks[4], (hidden_size, hidden_size)),
            "W_hn": u(ks[5], (hidden_size, hidden_size)),
            "b_ir": u(ks[6], (hidden_size,)),
            "b_iz": u(ks[7], (hidden_size,)),
            "b_in": u(ks[8], (hidden_size,)),
            "b_hr": u(ks[9], (hidden_size,)),
            "b_hz": u(ks[10], (hidden_size,)),
            "b_hn": u(ks[11], (hidden_size,)),
        })
    kfc = jax.random.split(jax.random.fold_in(key, 10_000), 2)
    return {
        "layers": layers,
        "W_fc": u(kfc[0], (output_size, hidden_size)),
        "b_fc": u(kfc[1], (output_size,)),
    }


def gru_model_ref(x, params):
    """Pure-JAX reference implementing the exact PyTorch GRU + Linear math."""
    hp = jax.lax.Precision.HIGHEST
    dot = lambda a, b: jnp.dot(a, b, precision=hp)
    layers = params["layers"]
    batch = x.shape[0]
    hidden = layers[0]["W_hr"].shape[0]
    inp = x
    for lp in layers:
        h = jnp.zeros((batch, hidden), jnp.float32)
        outs = []
        for t in range(inp.shape[1]):
            xt = inp[:, t, :]
            r = jax.nn.sigmoid(dot(xt, lp["W_ir"].T) + lp["b_ir"]
                               + dot(h, lp["W_hr"].T) + lp["b_hr"])
            z = jax.nn.sigmoid(dot(xt, lp["W_iz"].T) + lp["b_iz"]
                               + dot(h, lp["W_hz"].T) + lp["b_hz"])
            n = jnp.tanh(dot(xt, lp["W_in"].T) + lp["b_in"]
                         + r * (dot(h, lp["W_hn"].T) + lp["b_hn"]))
            h = (1.0 - z) * n + z * h
            outs.append(h)
        inp = jnp.stack(outs, axis=1)                              # (B, S, H)
    return dot(inp, params["W_fc"].T) + params["b_fc"]


if __name__ == "__main__":
    # The original script truncates iso_code_list to length 0 (num_country = 0,
    # i.e. feature dim 1); we use a small nonzero stand-in for a meaningful dim.
    num_country = 3
    input_size = num_country + 1     # 4
    hidden_size = 16                 # module default
    num_layers = 4                   # module default
    batch, seq = 2, 8

    key = jax.random.PRNGKey(0)
    kx, kp = jax.random.split(key)
    x = jax.random.normal(kx, (batch, seq, input_size), dtype=jnp.float32)
    params = init_gru_params(kp, input_size, hidden_size, num_layers, input_size)

    out = jax.jit(gru_model_forward)(x, params)
    out = jax.block_until_ready(out)
    assert out.shape == (batch, seq, input_size)

    ref = gru_model_ref(x, params)
    max_err = jnp.max(jnp.abs(out - ref))
    assert jnp.allclose(out, ref, atol=1e-2, rtol=1e-2), f"mismatch vs reference: {max_err}"

    print("KERNEL_OK")
</pallas_src>

<mosaic_0001>
module attributes {stable_mosaic.version = 11 : i64} {
  func.func @_gru_kernel(%arg0: i32, %arg1: memref<1x64x16xf32, #tpu.memory_space<vmem>>, %arg2: memref<4x16x48xf32, #tpu.memory_space<vmem>>, %arg3: memref<4x16x48xf32, #tpu.memory_space<vmem>>, %arg4: memref<4x1x48xf32, #tpu.memory_space<vmem>>, %arg5: memref<4x1x16xf32, #tpu.memory_space<vmem>>, %arg6: memref<16x128xf32, #tpu.memory_space<vmem>>, %arg7: memref<1x128xf32, #tpu.memory_space<vmem>>, %arg8: memref<1x64x128xf32, #tpu.memory_space<vmem>>, %arg9: memref<64x16xf32, #tpu.memory_space<vmem>>, %arg10: memref<64x48xf32, #tpu.memory_space<vmem>>) attributes {dimension_semantics = [#tpu.dimension_semantics<parallel>], iteration_bounds = array<i64: 1>, scalar_prefetch = 0 : i64, scratch_operands = 2 : i64, tpu.core_type = #tpu.core_type<tc>, window_params = [{transform_indices = @transform_0, window_bounds = array<i64: 1, 64, 16>}, {pipeline_mode = #tpu.pipeline_mode<synchronous>, transform_indices = @transform_1, window_bounds = array<i64: 4, 16, 48>}, {pipeline_mode = #tpu.pipeline_mode<synchronous>, transform_indices = @transform_2, window_bounds = array<i64: 4, 16, 48>}, {pipeline_mode = #tpu.pipeline_mode<synchronous>, transform_indices = @transform_3, window_bounds = array<i64: 4, 1, 48>}, {pipeline_mode = #tpu.pipeline_mode<synchronous>, transform_indices = @transform_4, window_bounds = array<i64: 4, 1, 16>}, {pipeline_mode = #tpu.pipeline_mode<synchronous>, transform_indices = @transform_5, window_bounds = array<i64: 16, 128>}, {pipeline_mode = #tpu.pipeline_mode<synchronous>, transform_indices = @transform_6, window_bounds = array<i64: 1, 128>}, {transform_indices = @transform_7, window_bounds = array<i64: 1, 64, 128>}]} {
    %c0 = arith.constant 0 : index
    %c0_0 = arith.constant 0 : index
    %c0_1 = arith.constant 0 : index
    %0 = vector.load %arg1[%c0, %c0_0, %c0_1] : memref<1x64x16xf32, #tpu.memory_space<vmem>>, vector<1x64x16xf32>
    %1 = vector.shape_cast %0 : vector<1x64x16xf32> to vector<64x16xf32>
    %c0_2 = arith.constant 0 : index
    %c0_3 = arith.constant 0 : index
    %c0_4 = arith.constant 0 : index
    %2 = vector.load %arg3[%c0_2, %c0_3, %c0_4] : memref<4x16x48xf32, #tpu.memory_space<vmem>>, vector<1x16x48xf32>
    %3 = vector.shape_cast %2 : vector<1x16x48xf32> to vector<16x48xf32>
    %c0_5 = arith.constant 0 : index
    %c0_6 = arith.constant 0 : index
    %c0_7 = arith.constant 0 : index
    %4 = vector.load %arg5[%c0_5, %c0_6, %c0_7] : memref<4x1x16xf32, #tpu.memory_space<vmem>>, vector<1x1x16xf32>
    %5 = vector.shape_cast %4 : vector<1x1x16xf32> to vector<1x16xf32>
    %6 = vector.shape_cast %5 : vector<1x16xf32> to vector<1x16xf32>
    %7 = vector.broadcast %6 : vector<1x16xf32> to vector<8x16xf32>
    %c0_8 = arith.constant 0 : index
    %c0_9 = arith.constant 0 : index
    %c0_10 = arith.constant 0 : index
    %8 = vector.load %arg2[%c0_8, %c0_9, %c0_10] : memref<4x16x48xf32, #tpu.memory_space<vmem>>, vector<1x16x48xf32>
    %9 = vector.shape_cast %8 : vector<1x16x48xf32> to vector<16x48xf32>
    %cst = arith.constant dense<0.000000e+00> : vector<64x48xf32>
    %10 = tpu.matmul %1, %9, %cst {dimension_numbers = #tpu.dot_dimension_numbers<[1], [0], [0], [1], [0, 0, 1, 1], [], []>} : vector<64x16xf32>, vector<16x48xf32>, vector<64x48xf32> -> vector<64x48xf32>
    %c0_11 = arith.constant 0 : index
    %c0_12 = arith.constant 0 : index
    %c0_13 = arith.constant 0 : index
    %11 = vector.load %arg4[%c0_11, %c0_12, %c0_13] : memref<4x1x48xf32, #tpu.memory_space<vmem>>, vector<1x1x48xf32>
    %12 = vector.shape_cast %11 : vector<1x1x48xf32> to vector<1x48xf32>
    %13 = vector.broadcast %12 : vector<1x48xf32> to vector<64x48xf32>
    %14 = arith.addf %10, %13 : vector<64x48xf32>
    %c0_14 = arith.constant 0 : index
    %c0_15 = arith.constant 0 : index
    %15 = vector.load %arg10[%c0_14, %c0_15] : memref<64x48xf32, #tpu.memory_space<vmem>>, vector<64x48xf32>
    tpu.vector_store %arg10[%c0_14, %c0_15], %14 {strides = array<i32>} : memref<64x48xf32, #tpu.memory_space<vmem>>, vector<64x48xf32>,
    %cst_16 = arith.constant 0.000000e+00 : f32
    %16 = vector.broadcast %cst_16 : f32 to vector<8x16xf32>
    %c0_i32 = arith.constant 0 : i32
    %c8_i32 = arith.constant 8 : i32
    %17 = arith.muli %c0_i32, %c8_i32 : i32
    %18 = tpu.assume_multiple %17, 8 : i32
    %cst_17 = arith.constant dense<0.000000e+00> : vector<8x48xf32>
    %19 = tpu.matmul %16, %3, %cst_17 {dimension_numbers = #tpu.dot_dimension_numbers<[1], [0], [0], [1], [0, 0, 1, 1], [], []>} : vector<8x16xf32>, vector<16x48xf32>, vector<8x48xf32> -> vector<8x48xf32>
    %20 = arith.index_cast %18 : i32 to index
    %c0_18 = arith.constant 0 : index
    %21 = vector.load %arg10[%20, %c0_18] : memref<64x48xf32, #tpu.memory_space<vmem>>, vector<8x48xf32>
    %22 = vector.extract_strided_slice %21 {offsets = [0, 0], sizes = [8, 32], strides = [1, 1]} : vector<8x48xf32> to vector<8x32xf32>
    %23 = vector.extract_strided_slice %19 {offsets = [0, 0], sizes = [8, 32], strides = [1, 1]} : vector<8x48xf32> to vector<8x32xf32>
    %24 = arith.addf %22, %23 : vector<8x32xf32>
    %25 = arith.negf %24 : vector<8x32xf32>
    %26 = math.exp %25 : vector<8x32xf32>
    %cst_19 = arith.constant 1.000000e+00 : f32
    %27 = vector.broadcast %cst_19 : f32 to vector<8x32xf32>
    %28 = arith.addf %27, %26 : vector<8x32xf32>
    %29 = arith.divf %27, %28 : vector<8x32xf32>
    %30 = vector.extract_strided_slice %29 {offsets = [0, 0], sizes = [8, 16], strides = [1, 1]} : vector<8x32xf32> to vector<8x16xf32>
    %31 = vector.extract_strided_slice %29 {offsets = [0, 16], sizes = [8, 16], strides = [1, 1]} : vector<8x32xf32> to vector<8x16xf32>
    %32 = vector.extract_strided_slice %21 {offsets = [0, 32], sizes = [8, 16], strides = [1, 1]} : vector<8x48xf32> to vector<8x16xf32>
    %33 = vector.extract_strided_slice %19 {offsets = [0, 32], sizes = [8, 16], strides = [1, 1]} : vector<8x48xf32> to vector<8x16xf32>
    %34 = arith.addf %33, %7 : vector<8x16xf32>
    %35 = arith.mulf %30, %34 : vector<8x16xf32>
    %36 = arith.addf %32, %35 : vector<8x16xf32>
    %37 = math.tanh %36 : vector<8x16xf32>
    %cst_20 = arith.constant 1.000000e+00 : f32
    %38 = vector.broadcast %cst_20 : f32 to vector<8x16xf32>
    %39 = arith.subf %38, %31 : vector<8x16xf32>
    %40 = arith.mulf %39, %37 : vector<8x16xf32>
    %41 = arith.mulf %31, %16 : vector<8x16xf32>
    %42 = arith.addf %40, %41 : vector<8x16xf32>
    %43 = arith.index_cast %18 : i32 to index
    %c0_21 = arith.constant 0 : index
    %44 = vector.load %arg9[%43, %c0_21] : memref<64x16xf32, #tpu.memory_space<vmem>>, vector<8x16xf32>
    tpu.vector_store %arg9[%43, %c0_21], %42 {strides = array<i32>} : memref<64x16xf32, #tpu.memory_space<vmem>>, vector<8x16xf32>,
    %c1_i32 = arith.constant 1 : i32
    %c8_i32_22 = arith.constant 8 : i32
    %45 = arith.muli %c1_i32, %c8_i32_22 : i32
    %46 = tpu.assume_multiple %45, 8 : i32
    %cst_23 = arith.constant dense<0.000000e+00> : vector<8x48xf32>
    %47 = tpu.matmul %42, %3, %cst_23 {dimension_numbers = #tpu.dot_dimension_numbers<[1], [0], [0], [1], [0, 0, 1, 1], [], []>} : vector<8x16xf32>, vector<16x48xf32>, vector<8x48xf32> -> vector<8x48xf32>
    %48 = arith.index_cast %46 : i32 to index
    %c0_24 = arith.constant 0 : index
    %49 = vector.load %arg10[%48, %c0_24] : memref<64x48xf32, #tpu.memory_space<vmem>>, vector<8x48xf32>
    %50 = vector.extract_strided_slice %49 {offsets = [0, 0], sizes = [8, 32], strides = [1, 1]} : vector<8x48xf32> to vector<8x32xf32>
    %51 = vector.extract_strided_slice %47 {offsets = [0, 0], sizes = [8, 32], strides = [1, 1]} : vector<8x48xf32> to vector<8x32xf32>
    %52 = arith.addf %50, %51 : vector<8x32xf32>
    %53 = arith.negf %52 : vector<8x32xf32>
    %54 = math.exp %53 : vector<8x32xf32>
    %cst_25 = arith.constant 1.000000e+00 : f32
    %55 = vector.broadcast %cst_25 : f32 to vector<8x32xf32>
    %56 = arith.addf %55, %54 : vector<8x32xf32>
    %57 = arith.divf %55, %56 : vector<8x32xf32>
    %58 = vector.extract_strided_slice %57 {offsets = [0, 0], sizes = [8, 16], strides = [1, 1]} : vector<8x32xf32> to vector<8x16xf32>
    %59 = vector.extract_strided_slice %57 {offsets = [0, 16], sizes = [8, 16], strides = [1, 1]} : vector<8x32xf32> to vector<8x16xf32>
    %60 = vector.extract_strided_slice %49 {offsets = [0, 32], sizes = [8, 16], strides = [1, 1]} : vector<8x48xf32> to vector<8x16xf32>
    %61 = vector.extract_strided_slice %47 {offsets = [0, 32], sizes = [8, 16], strides = [1, 1]} : vector<8x48xf32> to vector<8x16xf32>
    %62 = arith.addf %61, %7 : vector<8x16xf32>
    %63 = arith.mulf %58, %62 : vector<8x16xf32>
    %64 = arith.addf %60, %63 : vector<8x16xf32>
    %65 = math.tanh %64 : vector<8x16xf32>
    %cst_26 = arith.constant 1.000000e+00 : f32
    %66 = vector.broadcast %cst_26 : f32 to vector<8x16xf32>
    %67 = arith.subf %66, %59 : vector<8x16xf32>
    %68 = arith.mulf %67, %65 : vector<8x16xf32>
    %69 = arith.mulf %59, %42 : vector<8x16xf32>
    %70 = arith.addf %68, %69 : vector<8x16xf32>
    %71 = arith.index_cast %46 : i32 to index
    %c0_27 = arith.constant 0 : index
    %72 = vector.load %arg9[%71, %c0_27] : memref<64x16xf32, #tpu.memory_space<vmem>>, vector<8x16xf32>
    tpu.vector_store %arg9[%71, %c0_27], %70 {strides = array<i32>} : memref<64x16xf32, #tpu.memory_space<vmem>>, vector<8x16xf32>,
    %c2_i32 = arith.constant 2 : i32
    %c8_i32_28 = arith.constant 8 : i32
    %73 = arith.muli %c2_i32, %c8_i32_28 : i32
    %74 = tpu.assume_multiple %73, 8 : i32
    %cst_29 = arith.constant dense<0.000000e+00> : vector<8x48xf32>
    %75 = tpu.matmul %70, %3, %cst_29 {dimension_numbers = #tpu.dot_dimension_numbers<[1], [0], [0], [1], [0, 0, 1, 1], [], []>} : vector<8x16xf32>, vector<16x48xf32>, vector<8x48xf32> -> vector<8x48xf32>
    %76 = arith.index_cast %74 : i32 to index
    %c0_30 = arith.constant 0 : index
    %77 = vector.load %arg10[%76, %c0_30] : memref<64x48xf32, #tpu.memory_space<vmem>>, vector<8x48xf32>
    %78 = vector.extract_strided_slice %77 {offsets = [0, 0], sizes = [8, 32], strides = [1, 1]} : vector<8x48xf32> to vector<8x32xf32>
    %79 = vector.extract_strided_slice %75 {offsets = [0, 0], sizes = [8, 32], strides = [1, 1]} : vector<8x48xf32> to vector<8x32xf32>
    %80 = arith.addf %78, %79 : vector<8x32xf32>
    %81 = arith.negf %80 : vector<8x32xf32>
    %82 = math.exp %81 : vector<8x32xf32>
    %cst_31 = arith.constant 1.000000e+00 : f32
    %83 = vector.broadcast %cst_31 : f32 to vector<8x32xf32>
    %84 = arith.addf %83, %82 : vector<8x32xf32>
    %85 = arith.divf %83, %84 : vector<8x32xf32>
    %86 = vector.extract_strided_slice %85 {offsets = [0, 0], sizes = [8, 16], strides = [1, 1]} : vector<8x32xf32> to vector<8x16xf32>
    %87 = vector.extract_strided_slice %85 {offsets = [0, 16], sizes = [8, 16], strides = [1, 1]} : vector<8x32xf32> to vector<8x16xf32>
    %88 = vector.extract_strided_slice %77 {offsets = [0, 32], sizes = [8, 16], strides = [1, 1]} : vector<8x48xf32> to vector<8x16xf32>
    %89 = vector.extract_strided_slice %75 {offsets = [0, 32], sizes = [8, 16], strides = [1, 1]} : vector<8x48xf32> to vector<8x16xf32>
    %90 = arith.addf %89, %7 : vector<8x16xf32>
    %91 = arith.mulf %86, %90 : vector<8x16xf32>
    %92 = arith.addf %88, %91 : vector<8x16xf32>
    %93 = math.tanh %92 : vector<8x16xf32>
    %cst_32 = arith.constant 1.000000e+00 : f32
    %94 = vector.broadcast %cst_32 : f32 to vector<8x16xf32>
    %95 = arith.subf %94, %87 : vector<8x16xf32>
    %96 = arith.mulf %95, %93 : vector<8x16xf32>
    %97 = arith.mulf %87, %70 : vector<8x16xf32>
    %98 = arith.addf %96, %97 : vector<8x16xf32>
    %99 = arith.index_cast %74 : i32 to index
    %c0_33 = arith.constant 0 : index
    %100 = vector.load %arg9[%99, %c0_33] : memref<64x16xf32, #tpu.memory_space<vmem>>, vector<8x16xf32>
    tpu.vector_store %arg9[%99, %c0_33], %98 {strides = array<i32>} : memref<64x16xf32, #tpu.memory_space<vmem>>, vector<8x16xf32>,
    %c3_i32 = arith.constant 3 : i32
    %c8_i32_34 = arith.constant 8 : i32
    %101 = arith.muli %c3_i32, %c8_i32_34 : i32
    %102 = tpu.assume_multiple %101, 8 : i32
    %cst_35 = arith.constant dense<0.000000e+00> : vector<8x48xf32>
    %103 = tpu.matmul %98, %3, %cst_35 {dimension_numbers = #tpu.dot_dimension_numbers<[1], [0], [0], [1], [0, 0, 1, 1], [], []>} : vector<8x16xf32>, vector<16x48xf32>, vector<8x48xf32> -> vector<8x48xf32>
    %104 = arith.index_cast %102 : i32 to index
    %c0_36 = arith.constant 0 : index
    %105 = vector.load %arg10[%104, %c0_36] : memref<64x48xf32, #tpu.memory_space<vmem>>, vector<8x48xf32>
    %106 = vector.extract_strided_slice %105 {offsets = [0, 0], sizes = [8, 32], strides = [1, 1]} : vector<8x48xf32> to vector<8x32xf32>
    %107 = vector.extract_strided_slice %103 {offsets = [0, 0], sizes = [8, 32], strides = [1, 1]} : vector<8x48xf32> to vector<8x32xf32>
    %108 = arith.addf %106, %107 : vector<8x32xf32>
    %109 = arith.negf %108 : vector<8x32xf32>
    %110 = math.exp %109 : vector<8x32xf32>
    %cst_37 = arith.constant 1.000000e+00 : f32
    %111 = vector.broadcast %cst_37 : f32 to vector<8x32xf32>
    %112 = arith.addf %111, %110 : vector<8x32xf32>
    %113 = arith.divf %111, %112 : vector<8x32xf32>
    %114 = vector.extract_strided_slice %113 {offsets = [0, 0], sizes = [8, 16], strides = [1, 1]} : vector<8x32xf32> to vector<8x16xf32>
    %115 = vector.extract_strided_slice %113 {offsets = [0, 16], sizes = [8, 16], strides = [1, 1]} : vector<8x32xf32> to vector<8x16xf32>
    %116 = vector.extract_strided_slice %105 {offsets = [0, 32], sizes = [8, 16], strides = [1, 1]} : vector<8x48xf32> to vector<8x16xf32>
    %117 = vector.extract_strided_slice %103 {offsets = [0, 32], sizes = [8, 16], strides = [1, 1]} : vector<8x48xf32> to vector<8x16xf32>
    %118 = arith.addf %117, %7 : vector<8x16xf32>
    %119 = arith.mulf %114, %118 : vector<8x16xf32>
    %120 = arith.addf %116, %119 : vector<8x16xf32>
    %121 = math.tanh %120 : vector<8x16xf32>
    %cst_38 = arith.constant 1.000000e+00 : f32
    %122 = vector.broadcast %cst_38 : f32 to vector<8x16xf32>
    %123 = arith.subf %122, %115 : vector<8x16xf32>
    %124 = arith.mulf %123, %121 : vector<8x16xf32>
    %125 = arith.mulf %115, %98 : vector<8x16xf32>
    %126 = arith.addf %124, %125 : vector<8x16xf32>
    %127 = arith.index_cast %102 : i32 to index
    %c0_39 = arith.constant 0 : index
    %128 = vector.load %arg9[%127, %c0_39] : memref<64x16xf32, #tpu.memory_space<vmem>>, vector<8x16xf32>
    tpu.vector_store %arg9[%127, %c0_39], %126 {strides = array<i32>} : memref<64x16xf32, #tpu.memory_space<vmem>>, vector<8x16xf32>,
    %c4_i32 = arith.constant 4 : i32
    %c8_i32_40 = arith.constant 8 : i32
    %129 = arith.muli %c4_i32, %c8_i32_40 : i32
    %130 = tpu.assume_multiple %129, 8 : i32
    %cst_41 = arith.constant dense<0.000000e+00> : vector<8x48xf32>
    %131 = tpu.matmul %126, %3, %cst_41 {dimension_numbers = #tpu.dot_dimension_numbers<[1], [0], [0], [1], [0, 0, 1, 1], [], []>} : vector<8x16xf32>, vector<16x48xf32>, vector<8x48xf32> -> vector<8x48xf32>
    %132 = arith.index_cast %130 : i32 to index
    %c0_42 = arith.constant 0 : index
    %133 = vector.load %arg10[%132, %c0_42] : memref<64x48xf32, #tpu.memory_space<vmem>>, vector<8x48xf32>
    %134 = vector.extract_strided_slice %133 {offsets = [0, 0], sizes = [8, 32], strides = [1, 1]} : vector<8x48xf32> to vector<8x32xf32>
    %135 = vector.extract_strided_slice %131 {offsets = [0, 0], sizes = [8, 32], strides = [1, 1]} : vector<8x48xf32> to vector<8x32xf32>
    %136 = arith.addf %134, %135 : vector<8x32xf32>
    %137 = arith.negf %136 : vector<8x32xf32>
    %138 = math.exp %137 : vector<8x32xf32>
    %cst_43 = arith.constant 1.000000e+00 : f32
    %139 = vector.broadcast %cst_43 : f32 to vector<8x32xf32>
    %140 = arith.addf %139, %138 : vector<8x32xf32>
    %141 = arith.divf %139, %140 : vector<8x32xf32>
    %142 = vector.extract_strided_slice %141 {offsets = [0, 0], sizes = [8, 16], strides = [1, 1]} : vector<8x32xf32> to vector<8x16xf32>
    %143 = vector.extract_strided_slice %141 {offsets = [0, 16], sizes = [8, 16], strides = [1, 1]} : vector<8x32xf32> to vector<8x16xf32>
    %144 = vector.extract_strided_slice %133 {offsets = [0, 32], sizes = [8, 16], strides = [1, 1]} : vector<8x48xf32> to vector<8x16xf32>
    %145 = vector.extract_strided_slice %131 {offsets = [0, 32], sizes = [8, 16], strides = [1, 1]} : vector<8x48xf32> to vector<8x16xf32>
    %146 = arith.addf %145, %7 : vector<8x16xf32>
    %147 = arith.mulf %142, %146 : vector<8x16xf32>
    %148 = arith.addf %144, %147 : vector<8x16xf32>
    %149 = math.tanh %148 : vector<8x16xf32>
    %cst_44 = arith.constant 1.000000e+00 : f32
    %150 = vector.broadcast %cst_44 : f32 to vector<8x16xf32>
    %151 = arith.subf %150, %143 : vector<8x16xf32>
    %152 = arith.mulf %151, %149 : vector<8x16xf32>
    %153 = arith.mulf %143, %126 : vector<8x16xf32>
    %154 = arith.addf %152, %153 : vector<8x16xf32>
    %155 = arith.index_cast %130 : i32 to index
    %c0_45 = arith.constant 0 : index
    %156 = vector.load %arg9[%155, %c0_45] : memref<64x16xf32, #tpu.memory_space<vmem>>, vector<8x16xf32>
    tpu.vector_store %arg9[%155, %c0_45], %154 {strides = array<i32>} : memref<64x16xf32, #tpu.memory_space<vmem>>, vector<8x16xf32>,
    %c5_i32 = arith.constant 5 : i32
    %c8_i32_46 = arith.constant 8 : i32
    %157 = arith.muli %c5_i32, %c8_i32_46 : i32
    %158 = tpu.assume_multiple %157, 8 : i32
    %cst_47 = arith.constant dense<0.000000e+00> : vector<8x48xf32>
    %159 = tpu.matmul %154, %3, %cst_47 {dimension_numbers = #tpu.dot_dimension_numbers<[1], [0], [0], [1], [0, 0, 1, 1], [], []>} : vector<8x16xf32>, vector<16x48xf32>, vector<8x48xf32> -> vector<8x48xf32>
    %160 = arith.index_cast %158 : i32 to index
    %c0_48 = arith.constant 0 : index
    %161 = vector.load %arg10[%160, %c0_48] : memref<64x48xf32, #tpu.memory_space<vmem>>, vector<8x48xf32>
    %162 = vector.extract_strided_slice %161 {offsets = [0, 0], sizes = [8, 32], strides = [1, 1]} : vector<8x48xf32> to vector<8x32xf32>
    %163 = vector.extract_strided_slice %159 {offsets = [0, 0], sizes = [8, 32], strides = [1, 1]} : vector<8x48xf32> to vector<8x32xf32>
    %164 = arith.addf %162, %163 : vector<8x32xf32>
    %165 = arith.negf %164 : vector<8x32xf32>
    %166 = math.exp %165 : vector<8x32xf32>
    %cst_49 = arith.constant 1.000000e+00 : f32
    %167 = vector.broadcast %cst_49 : f32 to vector<8x32xf32>
    %168 = arith.addf %167, %166 : vector<8x32xf32>
    %169 = arith.divf %167, %168 : vector<8x32xf32>
    %170 = vector.extract_strided_slice %169 {offsets = [0, 0], sizes = [8, 16], strides = [1, 1]} : vector<8x32xf32> to vector<8x16xf32>
    %171 = vector.extract_strided_slice %169 {offsets = [0, 16], sizes = [8, 16], strides = [1, 1]} : vector<8x32xf32> to vector<8x16xf32>
    %172 = vector.extract_strided_slice %161 {offsets = [0, 32], sizes = [8, 16], strides = [1, 1]} : vector<8x48xf32> to vector<8x16xf32>
    %173 = vector.extract_strided_slice %159 {offsets = [0, 32], sizes = [8, 16], strides = [1, 1]} : vector<8x48xf32> to vector<8x16xf32>
    %174 = arith.addf %173, %7 : vector<8x16xf32>
    %175 = arith.mulf %170, %174 : vector<8x16xf32>
    %176 = arith.addf %172, %175 : vector<8x16xf32>
    %177 = math.tanh %176 : vector<8x16xf32>
    %cst_50 = arith.constant 1.000000e+00 : f32
    %178 = vector.broadcast %cst_50 : f32 to vector<8x16xf32>
    %179 = arith.subf %178, %171 : vector<8x16xf32>
    %180 = arith.mulf %179, %177 : vector<8x16xf32>
    %181 = arith.mulf %171, %154 : vector<8x16xf32>
    %182 = arith.addf %180, %181 : vector<8x16xf32>
    %183 = arith.index_cast %158 : i32 to index
    %c0_51 = arith.constant 0 : index
    %184 = vector.load %arg9[%183, %c0_51] : memref<64x16xf32, #tpu.memory_space<vmem>>, vector<8x16xf32>
    tpu.vector_store %arg9[%183, %c0_51], %182 {strides = array<i32>} : memref<64x16xf32, #tpu.memory_space<vmem>>, vector<8x16xf32>,
    %c6_i32 = arith.constant 6 : i32
    %c8_i32_52 = arith.constant 8 : i32
    %185 = arith.muli %c6_i32, %c8_i32_52 : i32
    %186 = tpu.assume_multiple %185, 8 : i32
    %cst_53 = arith.constant dense<0.000000e+00> : vector<8x48xf32>
    %187 = tpu.matmul %182, %3, %cst_53 {dimension_numbers = #tpu.dot_dimension_numbers<[1], [0], [0], [1], [0, 0, 1, 1], [], []>} : vector<8x16xf32>, vector<16x48xf32>, vector<8x48xf32> -> vector<8x48xf32>
    %188 = arith.index_cast %186 : i32 to index
    %c0_54 = arith.constant 0 : index
    %189 = vector.load %arg10[%188, %c0_54] : memref<64x48xf32, #tpu.memory_space<vmem>>, vector<8x48xf32>
    %190 = vector.extract_strided_slice %189 {offsets = [0, 0], sizes = [8, 32], strides = [1, 1]} : vector<8x48xf32> to vector<8x32xf32>
    %191 = vector.extract_strided_slice %187 {offsets = [0, 0], sizes = [8, 32], strides = [1, 1]} : vector<8x48xf32> to vector<8x32xf32>
    %192 = arith.addf %190, %191 : vector<8x32xf32>
    %193 = arith.negf %192 : vector<8x32xf32>
    %194 = math.exp %193 : vector<8x32xf32>
    %cst_55 = arith.constant 1.000000e+00 : f32
    %195 = vector.broadcast %cst_55 : f32 to vector<8x32xf32>
    %196 = arith.addf %195, %194 : vector<8x32xf32>
    %197 = arith.divf %195, %196 : vector<8x32xf32>
    %198 = vector.extract_strided_slice %197 {offsets = [0, 0], sizes = [8, 16], strides = [1, 1]} : vector<8x32xf32> to vector<8x16xf32>
    %199 = vector.extract_strided_slice %197 {offsets = [0, 16], sizes = [8, 16], strides = [1, 1]} : vector<8x32xf32> to vector<8x16xf32>
    %200 = vector.extract_strided_slice %189 {offsets = [0, 32], sizes = [8, 16], strides = [1, 1]} : vector<8x48xf32> to vector<8x16xf32>
    %201 = vector.extract_strided_slice %187 {offsets = [0, 32], sizes = [8, 16], strides = [1, 1]} : vector<8x48xf32> to vector<8x16xf32>
    %202 = arith.addf %201, %7 : vector<8x16xf32>
    %203 = arith.mulf %198, %202 : vector<8x16xf32>
    %204 = arith.addf %200, %203 : vector<8x16xf32>
    %205 = math.tanh %204 : vector<8x16xf32>
    %cst_56 = arith.constant 1.000000e+00 : f32
    %206 = vector.broadcast %cst_56 : f32 to vector<8x16xf32>
    %207 = arith.subf %206, %199 : vector<8x16xf32>
    %208 = arith.mulf %207, %205 : vector<8x16xf32>
    %209 = arith.mulf %199, %182 : vector<8x16xf32>
    %210 = arith.addf %208, %209 : vector<8x16xf32>
    %211 = arith.index_cast %186 : i32 to index
    %c0_57 = arith.constant 0 : index
    %212 = vector.load %arg9[%211, %c0_57] : memref<64x16xf32, #tpu.memory_space<vmem>>, vector<8x16xf32>
    tpu.vector_store %arg9[%211, %c0_57], %210 {strides = array<i32>} : memref<64x16xf32, #tpu.memory_space<vmem>>, vector<8x16xf32>,
    %c7_i32 = arith.constant 7 : i32
    %c8_i32_58 = arith.constant 8 : i32
    %213 = arith.muli %c7_i32, %c8_i32_58 : i32
    %214 = tpu.assume_multiple %213, 8 : i32
    %cst_59 = arith.constant dense<0.000000e+00> : vector<8x48xf32>
    %215 = tpu.matmul %210, %3, %cst_59 {dimension_numbers = #tpu.dot_dimension_numbers<[1], [0], [0], [1], [0, 0, 1, 1], [], []>} : vector<8x16xf32>, vector<16x48xf32>, vector<8x48xf32> -> vector<8x48xf32>
    %216 = arith.index_cast %214 : i32 to index
    %c0_60 = arith.constant 0 : index
    %217 = vector.load %arg10[%216, %c0_60] : memref<64x48xf32, #tpu.memory_space<vmem>>, vector<8x48xf32>
    %218 = vector.extract_strided_slice %217 {offsets = [0, 0], sizes = [8, 32], strides = [1, 1]} : vector<8x48xf32> to vector<8x32xf32>
    %219 = vector.extract_strided_slice %215 {offsets = [0, 0], sizes = [8, 32], strides = [1, 1]} : vector<8x48xf32> to vector<8x32xf32>
    %220 = arith.addf %218, %219 : vector<8x32xf32>
    %221 = arith.negf %220 : vector<8x32xf32>
    %222 = math.exp %221 : vector<8x32xf32>
    %cst_61 = arith.constant 1.000000e+00 : f32
    %223 = vector.broadcast %cst_61 : f32 to vector<8x32xf32>
    %224 = arith.addf %223, %222 : vector<8x32xf32>
    %225 = arith.divf %223, %224 : vector<8x32xf32>
    %226 = vector.extract_strided_slice %225 {offsets = [0, 0], sizes = [8, 16], strides = [1, 1]} : vector<8x32xf32> to vector<8x16xf32>
    %227 = vector.extract_strided_slice %225 {offsets = [0, 16], sizes = [8, 16], strides = [1, 1]} : vector<8x32xf32> to vector<8x16xf32>
    %228 = vector.extract_strided_slice %217 {offsets = [0, 32], sizes = [8, 16], strides = [1, 1]} : vector<8x48xf32> to vector<8x16xf32>
    %229 = vector.extract_strided_slice %215 {offsets = [0, 32], sizes = [8, 16], strides = [1, 1]} : vector<8x48xf32> to vector<8x16xf32>
    %230 = arith.addf %229, %7 : vector<8x16xf32>
    %231 = arith.mulf %226, %230 : vector<8x16xf32>
    %232 = arith.addf %228, %231 : vector<8x16xf32>
    %233 = math.tanh %232 : vector<8x16xf32>
    %cst_62 = arith.constant 1.000000e+00 : f32
    %234 = vector.broadcast %cst_62 : f32 to vector<8x16xf32>
    %235 = arith.subf %234, %227 : vector<8x16xf32>
    %236 = arith.mulf %235, %233 : vector<8x16xf32>
    %237 = arith.mulf %227, %210 : vector<8x16xf32>
    %238 = arith.addf %236, %237 : vector<8x16xf32>
    %239 = arith.index_cast %214 : i32 to index
    %c0_63 = arith.constant 0 : index
    %240 = vector.load %arg9[%239, %c0_63] : memref<64x16xf32, #tpu.memory_space<vmem>>, vector<8x16xf32>
    tpu.vector_store %arg9[%239, %c0_63], %238 {strides = array<i32>} : memref<64x16xf32, #tpu.memory_space<vmem>>, vector<8x16xf32>,
    %c8_i32_64 = arith.constant 8 : i32
    %c0_65 = arith.constant 0 : index
    %c0_66 = arith.constant 0 : index
    %241 = vector.load %arg9[%c0_65, %c0_66] : memref<64x16xf32, #tpu.memory_space<vmem>>, vector<64x16xf32>
    %c1 = arith.constant 1 : index
    %c0_67 = arith.constant 0 : index
    %c0_68 = arith.constant 0 : index
    %242 = vector.load %arg3[%c1, %c0_67, %c0_68] : memref<4x16x48xf32, #tpu.memory_space<vmem>>, vector<1x16x48xf32>
    %243 = vector.shape_cast %242 : vector<1x16x48xf32> to vector<16x48xf32>
    %c1_69 = arith.constant 1 : index
    %c0_70 = arith.constant 0 : index
    %c0_71 = arith.constant 0 : index
    %244 = vector.load %arg5[%c1_69, %c0_70, %c0_71] : memref<4x1x16xf32, #tpu.memory_space<vmem>>, vector<1x1x16xf32>
    %245 = vector.shape_cast %244 : vector<1x1x16xf32> to vector<1x16xf32>
    %246 = vector.shape_cast %245 : vector<1x16xf32> to vector<1x16xf32>
    %247 = vector.broadcast %246 : vector<1x16xf32> to vector<8x16xf32>
    %c1_72 = arith.constant 1 : index
    %c0_73 = arith.constant 0 : index
    %c0_74 = arith.constant 0 : index
    %248 = vector.load %arg2[%c1_72, %c0_73, %c0_74] : memref<4x16x48xf32, #tpu.memory_space<vmem>>, vector<1x16x48xf32>
    %249 = vector.shape_cast %248 : vector<1x16x48xf32> to vector<16x48xf32>
    %cst_75 = arith.constant dense<0.000000e+00> : vector<64x48xf32>
    %250 = tpu.matmul %241, %249, %cst_75 {dimension_numbers = #tpu.dot_dimension_numbers<[1], [0], [0], [1], [0, 0, 1, 1], [], []>} : vector<64x16xf32>, vector<16x48xf32>, vector<64x48xf32> -> vector<64x48xf32>
    %c1_76 = arith.constant 1 : index
    %c0_77 = arith.constant 0 : index
    %c0_78 = arith.constant 0 : index
    %251 = vector.load %arg4[%c1_76, %c0_77, %c0_78] : memref<4x1x48xf32, #tpu.memory_space<vmem>>, vector<1x1x48xf32>
    %252 = vector.shape_cast %251 : vector<1x1x48xf32> to vector<1x48xf32>
    %253 = vector.broadcast %252 : vector<1x48xf32> to vector<64x48xf32>
    %254 = arith.addf %250, %253 : vector<64x48xf32>
    %c0_79 = arith.constant 0 : index
    %c0_80 = arith.constant 0 : index
    %255 = vector.load %arg10[%c0_79, %c0_80] : memref<64x48xf32, #tpu.memory_space<vmem>>, vector<64x48xf32>
    tpu.vector_store %arg10[%c0_79, %c0_80], %254 {strides = array<i32>} : memref<64x48xf32, #tpu.memory_space<vmem>>, vector<64x48xf32>,
    %cst_81 = arith.constant 0.000000e+00 : f32
    %256 = vector.broadcast %cst_81 : f32 to vector<8x16xf32>
    %c0_i32_82 = arith.constant 0 : i32
    %c8_i32_83 = arith.constant 8 : i32
    %257 = arith.muli %c0_i32_82, %c8_i32_83 : i32
    %258 = tpu.assume_multiple %257, 8 : i32
    %cst_84 = arith.constant dense<0.000000e+00> : vector<8x48xf32>
    %259 = tpu.matmul %256, %243, %cst_84 {dimension_numbers = #tpu.dot_dimension_numbers<[1], [0], [0], [1], [0, 0, 1, 1], [], []>} : vector<8x16xf32>, vector<16x48xf32>, vector<8x48xf32> -> vector<8x48xf32>
    %260 = arith.index_cast %258 : i32 to index
    %c0_85 = arith.constant 0 : index
    %261 = vector.load %arg10[%260, %c0_85] : memref<64x48xf32, #tpu.memory_space<vmem>>, vector<8x48xf32>
    %262 = vector.extract_strided_slice %261 {offsets = [0, 0], sizes = [8, 32], strides = [1, 1]} : vector<8x48xf32> to vector<8x32xf32>
    %263 = vector.extract_strided_slice %259 {offsets = [0, 0], sizes = [8, 32], strides = [1, 1]} : vector<8x48xf32> to vector<8x32xf32>
    %264 = arith.addf %262, %263 : vector<8x32xf32>
    %265 = arith.negf %264 : vector<8x32xf32>
    %266 = math.exp %265 : vector<8x32xf32>
    %cst_86 = arith.constant 1.000000e+00 : f32
    %267 = vector.broadcast %cst_86 : f32 to vector<8x32xf32>
    %268 = arith.addf %267, %266 : vector<8x32xf32>
    %269 = arith.divf %267, %268 : vector<8x32xf32>
    %270 = vector.extract_strided_slice %269 {offsets = [0, 0], sizes = [8, 16], strides = [1, 1]} : vector<8x32xf32> to vector<8x16xf32>
    %271 = vector.extract_strided_slice %269 {offsets = [0, 16], sizes = [8, 16], strides = [1, 1]} : vector<8x32xf32> to vector<8x16xf32>
    %272 = vector.extract_strided_slice %261 {offsets = [0, 32], sizes = [8, 16], strides = [1, 1]} : vector<8x48xf32> to vector<8x16xf32>
    %273 = vector.extract_strided_slice %259 {offsets = [0, 32], sizes = [8, 16], strides = [1, 1]} : vector<8x48xf32> to vector<8x16xf32>
    %274 = arith.addf %273, %247 : vector<8x16xf32>
    %275 = arith.mulf %270, %274 : vector<8x16xf32>
    %276 = arith.addf %272, %275 : vector<8x16xf32>
    %277 = math.tanh %276 : vector<8x16xf32>
    %cst_87 = arith.constant 1.000000e+00 : f32
    %278 = vector.broadcast %cst_87 : f32 to vector<8x16xf32>
    %279 = arith.subf %278, %271 : vector<8x16xf32>
    %280 = arith.mulf %279, %277 : vector<8x16xf32>
    %281 = arith.mulf %271, %256 : vector<8x16xf32>
    %282 = arith.addf %280, %281 : vector<8x16xf32>
    %283 = arith.index_cast %258 : i32 to index
    %c0_88 = arith.constant 0 : index
    %284 = vector.load %arg9[%283, %c0_88] : memref<64x16xf32, #tpu.memory_space<vmem>>, vector<8x16xf32>
    tpu.vector_store %arg9[%283, %c0_88], %282 {strides = array<i32>} : memref<64x16xf32, #tpu.memory_space<vmem>>, vector<8x16xf32>,
    %c1_i32_89 = arith.constant 1 : i32
    %c8_i32_90 = arith.constant 8 : i32
    %285 = arith.muli %c1_i32_89, %c8_i32_90 : i32
    %286 = tpu.assume_multiple %285, 8 : i32
    %cst_91 = arith.constant dense<0.000000e+00> : vector<8x48xf32>
    %287 = tpu.matmul %282, %243, %cst_91 {dimension_numbers = #tpu.dot_dimension_numbers<[1], [0], [0], [1], [0, 0, 1, 1], [], []>} : vector<8x16xf32>, vector<16x48xf32>, vector<8x48xf32> -> vector<8x48xf32>
    %288 = arith.index_cast %286 : i32 to index
    %c0_92 = arith.constant 0 : index
    %289 = vector.load %arg10[%288, %c0_92] : memref<64x48xf32, #tpu.memory_space<vmem>>, vector<8x48xf32>
    %290 = vector.extract_strided_slice %289 {offsets = [0, 0], sizes = [8, 32], strides = [1, 1]} : vector<8x48xf32> to vector<8x32xf32>
    %291 = vector.extract_strided_slice %287 {offsets = [0, 0], sizes = [8, 32], strides = [1, 1]} : vector<8x48xf32> to vector<8x32xf32>
    %292 = arith.addf %290, %291 : vector<8x32xf32>
    %293 = arith.negf %292 : vector<8x32xf32>
    %294 = math.exp %293 : vector<8x32xf32>
    %cst_93 = arith.constant 1.000000e+00 : f32
    %295 = vector.broadcast %cst_93 : f32 to vector<8x32xf32>
    %296 = arith.addf %295, %294 : vector<8x32xf32>
    %297 = arith.divf %295, %296 : vector<8x32xf32>
    %298 = vector.extract_strided_slice %297 {offsets = [0, 0], sizes = [8, 16], strides = [1, 1]} : vector<8x32xf32> to vector<8x16xf32>
    %299 = vector.extract_strided_slice %297 {offsets = [0, 16], sizes = [8, 16], strides = [1, 1]} : vector<8x32xf32> to vector<8x16xf32>
    %300 = vector.extract_strided_slice %289 {offsets = [0, 32], sizes = [8, 16], strides = [1, 1]} : vector<8x48xf32> to vector<8x16xf32>
    %301 = vector.extract_strided_slice %287 {offsets = [0, 32], sizes = [8, 16], strides = [1, 1]} : vector<8x48xf32> to vector<8x16xf32>
    %302 = arith.addf %301, %247 : vector<8x16xf32>
    %303 = arith.mulf %298, %302 : vector<8x16xf32>
    %304 = arith.addf %300, %303 : vector<8x16xf32>
    %305 = math.tanh %304 : vector<8x16xf32>
    %cst_94 = arith.constant 1.000000e+00 : f32
    %306 = vector.broadcast %cst_94 : f32 to vector<8x16xf32>
    %307 = arith.subf %306, %299 : vector<8x16xf32>
    %308 = arith.mulf %307, %305 : vector<8x16xf32>
    %309 = arith.mulf %299, %282 : vector<8x16xf32>
    %310 = arith.addf %308, %309 : vector<8x16xf32>
    %311 = arith.index_cast %286 : i32 to index
    %c0_95 = arith.constant 0 : index
    %312 = vector.load %arg9[%311, %c0_95] : memref<64x16xf32, #tpu.memory_space<vmem>>, vector<8x16xf32>
    tpu.vector_store %arg9[%311, %c0_95], %310 {strides = array<i32>} : memref<64x16xf32, #tpu.memory_space<vmem>>, vector<8x16xf32>,
    %c2_i32_96 = arith.constant 2 : i32
    %c8_i32_97 = arith.constant 8 : i32
    %313 = arith.muli %c2_i32_96, %c8_i32_97 : i32
    %314 = tpu.assume_multiple %313, 8 : i32
    %cst_98 = arith.constant dense<0.000000e+00> : vector<8x48xf32>
    %315 = tpu.matmul %310, %243, %cst_98 {dimension_numbers = #tpu.dot_dimension_numbers<[1], [0], [0], [1], [0, 0, 1, 1], [], []>} : vector<8x16xf32>, vector<16x48xf32>, vector<8x48xf32> -> vector<8x48xf32>
    %316 = arith.index_cast %314 : i32 to index
    %c0_99 = arith.constant 0 : index
    %317 = vector.load %arg10[%316, %c0_99] : memref<64x48xf32, #tpu.memory_space<vmem>>, vector<8x48xf32>
    %318 = vector.extract_strided_slice %317 {offsets = [0, 0], sizes = [8, 32], strides = [1, 1]} : vector<8x48xf32> to vector<8x32xf32>
    %319 = vector.extract_strided_slice %315 {offsets = [0, 0], sizes = [8, 32], strides = [1, 1]} : vector<8x48xf32> to vector<8x32xf32>
    %320 = arith.addf %318, %319 : vector<8x32xf32>
    %321 = arith.negf %320 : vector<8x32xf32>
    %322 = math.exp %321 : vector<8x32xf32>
    %cst_100 = arith.constant 1.000000e+00 : f32
    %323 = vector.broadcast %cst_100 : f32 to vector<8x32xf32>
    %324 = arith.addf %323, %322 : vector<8x32xf32>
    %325 = arith.divf %323, %324 : vector<8x32xf32>
    %326 = vector.extract_strided_slice %325 {offsets = [0, 0], sizes = [8, 16], strides = [1, 1]} : vector<8x32xf32> to vector<8x16xf32>
    %327 = vector.extract_strided_slice %325 {offsets = [0, 16], sizes = [8, 16], strides = [1, 1]} : vector<8x32xf32> to vector<8x16xf32>
    %328 = vector.extract_strided_slice %317 {offsets = [0, 32], sizes = [8, 16], strides = [1, 1]} : vector<8x48xf32> to vector<8x16xf32>
    %329 = vector.extract_strided_slice %315 {offsets = [0, 32], sizes = [8, 16], strides = [1, 1]} : vector<8x48xf32> to vector<8x16xf32>
    %330 = arith.addf %329, %247 : vector<8x16xf32>
    %331 = arith.mulf %326, %330 : vector<8x16xf32>
    %332 = arith.addf %328, %331 : vector<8x16xf32>
    %333 = math.tanh %332 : vector<8x16xf32>
    %cst_101 = arith.constant 1.000000e+00 : f32
    %334 = vector.broadcast %cst_101 : f32 to vector<8x16xf32>
    %335 = arith.subf %334, %327 : vector<8x16xf32>
    %336 = arith.mulf %335, %333 : vector<8x16xf32>
    %337 = arith.mulf %327, %310 : vector<8x16xf32>
    %338 = arith.addf %336, %337 : vector<8x16xf32>
    %339 = arith.index_cast %314 : i32 to index
    %c0_102 = arith.constant 0 : index
    %340 = vector.load %arg9[%339, %c0_102] : memref<64x16xf32, #tpu.memory_space<vmem>>, vector<8x16xf32>
    tpu.vector_store %arg9[%339, %c0_102], %338 {strides = array<i32>} : memref<64x16xf32, #tpu.memory_space<vmem>>, vector<8x16xf32>,
    %c3_i32_103 = arith.constant 3 : i32
    %c8_i32_104 = arith.constant 8 : i32
    %341 = arith.muli %c3_i32_103, %c8_i32_104 : i32
    %342 = tpu.assume_multiple %341, 8 : i32
    %cst_105 = arith.constant dense<0.000000e+00> : vector<8x48xf32>
    %343 = tpu.matmul %338, %243, %cst_105 {dimension_numbers = #tpu.dot_dimension_numbers<[1], [0], [0], [1], [0, 0, 1, 1], [], []>} : vector<8x16xf32>, vector<16x48xf32>, vector<8x48xf32> -> vector<8x48xf32>
    %344 = arith.index_cast %342 : i32 to index
    %c0_106 = arith.constant 0 : index
    %345 = vector.load %arg10[%344, %c0_106] : memref<64x48xf32, #tpu.memory_space<vmem>>, vector<8x48xf32>
    %346 = vector.extract_strided_slice %345 {offsets = [0, 0], sizes = [8, 32], strides = [1, 1]} : vector<8x48xf32> to vector<8x32xf32>
    %347 = vector.extract_strided_slice %343 {offsets = [0, 0], sizes = [8, 32], strides = [1, 1]} : vector<8x48xf32> to vector<8x32xf32>
    %348 = arith.addf %346, %347 : vector<8x32xf32>
    %349 = arith.negf %348 : vector<8x32xf32>
    %350 = math.exp %349 : vector<8x32xf32>
    %cst_107 = arith.constant 1.000000e+00 : f32
    %351 = vector.broadcast %cst_107 : f32 to vector<8x32xf32>
    %352 = arith.addf %351, %350 : vector<8x32xf32>
    %353 = arith.divf %351, %352 : vector<8x32xf32>
    %354 = vector.extract_strided_slice %353 {offsets = [0, 0], sizes = [8, 16], strides = [1, 1]} : vector<8x32xf32> to vector<8x16xf32>
    %355 = vector.extract_strided_slice %353 {offsets = [0, 16], sizes = [8, 16], strides = [1, 1]} : vector<8x32xf32> to vector<8x16xf32>
    %356 = vector.extract_strided_slice %345 {offsets = [0, 32], sizes = [8, 16], strides = [1, 1]} : vector<8x48xf32> to vector<8x16xf32>
    %357 = vector.extract_strided_slice %343 {offsets = [0, 32], sizes = [8, 16], strides = [1, 1]} : vector<8x48xf32> to vector<8x16xf32>
    %358 = arith.addf %357, %247 : vector<8x16xf32>
    %359 = arith.mulf %354, %358 : vector<8x16xf32>
    %360 = arith.addf %356, %359 : vector<8x16xf32>
    %361 = math.tanh %360 : vector<8x16xf32>
    %cst_108 = arith.constant 1.000000e+00 : f32
    %362 = vector.broadcast %cst_108 : f32 to vector<8x16xf32>
    %363 = arith.subf %362, %355 : vector<8x16xf32>
    %364 = arith.mulf %363, %361 : vector<8x16xf32>
    %365 = arith.mulf %355, %338 : vector<8x16xf32>
    %366 = arith.addf %364, %365 : vector<8x16xf32>
    %367 = arith.index_cast %342 : i32 to index
    %c0_109 = arith.constant 0 : index
    %368 = vector.load %arg9[%367, %c0_109] : memref<64x16xf32, #tpu.memory_space<vmem>>, vector<8x16xf32>
    tpu.vector_store %arg9[%367, %c0_109], %366 {strides = array<i32>} : memref<64x16xf32, #tpu.memory_space<vmem>>, vector<8x16xf32>,
    %c4_i32_110 = arith.constant 4 : i32
    %c8_i32_111 = arith.constant 8 : i32
    %369 = arith.muli %c4_i32_110, %c8_i32_111 : i32
    %370 = tpu.assume_multiple %369, 8 : i32
    %cst_112 = arith.constant dense<0.000000e+00> : vector<8x48xf32>
    %371 = tpu.matmul %366, %243, %cst_112 {dimension_numbers = #tpu.dot_dimension_numbers<[1], [0], [0], [1], [0, 0, 1, 1], [], []>} : vector<8x16xf32>, vector<16x48xf32>, vector<8x48xf32> -> vector<8x48xf32>
    %372 = arith.index_cast %370 : i32 to index
    %c0_113 = arith.constant 0 : index
    %373 = vector.load %arg10[%372, %c0_113] : memref<64x48xf32, #tpu.memory_space<vmem>>, vector<8x48xf32>
    %374 = vector.extract_strided_slice %373 {offsets = [0, 0], sizes = [8, 32], strides = [1, 1]} : vector<8x48xf32> to vector<8x32xf32>
    %375 = vector.extract_strided_slice %371 {offsets = [0, 0], sizes = [8, 32], strides = [1, 1]} : vector<8x48xf32> to vector<8x32xf32>
    %376 = arith.addf %374, %375 : vector<8x32xf32>
    %377 = arith.negf %376 : vector<8x32xf32>
    %378 = math.exp %377 : vector<8x32xf32>
    %cst_114 = arith.constant 1.000000e+00 : f32
    %379 = vector.broadcast %cst_114 : f32 to vector<8x32xf32>
    %380 = arith.addf %379, %378 : vector<8x32xf32>
    %381 = arith.divf %379, %380 : vector<8x32xf32>
    %382 = vector.extract_strided_slice %381 {offsets = [0, 0], sizes = [8, 16], strides = [1, 1]} : vector<8x32xf32> to vector<8x16xf32>
    %383 = vector.extract_strided_slice %381 {offsets = [0, 16], sizes = [8, 16], strides = [1, 1]} : vector<8x32xf32> to vector<8x16xf32>
    %384 = vector.extract_strided_slice %373 {offsets = [0, 32], sizes = [8, 16], strides = [1, 1]} : vector<8x48xf32> to vector<8x16xf32>
    %385 = vector.extract_strided_slice %371 {offsets = [0, 32], sizes = [8, 16], strides = [1, 1]} : vector<8x48xf32> to vector<8x16xf32>
    %386 = arith.addf %385, %247 : vector<8x16xf32>
    %387 = arith.mulf %382, %386 : vector<8x16xf32>
    %388 = arith.addf %384, %387 : vector<8x16xf32>
    %389 = math.tanh %388 : vector<8x16xf32>
    %cst_115 = arith.constant 1.000000e+00 : f32
    %390 = vector.broadcast %cst_115 : f32 to vector<8x16xf32>
    %391 = arith.subf %390, %383 : vector<8x16xf32>
    %392 = arith.mulf %391, %389 : vector<8x16xf32>
    %393 = arith.mulf %383, %366 : vector<8x16xf32>
    %394 = arith.addf %392, %393 : vector<8x16xf32>
    %395 = arith.index_cast %370 : i32 to index
    %c0_116 = arith.constant 0 : index
    %396 = vector.load %arg9[%395, %c0_116] : memref<64x16xf32, #tpu.memory_space<vmem>>, vector<8x16xf32>
    tpu.vector_store %arg9[%395, %c0_116], %394 {strides = array<i32>} : memref<64x16xf32, #tpu.memory_space<vmem>>, vector<8x16xf32>,
    %c5_i32_117 = arith.constant 5 : i32
    %c8_i32_118 = arith.constant 8 : i32
    %397 = arith.muli %c5_i32_117, %c8_i32_118 : i32
    %398 = tpu.assume_multiple %397, 8 : i32
    %cst_119 = arith.constant dense<0.000000e+00> : vector<8x48xf32>
    %399 = tpu.matmul %394, %243, %cst_119 {dimension_numbers = #tpu.dot_dimension_numbers<[1], [0], [0], [1], [0, 0, 1, 1], [], []>} : vector<8x16xf32>, vector<16x48xf32>, vector<8x48xf32> -> vector<8x48xf32>
    %400 = arith.index_cast %398 : i32 to index
    %c0_120 = arith.constant 0 : index
    %401 = vector.load %arg10[%400, %c0_120] : memref<64x48xf32, #tpu.memory_space<vmem>>, vector<8x48xf32>
    %402 = vector.extract_strided_slice %401 {offsets = [0, 0], sizes = [8, 32], strides = [1, 1]} : vector<8x48xf32> to vector<8x32xf32>
    %403 = vector.extract_strided_slice %399 {offsets = [0, 0], sizes = [8, 32], strides = [1, 1]} : vector<8x48xf32> to vector<8x32xf32>
    %404 = arith.addf %402, %403 : vector<8x32xf32>
    %405 = arith.negf %404 : vector<8x32xf32>
    %406 = math.exp %405 : vector<8x32xf32>
    %cst_121 = arith.constant 1.000000e+00 : f32
    %407 = vector.broadcast %cst_121 : f32 to vector<8x32xf32>
    %408 = arith.addf %407, %406 : vector<8x32xf32>
    %409 = arith.divf %407, %408 : vector<8x32xf32>
    %410 = vector.extract_strided_slice %409 {offsets = [0, 0], sizes = [8, 16], strides = [1, 1]} : vector<8x32xf32> to vector<8x16xf32>
    %411 = vector.extract_strided_slice %409 {offsets = [0, 16], sizes = [8, 16], strides = [1, 1]} : vector<8x32xf32> to vector<8x16xf32>
    %412 = vector.extract_strided_slice %401 {offsets = [0, 32], sizes = [8, 16], strides = [1, 1]} : vector<8x48xf32> to vector<8x16xf32>
    %413 = vector.extract_strided_slice %399 {offsets = [0, 32], sizes = [8, 16], strides = [1, 1]} : vector<8x48xf32> to vector<8x16xf32>
    %414 = arith.addf %413, %247 : vector<8x16xf32>
    %415 = arith.mulf %410, %414 : vector<8x16xf32>
    %416 = arith.addf %412, %415 : vector<8x16xf32>
    %417 = math.tanh %416 : vector<8x16xf32>
    %cst_122 = arith.constant 1.000000e+00 : f32
    %418 = vector.broadcast %cst_122 : f32 to vector<8x16xf32>
    %419 = arith.subf %418, %411 : vector<8x16xf32>
    %420 = arith.mulf %419, %417 : vector<8x16xf32>
    %421 = arith.mulf %411, %394 : vector<8x16xf32>
    %422 = arith.addf %420, %421 : vector<8x16xf32>
    %423 = arith.index_cast %398 : i32 to index
    %c0_123 = arith.constant 0 : index
    %424 = vector.load %arg9[%423, %c0_123] : memref<64x16xf32, #tpu.memory_space<vmem>>, vector<8x16xf32>
    tpu.vector_store %arg9[%423, %c0_123], %422 {strides = array<i32>} : memref<64x16xf32, #tpu.memory_space<vmem>>, vector<8x16xf32>,
    %c6_i32_124 = arith.constant 6 : i32
    %c8_i32_125 = arith.constant 8 : i32
    %425 = arith.muli %c6_i32_124, %c8_i32_125 : i32
    %426 = tpu.assume_multiple %425, 8 : i32
    %cst_126 = arith.constant dense<0.000000e+00> : vector<8x48xf32>
    %427 = tpu.matmul %422, %243, %cst_126 {dimension_numbers = #tpu.dot_dimension_numbers<[1], [0], [0], [1], [0, 0, 1, 1], [], []>} : vector<8x16xf32>, vector<16x48xf32>, vector<8x48xf32> -> vector<8x48xf32>
    %428 = arith.index_cast %426 : i32 to index
    %c0_127 = arith.constant 0 : index
    %429 = vector.load %arg10[%428, %c0_127] : memref<64x48xf32, #tpu.memory_space<vmem>>, vector<8x48xf32>
    %430 = vector.extract_strided_slice %429 {offsets = [0, 0], sizes = [8, 32], strides = [1, 1]} : vector<8x48xf32> to vector<8x32xf32>
    %431 = vector.extract_strided_slice %427 {offsets = [0, 0], sizes = [8, 32], strides = [1, 1]} : vector<8x48xf32> to vector<8x32xf32>
    %432 = arith.addf %430, %431 : vector<8x32xf32>
    %433 = arith.negf %432 : vector<8x32xf32>
    %434 = math.exp %433 : vector<8x32xf32>
    %cst_128 = arith.constant 1.000000e+00 : f32
    %435 = vector.broadcast %cst_128 : f32 to vector<8x32xf32>
    %436 = arith.addf %435, %434 : vector<8x32xf32>
    %437 = arith.divf %435, %436 : vector<8x32xf32>
    %438 = vector.extract_strided_slice %437 {offsets = [0, 0], sizes = [8, 16], strides = [1, 1]} : vector<8x32xf32> to vector<8x16xf32>
    %439 = vector.extract_strided_slice %437 {offsets = [0, 16], sizes = [8, 16], strides = [1, 1]} : vector<8x32xf32> to vector<8x16xf32>
    %440 = vector.extract_strided_slice %429 {offsets = [0, 32], sizes = [8, 16], strides = [1, 1]} : vector<8x48xf32> to vector<8x16xf32>
    %441 = vector.extract_strided_slice %427 {offsets = [0, 32], sizes = [8, 16], strides = [1, 1]} : vector<8x48xf32> to vector<8x16xf32>
    %442 = arith.addf %441, %247 : vector<8x16xf32>
    %443 = arith.mulf %438, %442 : vector<8x16xf32>
    %444 = arith.addf %440, %443 : vector<8x16xf32>
    %445 = math.tanh %444 : vector<8x16xf32>
    %cst_129 = arith.constant 1.000000e+00 : f32
    %446 = vector.broadcast %cst_129 : f32 to vector<8x16xf32>
    %447 = arith.subf %446, %439 : vector<8x16xf32>
    %448 = arith.mulf %447, %445 : vector<8x16xf32>
    %449 = arith.mulf %439, %422 : vector<8x16xf32>
    %450 = arith.addf %448, %449 : vector<8x16xf32>
    %451 = arith.index_cast %426 : i32 to index
    %c0_130 = arith.constant 0 : index
    %452 = vector.load %arg9[%451, %c0_130] : memref<64x16xf32, #tpu.memory_space<vmem>>, vector<8x16xf32>
    tpu.vector_store %arg9[%451, %c0_130], %450 {strides = array<i32>} : memref<64x16xf32, #tpu.memory_space<vmem>>, vector<8x16xf32>,
    %c7_i32_131 = arith.constant 7 : i32
    %c8_i32_132 = arith.constant 8 : i32
    %453 = arith.muli %c7_i32_131, %c8_i32_132 : i32
    %454 = tpu.assume_multiple %453, 8 : i32
    %cst_133 = arith.constant dense<0.000000e+00> : vector<8x48xf32>
    %455 = tpu.matmul %450, %243, %cst_133 {dimension_numbers = #tpu.dot_dimension_numbers<[1], [0], [0], [1], [0, 0, 1, 1], [], []>} : vector<8x16xf32>, vector<16x48xf32>, vector<8x48xf32> -> vector<8x48xf32>
    %456 = arith.index_cast %454 : i32 to index
    %c0_134 = arith.constant 0 : index
    %457 = vector.load %arg10[%456, %c0_134] : memref<64x48xf32, #tpu.memory_space<vmem>>, vector<8x48xf32>
    %458 = vector.extract_strided_slice %457 {offsets = [0, 0], sizes = [8, 32], strides = [1, 1]} : vector<8x48xf32> to vector<8x32xf32>
    %459 = vector.extract_strided_slice %455 {offsets = [0, 0], sizes = [8, 32], strides = [1, 1]} : vector<8x48xf32> to vector<8x32xf32>
    %460 = arith.addf %458, %459 : vector<8x32xf32>
    %461 = arith.negf %460 : vector<8x32xf32>
    %462 = math.exp %461 : vector<8x32xf32>
    %cst_135 = arith.constant 1.000000e+00 : f32
    %463 = vector.broadcast %cst_135 : f32 to vector<8x32xf32>
    %464 = arith.addf %463, %462 : vector<8x32xf32>
    %465 = arith.divf %463, %464 : vector<8x32xf32>
    %466 = vector.extract_strided_slice %465 {offsets = [0, 0], sizes = [8, 16], strides = [1, 1]} : vector<8x32xf32> to vector<8x16xf32>
    %467 = vector.extract_strided_slice %465 {offsets = [0, 16], sizes = [8, 16], strides = [1, 1]} : vector<8x32xf32> to vector<8x16xf32>
    %468 = vector.extract_strided_slice %457 {offsets = [0, 32], sizes = [8, 16], strides = [1, 1]} : vector<8x48xf32> to vector<8x16xf32>
    %469 = vector.extract_strided_slice %455 {offsets = [0, 32], sizes = [8, 16], strides = [1, 1]} : vector<8x48xf32> to vector<8x16xf32>
    %470 = arith.addf %469, %247 : vector<8x16xf32>
    %471 = arith.mulf %466, %470 : vector<8x16xf32>
    %472 = arith.addf %468, %471 : vector<8x16xf32>
    %473 = math.tanh %472 : vector<8x16xf32>
    %cst_136 = arith.constant 1.000000e+00 : f32
    %474 = vector.broadcast %cst_136 : f32 to vector<8x16xf32>
    %475 = arith.subf %474, %467 : vector<8x16xf32>
    %476 = arith.mulf %475, %473 : vector<8x16xf32>
    %477 = arith.mulf %467, %450 : vector<8x16xf32>
    %478 = arith.addf %476, %477 : vector<8x16xf32>
    %479 = arith.index_cast %454 : i32 to index
    %c0_137 = arith.constant 0 : index
    %480 = vector.load %arg9[%479, %c0_137] : memref<64x16xf32, #tpu.memory_space<vmem>>, vector<8x16xf32>
    tpu.vector_store %arg9[%479, %c0_137], %478 {strides = array<i32>} : memref<64x16xf32, #tpu.memory_space<vmem>>, vector<8x16xf32>,
    %c8_i32_138 = arith.constant 8 : i32
    %c0_139 = arith.constant 0 : index
    %c0_140 = arith.constant 0 : index
    %481 = vector.load %arg9[%c0_139, %c0_140] : memref<64x16xf32, #tpu.memory_space<vmem>>, vector<64x16xf32>
    %c2 = arith.constant 2 : index
    %c0_141 = arith.constant 0 : index
    %c0_142 = arith.constant 0 : index
    %482 = vector.load %arg3[%c2, %c0_141, %c0_142] : memref<4x16x48xf32, #tpu.memory_space<vmem>>, vector<1x16x48xf32>
    %483 = vector.shape_cast %482 : vector<1x16x48xf32> to vector<16x48xf32>
    %c2_143 = arith.constant 2 : index
    %c0_144 = arith.constant 0 : index
    %c0_145 = arith.constant 0 : index
    %484 = vector.load %arg5[%c2_143, %c0_144, %c0_145] : memref<4x1x16xf32, #tpu.memory_space<vmem>>, vector<1x1x16xf32>
    %485 = vector.shape_cast %484 : vector<1x1x16xf32> to vector<1x16xf32>
    %486 = vector.shape_cast %485 : vector<1x16xf32> to vector<1x16xf32>
    %487 = vector.broadcast %486 : vector<1x16xf32> to vector<8x16xf32>
    %c2_146 = arith.constant 2 : index
    %c0_147 = arith.constant 0 : index
    %c0_148 = arith.constant 0 : index
    %488 = vector.load %arg2[%c2_146, %c0_147, %c0_148] : memref<4x16x48xf32, #tpu.memory_space<vmem>>, vector<1x16x48xf32>
    %489 = vector.shape_cast %488 : vector<1x16x48xf32> to vector<16x48xf32>
    %cst_149 = arith.constant dense<0.000000e+00> : vector<64x48xf32>
    %490 = tpu.matmul %481, %489, %cst_149 {dimension_numbers = #tpu.dot_dimension_numbers<[1], [0], [0], [1], [0, 0, 1, 1], [], []>} : vector<64x16xf32>, vector<16x48xf32>, vector<64x48xf32> -> vector<64x48xf32>
    %c2_150 = arith.constant 2 : index
    %c0_151 = arith.constant 0 : index
    %c0_152 = arith.constant 0 : index
    %491 = vector.load %arg4[%c2_150, %c0_151, %c0_152] : memref<4x1x48xf32, #tpu.memory_space<vmem>>, vector<1x1x48xf32>
    %492 = vector.shape_cast %491 : vector<1x1x48xf32> to vector<1x48xf32>
    %493 = vector.broadcast %492 : vector<1x48xf32> to vector<64x48xf32>
    %494 = arith.addf %490, %493 : vector<64x48xf32>
    %c0_153 = arith.constant 0 : index
    %c0_154 = arith.constant 0 : index
    %495 = vector.load %arg10[%c0_153, %c0_154] : memref<64x48xf32, #tpu.memory_space<vmem>>, vector<64x48xf32>
    tpu.vector_store %arg10[%c0_153, %c0_154], %494 {strides = array<i32>} : memref<64x48xf32, #tpu.memory_space<vmem>>, vector<64x48xf32>,
    %cst_155 = arith.constant 0.000000e+00 : f32
    %496 = vector.broadcast %cst_155 : f32 to vector<8x16xf32>
    %c0_i32_156 = arith.constant 0 : i32
    %c8_i32_157 = arith.constant 8 : i32
    %497 = arith.muli %c0_i32_156, %c8_i32_157 : i32
    %498 = tpu.assume_multiple %497, 8 : i32
    %cst_158 = arith.constant dense<0.000000e+00> : vector<8x48xf32>
    %499 = tpu.matmul %496, %483, %cst_158 {dimension_numbers = #tpu.dot_dimension_numbers<[1], [0], [0], [1], [0, 0, 1, 1], [], []>} : vector<8x16xf32>, vector<16x48xf32>, vector<8x48xf32> -> vector<8x48xf32>
    %500 = arith.index_cast %498 : i32 to index
    %c0_159 = arith.constant 0 : index
    %501 = vector.load %arg10[%500, %c0_159] : memref<64x48xf32, #tpu.memory_space<vmem>>, vector<8x48xf32>
    %502 = vector.extract_strided_slice %501 {offsets = [0, 0], sizes = [8, 32], strides = [1, 1]} : vector<8x48xf32> to vector<8x32xf32>
    %503 = vector.extract_strided_slice %499 {offsets = [0, 0], sizes = [8, 32], strides = [1, 1]} : vector<8x48xf32> to vector<8x32xf32>
    %504 = arith.addf %502, %503 : vector<8x32xf32>
    %505 = arith.negf %504 : vector<8x32xf32>
    %506 = math.exp %505 : vector<8x32xf32>
    %cst_160 = arith.constant 1.000000e+00 : f32
    %507 = vector.broadcast %cst_160 : f32 to vector<8x32xf32>
    %508 = arith.addf %507, %506 : vector<8x32xf32>
    %509 = arith.divf %507, %508 : vector<8x32xf32>
    %510 = vector.extract_strided_slice %509 {offsets = [0, 0], sizes = [8, 16], strides = [1, 1]} : vector<8x32xf32> to vector<8x16xf32>
    %511 = vector.extract_strided_slice %509 {offsets = [0, 16], sizes = [8, 16], strides = [1, 1]} : vector<8x32xf32> to vector<8x16xf32>
    %512 = vector.extract_strided_slice %501 {offsets = [0, 32], sizes = [8, 16], strides = [1, 1]} : vector<8x48xf32> to vector<8x16xf32>
    %513 = vector.extract_strided_slice %499 {offsets = [0, 32], sizes = [8, 16], strides = [1, 1]} : vector<8x48xf32> to vector<8x16xf32>
    %514 = arith.addf %513, %487 : vector<8x16xf32>
    %515 = arith.mulf %510, %514 : vector<8x16xf32>
    %516 = arith.addf %512, %515 : vector<8x16xf32>
    %517 = math.tanh %516 : vector<8x16xf32>
    %cst_161 = arith.constant 1.000000e+00 : f32
    %518 = vector.broadcast %cst_161 : f32 to vector<8x16xf32>
    %519 = arith.subf %518, %511 : vector<8x16xf32>
    %520 = arith.mulf %519, %517 : vector<8x16xf32>
    %521 = arith.mulf %511, %496 : vector<8x16xf32>
    %522 = arith.addf %520, %521 : vector<8x16xf32>
    %523 = arith.index_cast %498 : i32 to index
    %c0_162 = arith.constant 0 : index
    %524 = vector.load %arg9[%523, %c0_162] : memref<64x16xf32, #tpu.memory_space<vmem>>, vector<8x16xf32>
    tpu.vector_store %arg9[%523, %c0_162], %522 {strides = array<i32>} : memref<64x16xf32, #tpu.memory_space<vmem>>, vector<8x16xf32>,
    %c1_i32_163 = arith.constant 1 : i32
    %c8_i32_164 = arith.constant 8 : i32
    %525 = arith.muli %c1_i32_163, %c8_i32_164 : i32
    %526 = tpu.assume_multiple %525, 8 : i32
    %cst_165 = arith.constant dense<0.000000e+00> : vector<8x48xf32>
    %527 = tpu.matmul %522, %483, %cst_165 {dimension_numbers = #tpu.dot_dimension_numbers<[1], [0], [0], [1], [0, 0, 1, 1], [], []>} : vector<8x16xf32>, vector<16x48xf32>, vector<8x48xf32> -> vector<8x48xf32>
    %528 = arith.index_cast %526 : i32 to index
    %c0_166 = arith.constant 0 : index
    %529 = vector.load %arg10[%528, %c0_166] : memref<64x48xf32, #tpu.memory_space<vmem>>, vector<8x48xf32>
    %530 = vector.extract_strided_slice %529 {offsets = [0, 0], sizes = [8, 32], strides = [1, 1]} : vector<8x48xf32> to vector<8x32xf32>
    %531 = vector.extract_strided_slice %527 {offsets = [0, 0], sizes = [8, 32], strides = [1, 1]} : vector<8x48xf32> to vector<8x32xf32>
    %532 = arith.addf %530, %531 : vector<8x32xf32>
    %533 = arith.negf %532 : vector<8x32xf32>
    %534 = math.exp %533 : vector<8x32xf32>
    %cst_167 = arith.constant 1.000000e+00 : f32
    %535 = vector.broadcast %cst_167 : f32 to vector<8x32xf32>
    %536 = arith.addf %535, %534 : vector<8x32xf32>
    %537 = arith.divf %535, %536 : vector<8x32xf32>
    %538 = vector.extract_strided_slice %537 {offsets = [0, 0], sizes = [8, 16], strides = [1, 1]} : vector<8x32xf32> to vector<8x16xf32>
    %539 = vector.extract_strided_slice %537 {offsets = [0, 16], sizes = [8, 16], strides = [1, 1]} : vector<8x32xf32> to vector<8x16xf32>
    %540 = vector.extract_strided_slice %529 {offsets = [0, 32], sizes = [8, 16], strides = [1, 1]} : vector<8x48xf32> to vector<8x16xf32>
    %541 = vector.extract_strided_slice %527 {offsets = [0, 32], sizes = [8, 16], strides = [1, 1]} : vector<8x48xf32> to vector<8x16xf32>
    %542 = arith.addf %541, %487 : vector<8x16xf32>
    %543 = arith.mulf %538, %542 : vector<8x16xf32>
    %544 = arith.addf %540, %543 : vector<8x16xf32>
    %545 = math.tanh %544 : vector<8x16xf32>
    %cst_168 = arith.constant 1.000000e+00 : f32
    %546 = vector.broadcast %cst_168 : f32 to vector<8x16xf32>
    %547 = arith.subf %546, %539 : vector<8x16xf32>
    %548 = arith.mulf %547, %545 : vector<8x16xf32>
    %549 = arith.mulf %539, %522 : vector<8x16xf32>
    %550 = arith.addf %548, %549 : vector<8x16xf32>
    %551 = arith.index_cast %526 : i32 to index
    %c0_169 = arith.constant 0 : index
    %552 = vector.load %arg9[%551, %c0_169] : memref<64x16xf32, #tpu.memory_space<vmem>>, vector<8x16xf32>
    tpu.vector_store %arg9[%551, %c0_169], %550 {strides = array<i32>} : memref<64x16xf32, #tpu.memory_space<vmem>>, vector<8x16xf32>,
    %c2_i32_170 = arith.constant 2 : i32
    %c8_i32_171 = arith.constant 8 : i32
    %553 = arith.muli %c2_i32_170, %c8_i32_171 : i32
    %554 = tpu.assume_multiple %553, 8 : i32
    %cst_172 = arith.constant dense<0.000000e+00> : vector<8x48xf32>
    %555 = tpu.matmul %550, %483, %cst_172 {dimension_numbers = #tpu.dot_dimension_numbers<[1], [0], [0], [1], [0, 0, 1, 1], [], []>} : vector<8x16xf32>, vector<16x48xf32>, vector<8x48xf32> -> vector<8x48xf32>
    %556 = arith.index_cast %554 : i32 to index
    %c0_173 = arith.constant 0 : index
    %557 = vector.load %arg10[%556, %c0_173] : memref<64x48xf32, #tpu.memory_space<vmem>>, vector<8x48xf32>
    %558 = vector.extract_strided_slice %557 {offsets = [0, 0], sizes = [8, 32], strides = [1, 1]} : vector<8x48xf32> to vector<8x32xf32>
    %559 = vector.extract_strided_slice %555 {offsets = [0, 0], sizes = [8, 32], strides = [1, 1]} : vector<8x48xf32> to vector<8x32xf32>
    %560 = arith.addf %558, %559 : vector<8x32xf32>
    %561 = arith.negf %560 : vector<8x32xf32>
    %562 = math.exp %561 : vector<8x32xf32>
    %cst_174 = arith.constant 1.000000e+00 : f32
    %563 = vector.broadcast %cst_174 : f32 to vector<8x32xf32>
    %564 = arith.addf %563, %562 : vector<8x32xf32>
    %565 = arith.divf %563, %564 : vector<8x32xf32>
    %566 = vector.extract_strided_slice %565 {offsets = [0, 0], sizes = [8, 16], strides = [1, 1]} : vector<8x32xf32> to vector<8x16xf32>
    %567 = vector.extract_strided_slice %565 {offsets = [0, 16], sizes = [8, 16], strides = [1, 1]} : vector<8x32xf32> to vector<8x16xf32>
    %568 = vector.extract_strided_slice %557 {offsets = [0, 32], sizes = [8, 16], strides = [1, 1]} : vector<8x48xf32> to vector<8x16xf32>
    %569 = vector.extract_strided_slice %555 {offsets = [0, 32], sizes = [8, 16], strides = [1, 1]} : vector<8x48xf32> to vector<8x16xf32>
    %570 = arith.addf %569, %487 : vector<8x16xf32>
    %571 = arith.mulf %566, %570 : vector<8x16xf32>
    %572 = arith.addf %568, %571 : vector<8x16xf32>
    %573 = math.tanh %572 : vector<8x16xf32>
    %cst_175 = arith.constant 1.000000e+00 : f32
    %574 = vector.broadcast %cst_175 : f32 to vector<8x16xf32>
    %575 = arith.subf %574, %567 : vector<8x16xf32>
    %576 = arith.mulf %575, %573 : vector<8x16xf32>
    %577 = arith.mulf %567, %550 : vector<8x16xf32>
    %578 = arith.addf %576, %577 : vector<8x16xf32>
    %579 = arith.index_cast %554 : i32 to index
    %c0_176 = arith.constant 0 : index
    %580 = vector.load %arg9[%579, %c0_176] : memref<64x16xf32, #tpu.memory_space<vmem>>, vector<8x16xf32>
    tpu.vector_store %arg9[%579, %c0_176], %578 {strides = array<i32>} : memref<64x16xf32, #tpu.memory_space<vmem>>, vector<8x16xf32>,
    %c3_i32_177 = arith.constant 3 : i32
    %c8_i32_178 = arith.constant 8 : i32
    %581 = arith.muli %c3_i32_177, %c8_i32_178 : i32
    %582 = tpu.assume_multiple %581, 8 : i32
    %cst_179 = arith.constant dense<0.000000e+00> : vector<8x48xf32>
    %583 = tpu.matmul %578, %483, %cst_179 {dimension_numbers = #tpu.dot_dimension_numbers<[1], [0], [0], [1], [0, 0, 1, 1], [], []>} : vector<8x16xf32>, vector<16x48xf32>, vector<8x48xf32> -> vector<8x48xf32>
    %584 = arith.index_cast %582 : i32 to index
    %c0_180 = arith.constant 0 : index
    %585 = vector.load %arg10[%584, %c0_180] : memref<64x48xf32, #tpu.memory_space<vmem>>, vector<8x48xf32>
    %586 = vector.extract_strided_slice %585 {offsets = [0, 0], sizes = [8, 32], strides = [1, 1]} : vector<8x48xf32> to vector<8x32xf32>
    %587 = vector.extract_strided_slice %583 {offsets = [0, 0], sizes = [8, 32], strides = [1, 1]} : vector<8x48xf32> to vector<8x32xf32>
    %588 = arith.addf %586, %587 : vector<8x32xf32>
    %589 = arith.negf %588 : vector<8x32xf32>
    %590 = math.exp %589 : vector<8x32xf32>
    %cst_181 = arith.constant 1.000000e+00 : f32
    %591 = vector.broadcast %cst_181 : f32 to vector<8x32xf32>
    %592 = arith.addf %591, %590 : vector<8x32xf32>
    %593 = arith.divf %591, %592 : vector<8x32xf32>
    %594 = vector.extract_strided_slice %593 {offsets = [0, 0], sizes = [8, 16], strides = [1, 1]} : vector<8x32xf32> to vector<8x16xf32>
    %595 = vector.extract_strided_slice %593 {offsets = [0, 16], sizes = [8, 16], strides = [1, 1]} : vector<8x32xf32> to vector<8x16xf32>
    %596 = vector.extract_strided_slice %585 {offsets = [0, 32], sizes = [8, 16], strides = [1, 1]} : vector<8x48xf32> to vector<8x16xf32>
    %597 = vector.extract_strided_slice %583 {offsets = [0, 32], sizes = [8, 16], strides = [1, 1]} : vector<8x48xf32> to vector<8x16xf32>
    %598 = arith.addf %597, %487 : vector<8x16xf32>
    %599 = arith.mulf %594, %598 : vector<8x16xf32>
    %600 = arith.addf %596, %599 : vector<8x16xf32>
    %601 = math.tanh %600 : vector<8x16xf32>
    %cst_182 = arith.constant 1.000000e+00 : f32
    %602 = vector.broadcast %cst_182 : f32 to vector<8x16xf32>
    %603 = arith.subf %602, %595 : vector<8x16xf32>
    %604 = arith.mulf %603, %601 : vector<8x16xf32>
    %605 = arith.mulf %595, %578 : vector<8x16xf32>
    %606 = arith.addf %604, %605 : vector<8x16xf32>
    %607 = arith.index_cast %582 : i32 to index
    %c0_183 = arith.constant 0 : index
    %608 = vector.load %arg9[%607, %c0_183] : memref<64x16xf32, #tpu.memory_space<vmem>>, vector<8x16xf32>
    tpu.vector_store %arg9[%607, %c0_183], %606 {strides = array<i32>} : memref<64x16xf32, #tpu.memory_space<vmem>>, vector<8x16xf32>,
    %c4_i32_184 = arith.constant 4 : i32
    %c8_i32_185 = arith.constant 8 : i32
    %609 = arith.muli %c4_i32_184, %c8_i32_185 : i32
    %610 = tpu.assume_multiple %609, 8 : i32
    %cst_186 = arith.constant dense<0.000000e+00> : vector<8x48xf32>
    %611 = tpu.matmul %606, %483, %cst_186 {dimension_numbers = #tpu.dot_dimension_numbers<[1], [0], [0], [1], [0, 0, 1, 1], [], []>} : vector<8x16xf32>, vector<16x48xf32>, vector<8x48xf32> -> vector<8x48xf32>
    %612 = arith.index_cast %610 : i32 to index
    %c0_187 = arith.constant 0 : index
    %613 = vector.load %arg10[%612, %c0_187] : memref<64x48xf32, #tpu.memory_space<vmem>>, vector<8x48xf32>
    %614 = vector.extract_strided_slice %613 {offsets = [0, 0], sizes = [8, 32], strides = [1, 1]} : vector<8x48xf32> to vector<8x32xf32>
    %615 = vector.extract_strided_slice %611 {offsets = [0, 0], sizes = [8, 32], strides = [1, 1]} : vector<8x48xf32> to vector<8x32xf32>
    %616 = arith.addf %614, %615 : vector<8x32xf32>
    %617 = arith.negf %616 : vector<8x32xf32>
    %618 = math.exp %617 : vector<8x32xf32>
    %cst_188 = arith.constant 1.000000e+00 : f32
    %619 = vector.broadcast %cst_188 : f32 to vector<8x32xf32>
    %620 = arith.addf %619, %618 : vector<8x32xf32>
    %621 = arith.divf %619, %620 : vector<8x32xf32>
    %622 = vector.extract_strided_slice %621 {offsets = [0, 0], sizes = [8, 16], strides = [1, 1]} : vector<8x32xf32> to vector<8x16xf32>
    %623 = vector.extract_strided_slice %621 {offsets = [0, 16], sizes = [8, 16], strides = [1, 1]} : vector<8x32xf32> to vector<8x16xf32>
    %624 = vector.extract_strided_slice %613 {offsets = [0, 32], sizes = [8, 16], strides = [1, 1]} : vector<8x48xf32> to vector<8x16xf32>
    %625 = vector.extract_strided_slice %611 {offsets = [0, 32], sizes = [8, 16], strides = [1, 1]} : vector<8x48xf32> to vector<8x16xf32>
    %626 = arith.addf %625, %487 : vector<8x16xf32>
    %627 = arith.mulf %622, %626 : vector<8x16xf32>
    %628 = arith.addf %624, %627 : vector<8x16xf32>
    %629 = math.tanh %628 : vector<8x16xf32>
    %cst_189 = arith.constant 1.000000e+00 : f32
    %630 = vector.broadcast %cst_189 : f32 to vector<8x16xf32>
    %631 = arith.subf %630, %623 : vector<8x16xf32>
    %632 = arith.mulf %631, %629 : vector<8x16xf32>
    %633 = arith.mulf %623, %606 : vector<8x16xf32>
    %634 = arith.addf %632, %633 : vector<8x16xf32>
    %635 = arith.index_cast %610 : i32 to index
    %c0_190 = arith.constant 0 : index
    %636 = vector.load %arg9[%635, %c0_190] : memref<64x16xf32, #tpu.memory_space<vmem>>, vector<8x16xf32>
    tpu.vector_store %arg9[%635, %c0_190], %634 {strides = array<i32>} : memref<64x16xf32, #tpu.memory_space<vmem>>, vector<8x16xf32>,
    %c5_i32_191 = arith.constant 5 : i32
    %c8_i32_192 = arith.constant 8 : i32
    %637 = arith.muli %c5_i32_191, %c8_i32_192 : i32
    %638 = tpu.assume_multiple %637, 8 : i32
    %cst_193 = arith.constant dense<0.000000e+00> : vector<8x48xf32>
    %639 = tpu.matmul %634, %483, %cst_193 {dimension_numbers = #tpu.dot_dimension_numbers<[1], [0], [0], [1], [0, 0, 1, 1], [], []>} : vector<8x16xf32>, vector<16x48xf32>, vector<8x48xf32> -> vector<8x48xf32>
    %640 = arith.index_cast %638 : i32 to index
    %c0_194 = arith.constant 0 : index
    %641 = vector.load %arg10[%640, %c0_194] : memref<64x48xf32, #tpu.memory_space<vmem>>, vector<8x48xf32>
    %642 = vector.extract_strided_slice %641 {offsets = [0, 0], sizes = [8, 32], strides = [1, 1]} : vector<8x48xf32> to vector<8x32xf32>
    %643 = vector.extract_strided_slice %639 {offsets = [0, 0], sizes = [8, 32], strides = [1, 1]} : vector<8x48xf32> to vector<8x32xf32>
    %644 = arith.addf %642, %643 : vector<8x32xf32>
    %645 = arith.negf %644 : vector<8x32xf32>
    %646 = math.exp %645 : vector<8x32xf32>
    %cst_195 = arith.constant 1.000000e+00 : f32
    %647 = vector.broadcast %cst_195 : f32 to vector<8x32xf32>
    %648 = arith.addf %647, %646 : vector<8x32xf32>
    %649 = arith.divf %647, %648 : vector<8x32xf32>
    %650 = vector.extract_strided_slice %649 {offsets = [0, 0], sizes = [8, 16], strides = [1, 1]} : vector<8x32xf32> to vector<8x16xf32>
    %651 = vector.extract_strided_slice %649 {offsets = [0, 16], sizes = [8, 16], strides = [1, 1]} : vector<8x32xf32> to vector<8x16xf32>
    %652 = vector.extract_strided_slice %641 {offsets = [0, 32], sizes = [8, 16], strides = [1, 1]} : vector<8x48xf32> to vector<8x16xf32>
    %653 = vector.extract_strided_slice %639 {offsets = [0, 32], sizes = [8, 16], strides = [1, 1]} : vector<8x48xf32> to vector<8x16xf32>
    %654 = arith.addf %653, %487 : vector<8x16xf32>
    %655 = arith.mulf %650, %654 : vector<8x16xf32>
    %656 = arith.addf %652, %655 : vector<8x16xf32>
    %657 = math.tanh %656 : vector<8x16xf32>
    %cst_196 = arith.constant 1.000000e+00 : f32
    %658 = vector.broadcast %cst_196 : f32 to vector<8x16xf32>
    %659 = arith.subf %658, %651 : vector<8x16xf32>
    %660 = arith.mulf %659, %657 : vector<8x16xf32>
    %661 = arith.mulf %651, %634 : vector<8x16xf32>
    %662 = arith.addf %660, %661 : vector<8x16xf32>
    %663 = arith.index_cast %638 : i32 to index
    %c0_197 = arith.constant 0 : index
    %664 = vector.load %arg9[%663, %c0_197] : memref<64x16xf32, #tpu.memory_space<vmem>>, vector<8x16xf32>
    tpu.vector_store %arg9[%663, %c0_197], %662 {strides = array<i32>} : memref<64x16xf32, #tpu.memory_space<vmem>>, vector<8x16xf32>,
    %c6_i32_198 = arith.constant 6 : i32
    %c8_i32_199 = arith.constant 8 : i32
    %665 = arith.muli %c6_i32_198, %c8_i32_199 : i32
    %666 = tpu.assume_multiple %665, 8 : i32
    %cst_200 = arith.constant dense<0.000000e+00> : vector<8x48xf32>
    %667 = tpu.matmul %662, %483, %cst_200 {dimension_numbers = #tpu.dot_dimension_numbers<[1], [0], [0], [1], [0, 0, 1, 1], [], []>} : vector<8x16xf32>, vector<16x48xf32>, vector<8x48xf32> -> vector<8x48xf32>
    %668 = arith.index_cast %666 : i32 to index
    %c0_201 = arith.constant 0 : index
    %669 = vector.load %arg10[%668, %c0_201] : memref<64x48xf32, #tpu.memory_space<vmem>>, vector<8x48xf32>
    %670 = vector.extract_strided_slice %669 {offsets = [0, 0], sizes = [8, 32], strides = [1, 1]} : vector<8x48xf32> to vector<8x32xf32>
    %671 = vector.extract_strided_slice %667 {offsets = [0, 0], sizes = [8, 32], strides = [1, 1]} : vector<8x48xf32> to vector<8x32xf32>
    %672 = arith.addf %670, %671 : vector<8x32xf32>
    %673 = arith.negf %672 : vector<8x32xf32>
    %674 = math.exp %673 : vector<8x32xf32>
    %cst_202 = arith.constant 1.000000e+00 : f32
    %675 = vector.broadcast %cst_202 : f32 to vector<8x32xf32>
    %676 = arith.addf %675, %674 : vector<8x32xf32>
    %677 = arith.divf %675, %676 : vector<8x32xf32>
    %678 = vector.extract_strided_slice %677 {offsets = [0, 0], sizes = [8, 16], strides = [1, 1]} : vector<8x32xf32> to vector<8x16xf32>
    %679 = vector.extract_strided_slice %677 {offsets = [0, 16], sizes = [8, 16], strides = [1, 1]} : vector<8x32xf32> to vector<8x16xf32>
    %680 = vector.extract_strided_slice %669 {offsets = [0, 32], sizes = [8, 16], strides = [1, 1]} : vector<8x48xf32> to vector<8x16xf32>
    %681 = vector.extract_strided_slice %667 {offsets = [0, 32], sizes = [8, 16], strides = [1, 1]} : vector<8x48xf32> to vector<8x16xf32>
    %682 = arith.addf %681, %487 : vector<8x16xf32>
    %683 = arith.mulf %678, %682 : vector<8x16xf32>
    %684 = arith.addf %680, %683 : vector<8x16xf32>
    %685 = math.tanh %684 : vector<8x16xf32>
    %cst_203 = arith.constant 1.000000e+00 : f32
    %686 = vector.broadcast %cst_203 : f32 to vector<8x16xf32>
    %687 = arith.subf %686, %679 : vector<8x16xf32>
    %688 = arith.mulf %687, %685 : vector<8x16xf32>
    %689 = arith.mulf %679, %662 : vector<8x16xf32>
    %690 = arith.addf %688, %689 : vector<8x16xf32>
    %691 = arith.index_cast %666 : i32 to index
    %c0_204 = arith.constant 0 : index
    %692 = vector.load %arg9[%691, %c0_204] : memref<64x16xf32, #tpu.memory_space<vmem>>, vector<8x16xf32>
    tpu.vector_store %arg9[%691, %c0_204], %690 {strides = array<i32>} : memref<64x16xf32, #tpu.memory_space<vmem>>, vector<8x16xf32>,
    %c7_i32_205 = arith.constant 7 : i32
    %c8_i32_206 = arith.constant 8 : i32
    %693 = arith.muli %c7_i32_205, %c8_i32_206 : i32
    %694 = tpu.assume_multiple %693, 8 : i32
    %cst_207 = arith.constant dense<0.000000e+00> : vector<8x48xf32>
    %695 = tpu.matmul %690, %483, %cst_207 {dimension_numbers = #tpu.dot_dimension_numbers<[1], [0], [0], [1], [0, 0, 1, 1], [], []>} : vector<8x16xf32>, vector<16x48xf32>, vector<8x48xf32> -> vector<8x48xf32>
    %696 = arith.index_cast %694 : i32 to index
    %c0_208 = arith.constant 0 : index
    %697 = vector.load %arg10[%696, %c0_208] : memref<64x48xf32, #tpu.memory_space<vmem>>, vector<8x48xf32>
    %698 = vector.extract_strided_slice %697 {offsets = [0, 0], sizes = [8, 32], strides = [1, 1]} : vector<8x48xf32> to vector<8x32xf32>
    %699 = vector.extract_strided_slice %695 {offsets = [0, 0], sizes = [8, 32], strides = [1, 1]} : vector<8x48xf32> to vector<8x32xf32>
    %700 = arith.addf %698, %699 : vector<8x32xf32>
    %701 = arith.negf %700 : vector<8x32xf32>
    %702 = math.exp %701 : vector<8x32xf32>
    %cst_209 = arith.constant 1.000000e+00 : f32
    %703 = vector.broadcast %cst_209 : f32 to vector<8x32xf32>
    %704 = arith.addf %703, %702 : vector<8x32xf32>
    %705 = arith.divf %703, %704 : vector<8x32xf32>
    %706 = vector.extract_strided_slice %705 {offsets = [0, 0], sizes = [8, 16], strides = [1, 1]} : vector<8x32xf32> to vector<8x16xf32>
    %707 = vector.extract_strided_slice %705 {offsets = [0, 16], sizes = [8, 16], strides = [1, 1]} : vector<8x32xf32> to vector<8x16xf32>
    %708 = vector.extract_strided_slice %697 {offsets = [0, 32], sizes = [8, 16], strides = [1, 1]} : vector<8x48xf32> to vector<8x16xf32>
    %709 = vector.extract_strided_slice %695 {offsets = [0, 32], sizes = [8, 16], strides = [1, 1]} : vector<8x48xf32> to vector<8x16xf32>
    %710 = arith.addf %709, %487 : vector<8x16xf32>
    %711 = arith.mulf %706, %710 : vector<8x16xf32>
    %712 = arith.addf %708, %711 : vector<8x16xf32>
    %713 = math.tanh %712 : vector<8x16xf32>
    %cst_210 = arith.constant 1.000000e+00 : f32
    %714 = vector.broadcast %cst_210 : f32 to vector<8x16xf32>
    %715 = arith.subf %714, %707 : vector<8x16xf32>
    %716 = arith.mulf %715, %713 : vector<8x16xf32>
    %717 = arith.mulf %707, %690 : vector<8x16xf32>
    %718 = arith.addf %716, %717 : vector<8x16xf32>
    %719 = arith.index_cast %694 : i32 to index
    %c0_211 = arith.constant 0 : index
    %720 = vector.load %arg9[%719, %c0_211] : memref<64x16xf32, #tpu.memory_space<vmem>>, vector<8x16xf32>
    tpu.vector_store %arg9[%719, %c0_211], %718 {strides = array<i32>} : memref<64x16xf32, #tpu.memory_space<vmem>>, vector<8x16xf32>,
    %c8_i32_212 = arith.constant 8 : i32
    %c0_213 = arith.constant 0 : index
    %c0_214 = arith.constant 0 : index
    %721 = vector.load %arg9[%c0_213, %c0_214] : memref<64x16xf32, #tpu.memory_space<vmem>>, vector<64x16xf32>
    %c3 = arith.constant 3 : index
    %c0_215 = arith.constant 0 : index
    %c0_216 = arith.constant 0 : index
    %722 = vector.load %arg3[%c3, %c0_215, %c0_216] : memref<4x16x48xf32, #tpu.memory_space<vmem>>, vector<1x16x48xf32>
    %723 = vector.shape_cast %722 : vector<1x16x48xf32> to vector<16x48xf32>
    %c3_217 = arith.constant 3 : index
    %c0_218 = arith.constant 0 : index
    %c0_219 = arith.constant 0 : index
    %724 = vector.load %arg5[%c3_217, %c0_218, %c0_219] : memref<4x1x16xf32, #tpu.memory_space<vmem>>, vector<1x1x16xf32>
    %725 = vector.shape_cast %724 : vector<1x1x16xf32> to vector<1x16xf32>
    %726 = vector.shape_cast %725 : vector<1x16xf32> to vector<1x16xf32>
    %727 = vector.broadcast %726 : vector<1x16xf32> to vector<8x16xf32>
    %c3_220 = arith.constant 3 : index
    %c0_221 = arith.constant 0 : index
    %c0_222 = arith.constant 0 : index
    %728 = vector.load %arg2[%c3_220, %c0_221, %c0_222] : memref<4x16x48xf32, #tpu.memory_space<vmem>>, vector<1x16x48xf32>
    %729 = vector.shape_cast %728 : vector<1x16x48xf32> to vector<16x48xf32>
    %cst_223 = arith.constant dense<0.000000e+00> : vector<64x48xf32>
    %730 = tpu.matmul %721, %729, %cst_223 {dimension_numbers = #tpu.dot_dimension_numbers<[1], [0], [0], [1], [0, 0, 1, 1], [], []>} : vector<64x16xf32>, vector<16x48xf32>, vector<64x48xf32> -> vector<64x48xf32>
    %c3_224 = arith.constant 3 : index
    %c0_225 = arith.constant 0 : index
    %c0_226 = arith.constant 0 : index
    %731 = vector.load %arg4[%c3_224, %c0_225, %c0_226] : memref<4x1x48xf32, #tpu.memory_space<vmem>>, vector<1x1x48xf32>
    %732 = vector.shape_cast %731 : vector<1x1x48xf32> to vector<1x48xf32>
    %733 = vector.broadcast %732 : vector<1x48xf32> to vector<64x48xf32>
    %734 = arith.addf %730, %733 : vector<64x48xf32>
    %c0_227 = arith.constant 0 : index
    %c0_228 = arith.constant 0 : index
    %735 = vector.load %arg10[%c0_227, %c0_228] : memref<64x48xf32, #tpu.memory_space<vmem>>, vector<64x48xf32>
    tpu.vector_store %arg10[%c0_227, %c0_228], %734 {strides = array<i32>} : memref<64x48xf32, #tpu.memory_space<vmem>>, vector<64x48xf32>,
    %cst_229 = arith.constant 0.000000e+00 : f32
    %736 = vector.broadcast %cst_229 : f32 to vector<8x16xf32>
    %c0_i32_230 = arith.constant 0 : i32
    %c8_i32_231 = arith.constant 8 : i32
    %737 = arith.muli %c0_i32_230, %c8_i32_231 : i32
    %738 = tpu.assume_multiple %737, 8 : i32
    %cst_232 = arith.constant dense<0.000000e+00> : vector<8x48xf32>
    %739 = tpu.matmul %736, %723, %cst_232 {dimension_numbers = #tpu.dot_dimension_numbers<[1], [0], [0], [1], [0, 0, 1, 1], [], []>} : vector<8x16xf32>, vector<16x48xf32>, vector<8x48xf32> -> vector<8x48xf32>
    %740 = arith.index_cast %738 : i32 to index
    %c0_233 = arith.constant 0 : index
    %741 = vector.load %arg10[%740, %c0_233] : memref<64x48xf32, #tpu.memory_space<vmem>>, vector<8x48xf32>
    %742 = vector.extract_strided_slice %741 {offsets = [0, 0], sizes = [8, 32], strides = [1, 1]} : vector<8x48xf32> to vector<8x32xf32>
    %743 = vector.extract_strided_slice %739 {offsets = [0, 0], sizes = [8, 32], strides = [1, 1]} : vector<8x48xf32> to vector<8x32xf32>
    %744 = arith.addf %742, %743 : vector<8x32xf32>
    %745 = arith.negf %744 : vector<8x32xf32>
    %746 = math.exp %745 : vector<8x32xf32>
    %cst_234 = arith.constant 1.000000e+00 : f32
    %747 = vector.broadcast %cst_234 : f32 to vector<8x32xf32>
    %748 = arith.addf %747, %746 : vector<8x32xf32>
    %749 = arith.divf %747, %748 : vector<8x32xf32>
    %750 = vector.extract_strided_slice %749 {offsets = [0, 0], sizes = [8, 16], strides = [1, 1]} : vector<8x32xf32> to vector<8x16xf32>
    %751 = vector.extract_strided_slice %749 {offsets = [0, 16], sizes = [8, 16], strides = [1, 1]} : vector<8x32xf32> to vector<8x16xf32>
    %752 = vector.extract_strided_slice %741 {offsets = [0, 32], sizes = [8, 16], strides = [1, 1]} : vector<8x48xf32> to vector<8x16xf32>
    %753 = vector.extract_strided_slice %739 {offsets = [0, 32], sizes = [8, 16], strides = [1, 1]} : vector<8x48xf32> to vector<8x16xf32>
    %754 = arith.addf %753, %727 : vector<8x16xf32>
    %755 = arith.mulf %750, %754 : vector<8x16xf32>
    %756 = arith.addf %752, %755 : vector<8x16xf32>
    %757 = math.tanh %756 : vector<8x16xf32>
    %cst_235 = arith.constant 1.000000e+00 : f32
    %758 = vector.broadcast %cst_235 : f32 to vector<8x16xf32>
    %759 = arith.subf %758, %751 : vector<8x16xf32>
    %760 = arith.mulf %759, %757 : vector<8x16xf32>
    %761 = arith.mulf %751, %736 : vector<8x16xf32>
    %762 = arith.addf %760, %761 : vector<8x16xf32>
    %763 = arith.index_cast %738 : i32 to index
    %c0_236 = arith.constant 0 : index
    %764 = vector.load %arg9[%763, %c0_236] : memref<64x16xf32, #tpu.memory_space<vmem>>, vector<8x16xf32>
    tpu.vector_store %arg9[%763, %c0_236], %762 {strides = array<i32>} : memref<64x16xf32, #tpu.memory_space<vmem>>, vector<8x16xf32>,
    %c1_i32_237 = arith.constant 1 : i32
    %c8_i32_238 = arith.constant 8 : i32
    %765 = arith.muli %c1_i32_237, %c8_i32_238 : i32
    %766 = tpu.assume_multiple %765, 8 : i32
    %cst_239 = arith.constant dense<0.000000e+00> : vector<8x48xf32>
    %767 = tpu.matmul %762, %723, %cst_239 {dimension_numbers = #tpu.dot_dimension_numbers<[1], [0], [0], [1], [0, 0, 1, 1], [], []>} : vector<8x16xf32>, vector<16x48xf32>, vector<8x48xf32> -> vector<8x48xf32>
    %768 = arith.index_cast %766 : i32 to index
    %c0_240 = arith.constant 0 : index
    %769 = vector.load %arg10[%768, %c0_240] : memref<64x48xf32, #tpu.memory_space<vmem>>, vector<8x48xf32>
    %770 = vector.extract_strided_slice %769 {offsets = [0, 0], sizes = [8, 32], strides = [1, 1]} : vector<8x48xf32> to vector<8x32xf32>
    %771 = vector.extract_strided_slice %767 {offsets = [0, 0], sizes = [8, 32], strides = [1, 1]} : vector<8x48xf32> to vector<8x32xf32>
    %772 = arith.addf %770, %771 : vector<8x32xf32>
    %773 = arith.negf %772 : vector<8x32xf32>
    %774 = math.exp %773 : vector<8x32xf32>
    %cst_241 = arith.constant 1.000000e+00 : f32
    %775 = vector.broadcast %cst_241 : f32 to vector<8x32xf32>
    %776 = arith.addf %775, %774 : vector<8x32xf32>
    %777 = arith.divf %775, %776 : vector<8x32xf32>
    %778 = vector.extract_strided_slice %777 {offsets = [0, 0], sizes = [8, 16], strides = [1, 1]} : vector<8x32xf32> to vector<8x16xf32>
    %779 = vector.extract_strided_slice %777 {offsets = [0, 16], sizes = [8, 16], strides = [1, 1]} : vector<8x32xf32> to vector<8x16xf32>
    %780 = vector.extract_strided_slice %769 {offsets = [0, 32], sizes = [8, 16], strides = [1, 1]} : vector<8x48xf32> to vector<8x16xf32>
    %781 = vector.extract_strided_slice %767 {offsets = [0, 32], sizes = [8, 16], strides = [1, 1]} : vector<8x48xf32> to vector<8x16xf32>
    %782 = arith.addf %781, %727 : vector<8x16xf32>
    %783 = arith.mulf %778, %782 : vector<8x16xf32>
    %784 = arith.addf %780, %783 : vector<8x16xf32>
    %785 = math.tanh %784 : vector<8x16xf32>
    %cst_242 = arith.constant 1.000000e+00 : f32
    %786 = vector.broadcast %cst_242 : f32 to vector<8x16xf32>
    %787 = arith.subf %786, %779 : vector<8x16xf32>
    %788 = arith.mulf %787, %785 : vector<8x16xf32>
    %789 = arith.mulf %779, %762 : vector<8x16xf32>
    %790 = arith.addf %788, %789 : vector<8x16xf32>
    %791 = arith.index_cast %766 : i32 to index
    %c0_243 = arith.constant 0 : index
    %792 = vector.load %arg9[%791, %c0_243] : memref<64x16xf32, #tpu.memory_space<vmem>>, vector<8x16xf32>
    tpu.vector_store %arg9[%791, %c0_243], %790 {strides = array<i32>} : memref<64x16xf32, #tpu.memory_space<vmem>>, vector<8x16xf32>,
    %c2_i32_244 = arith.constant 2 : i32
    %c8_i32_245 = arith.constant 8 : i32
    %793 = arith.muli %c2_i32_244, %c8_i32_245 : i32
    %794 = tpu.assume_multiple %793, 8 : i32
    %cst_246 = arith.constant dense<0.000000e+00> : vector<8x48xf32>
    %795 = tpu.matmul %790, %723, %cst_246 {dimension_numbers = #tpu.dot_dimension_numbers<[1], [0], [0], [1], [0, 0, 1, 1], [], []>} : vector<8x16xf32>, vector<16x48xf32>, vector<8x48xf32> -> vector<8x48xf32>
    %796 = arith.index_cast %794 : i32 to index
    %c0_247 = arith.constant 0 : index
    %797 = vector.load %arg10[%796, %c0_247] : memref<64x48xf32, #tpu.memory_space<vmem>>, vector<8x48xf32>
    %798 = vector.extract_strided_slice %797 {offsets = [0, 0], sizes = [8, 32], strides = [1, 1]} : vector<8x48xf32> to vector<8x32xf32>
    %799 = vector.extract_strided_slice %795 {offsets = [0, 0], sizes = [8, 32], strides = [1, 1]} : vector<8x48xf32> to vector<8x32xf32>
    %800 = arith.addf %798, %799 : vector<8x32xf32>
    %801 = arith.negf %800 : vector<8x32xf32>
    %802 = math.exp %801 : vector<8x32xf32>
    %cst_248 = arith.constant 1.000000e+00 : f32
    %803 = vector.broadcast %cst_248 : f32 to vector<8x32xf32>
    %804 = arith.addf %803, %802 : vector<8x32xf32>
    %805 = arith.divf %803, %804 : vector<8x32xf32>
    %806 = vector.extract_strided_slice %805 {offsets = [0, 0], sizes = [8, 16], strides = [1, 1]} : vector<8x32xf32> to vector<8x16xf32>
    %807 = vector.extract_strided_slice %805 {offsets = [0, 16], sizes = [8, 16], strides = [1, 1]} : vector<8x32xf32> to vector<8x16xf32>
    %808 = vector.extract_strided_slice %797 {offsets = [0, 32], sizes = [8, 16], strides = [1, 1]} : vector<8x48xf32> to vector<8x16xf32>
    %809 = vector.extract_strided_slice %795 {offsets = [0, 32], sizes = [8, 16], strides = [1, 1]} : vector<8x48xf32> to vector<8x16xf32>
    %810 = arith.addf %809, %727 : vector<8x16xf32>
    %811 = arith.mulf %806, %810 : vector<8x16xf32>
    %812 = arith.addf %808, %811 : vector<8x16xf32>
    %813 = math.tanh %812 : vector<8x16xf32>
    %cst_249 = arith.constant 1.000000e+00 : f32
    %814 = vector.broadcast %cst_249 : f32 to vector<8x16xf32>
    %815 = arith.subf %814, %807 : vector<8x16xf32>
    %816 = arith.mulf %815, %813 : vector<8x16xf32>
    %817 = arith.mulf %807, %790 : vector<8x16xf32>
    %818 = arith.addf %816, %817 : vector<8x16xf32>
    %819 = arith.index_cast %794 : i32 to index
    %c0_250 = arith.constant 0 : index
    %820 = vector.load %arg9[%819, %c0_250] : memref<64x16xf32, #tpu.memory_space<vmem>>, vector<8x16xf32>
    tpu.vector_store %arg9[%819, %c0_250], %818 {strides = array<i32>} : memref<64x16xf32, #tpu.memory_space<vmem>>, vector<8x16xf32>,
    %c3_i32_251 = arith.constant 3 : i32
    %c8_i32_252 = arith.constant 8 : i32
    %821 = arith.muli %c3_i32_251, %c8_i32_252 : i32
    %822 = tpu.assume_multiple %821, 8 : i32
    %cst_253 = arith.constant dense<0.000000e+00> : vector<8x48xf32>
    %823 = tpu.matmul %818, %723, %cst_253 {dimension_numbers = #tpu.dot_dimension_numbers<[1], [0], [0], [1], [0, 0, 1, 1], [], []>} : vector<8x16xf32>, vector<16x48xf32>, vector<8x48xf32> -> vector<8x48xf32>
    %824 = arith.index_cast %822 : i32 to index
    %c0_254 = arith.constant 0 : index
    %825 = vector.load %arg10[%824, %c0_254] : memref<64x48xf32, #tpu.memory_space<vmem>>, vector<8x48xf32>
    %826 = vector.extract_strided_slice %825 {offsets = [0, 0], sizes = [8, 32], strides = [1, 1]} : vector<8x48xf32> to vector<8x32xf32>
    %827 = vector.extract_strided_slice %823 {offsets = [0, 0], sizes = [8, 32], strides = [1, 1]} : vector<8x48xf32> to vector<8x32xf32>
    %828 = arith.addf %826, %827 : vector<8x32xf32>
    %829 = arith.negf %828 : vector<8x32xf32>
    %830 = math.exp %829 : vector<8x32xf32>
    %cst_255 = arith.constant 1.000000e+00 : f32
    %831 = vector.broadcast %cst_255 : f32 to vector<8x32xf32>
    %832 = arith.addf %831, %830 : vector<8x32xf32>
    %833 = arith.divf %831, %832 : vector<8x32xf32>
    %834 = vector.extract_strided_slice %833 {offsets = [0, 0], sizes = [8, 16], strides = [1, 1]} : vector<8x32xf32> to vector<8x16xf32>
    %835 = vector.extract_strided_slice %833 {offsets = [0, 16], sizes = [8, 16], strides = [1, 1]} : vector<8x32xf32> to vector<8x16xf32>
    %836 = vector.extract_strided_slice %825 {offsets = [0, 32], sizes = [8, 16], strides = [1, 1]} : vector<8x48xf32> to vector<8x16xf32>
    %837 = vector.extract_strided_slice %823 {offsets = [0, 32], sizes = [8, 16], strides = [1, 1]} : vector<8x48xf32> to vector<8x16xf32>
    %838 = arith.addf %837, %727 : vector<8x16xf32>
    %839 = arith.mulf %834, %838 : vector<8x16xf32>
    %840 = arith.addf %836, %839 : vector<8x16xf32>
    %841 = math.tanh %840 : vector<8x16xf32>
    %cst_256 = arith.constant 1.000000e+00 : f32
    %842 = vector.broadcast %cst_256 : f32 to vector<8x16xf32>
    %843 = arith.subf %842, %835 : vector<8x16xf32>
    %844 = arith.mulf %843, %841 : vector<8x16xf32>
    %845 = arith.mulf %835, %818 : vector<8x16xf32>
    %846 = arith.addf %844, %845 : vector<8x16xf32>
    %847 = arith.index_cast %822 : i32 to index
    %c0_257 = arith.constant 0 : index
    %848 = vector.load %arg9[%847, %c0_257] : memref<64x16xf32, #tpu.memory_space<vmem>>, vector<8x16xf32>
    tpu.vector_store %arg9[%847, %c0_257], %846 {strides = array<i32>} : memref<64x16xf32, #tpu.memory_space<vmem>>, vector<8x16xf32>,
    %c4_i32_258 = arith.constant 4 : i32
    %c8_i32_259 = arith.constant 8 : i32
    %849 = arith.muli %c4_i32_258, %c8_i32_259 : i32
    %850 = tpu.assume_multiple %849, 8 : i32
    %cst_260 = arith.constant dense<0.000000e+00> : vector<8x48xf32>
    %851 = tpu.matmul %846, %723, %cst_260 {dimension_numbers = #tpu.dot_dimension_numbers<[1], [0], [0], [1], [0, 0, 1, 1], [], []>} : vector<8x16xf32>, vector<16x48xf32>, vector<8x48xf32> -> vector<8x48xf32>
    %852 = arith.index_cast %850 : i32 to index
    %c0_261 = arith.constant 0 : index
    %853 = vector.load %arg10[%852, %c0_261] : memref<64x48xf32, #tpu.memory_space<vmem>>, vector<8x48xf32>
    %854 = vector.extract_strided_slice %853 {offsets = [0, 0], sizes = [8, 32], strides = [1, 1]} : vector<8x48xf32> to vector<8x32xf32>
    %855 = vector.extract_strided_slice %851 {offsets = [0, 0], sizes = [8, 32], strides = [1, 1]} : vector<8x48xf32> to vector<8x32xf32>
    %856 = arith.addf %854, %855 : vector<8x32xf32>
    %857 = arith.negf %856 : vector<8x32xf32>
    %858 = math.exp %857 : vector<8x32xf32>
    %cst_262 = arith.constant 1.000000e+00 : f32
    %859 = vector.broadcast %cst_262 : f32 to vector<8x32xf32>
    %860 = arith.addf %859, %858 : vector<8x32xf32>
    %861 = arith.divf %859, %860 : vector<8x32xf32>
    %862 = vector.extract_strided_slice %861 {offsets = [0, 0], sizes = [8, 16], strides = [1, 1]} : vector<8x32xf32> to vector<8x16xf32>
    %863 = vector.extract_strided_slice %861 {offsets = [0, 16], sizes = [8, 16], strides = [1, 1]} : vector<8x32xf32> to vector<8x16xf32>
    %864 = vector.extract_strided_slice %853 {offsets = [0, 32], sizes = [8, 16], strides = [1, 1]} : vector<8x48xf32> to vector<8x16xf32>
    %865 = vector.extract_strided_slice %851 {offsets = [0, 32], sizes = [8, 16], strides = [1, 1]} : vector<8x48xf32> to vector<8x16xf32>
    %866 = arith.addf %865, %727 : vector<8x16xf32>
    %867 = arith.mulf %862, %866 : vector<8x16xf32>
    %868 = arith.addf %864, %867 : vector<8x16xf32>
    %869 = math.tanh %868 : vector<8x16xf32>
    %cst_263 = arith.constant 1.000000e+00 : f32
    %870 = vector.broadcast %cst_263 : f32 to vector<8x16xf32>
    %871 = arith.subf %870, %863 : vector<8x16xf32>
    %872 = arith.mulf %871, %869 : vector<8x16xf32>
    %873 = arith.mulf %863, %846 : vector<8x16xf32>
    %874 = arith.addf %872, %873 : vector<8x16xf32>
    %875 = arith.index_cast %850 : i32 to index
    %c0_264 = arith.constant 0 : index
    %876 = vector.load %arg9[%875, %c0_264] : memref<64x16xf32, #tpu.memory_space<vmem>>, vector<8x16xf32>
    tpu.vector_store %arg9[%875, %c0_264], %874 {strides = array<i32>} : memref<64x16xf32, #tpu.memory_space<vmem>>, vector<8x16xf32>,
    %c5_i32_265 = arith.constant 5 : i32
    %c8_i32_266 = arith.constant 8 : i32
    %877 = arith.muli %c5_i32_265, %c8_i32_266 : i32
    %878 = tpu.assume_multiple %877, 8 : i32
    %cst_267 = arith.constant dense<0.000000e+00> : vector<8x48xf32>
    %879 = tpu.matmul %874, %723, %cst_267 {dimension_numbers = #tpu.dot_dimension_numbers<[1], [0], [0], [1], [0, 0, 1, 1], [], []>} : vector<8x16xf32>, vector<16x48xf32>, vector<8x48xf32> -> vector<8x48xf32>
    %880 = arith.index_cast %878 : i32 to index
    %c0_268 = arith.constant 0 : index
    %881 = vector.load %arg10[%880, %c0_268] : memref<64x48xf32, #tpu.memory_space<vmem>>, vector<8x48xf32>
    %882 = vector.extract_strided_slice %881 {offsets = [0, 0], sizes = [8, 32], strides = [1, 1]} : vector<8x48xf32> to vector<8x32xf32>
    %883 = vector.extract_strided_slice %879 {offsets = [0, 0], sizes = [8, 32], strides = [1, 1]} : vector<8x48xf32> to vector<8x32xf32>
    %884 = arith.addf %882, %883 : vector<8x32xf32>
    %885 = arith.negf %884 : vector<8x32xf32>
    %886 = math.exp %885 : vector<8x32xf32>
    %cst_269 = arith.constant 1.000000e+00 : f32
    %887 = vector.broadcast %cst_269 : f32 to vector<8x32xf32>
    %888 = arith.addf %887, %886 : vector<8x32xf32>
    %889 = arith.divf %887, %888 : vector<8x32xf32>
    %890 = vector.extract_strided_slice %889 {offsets = [0, 0], sizes = [8, 16], strides = [1, 1]} : vector<8x32xf32> to vector<8x16xf32>
    %891 = vector.extract_strided_slice %889 {offsets = [0, 16], sizes = [8, 16], strides = [1, 1]} : vector<8x32xf32> to vector<8x16xf32>
    %892 = vector.extract_strided_slice %881 {offsets = [0, 32], sizes = [8, 16], strides = [1, 1]} : vector<8x48xf32> to vector<8x16xf32>
    %893 = vector.extract_strided_slice %879 {offsets = [0, 32], sizes = [8, 16], strides = [1, 1]} : vector<8x48xf32> to vector<8x16xf32>
    %894 = arith.addf %893, %727 : vector<8x16xf32>
    %895 = arith.mulf %890, %894 : vector<8x16xf32>
    %896 = arith.addf %892, %895 : vector<8x16xf32>
    %897 = math.tanh %896 : vector<8x16xf32>
    %cst_270 = arith.constant 1.000000e+00 : f32
    %898 = vector.broadcast %cst_270 : f32 to vector<8x16xf32>
    %899 = arith.subf %898, %891 : vector<8x16xf32>
    %900 = arith.mulf %899, %897 : vector<8x16xf32>
    %901 = arith.mulf %891, %874 : vector<8x16xf32>
    %902 = arith.addf %900, %901 : vector<8x16xf32>
    %903 = arith.index_cast %878 : i32 to index
    %c0_271 = arith.constant 0 : index
    %904 = vector.load %arg9[%903, %c0_271] : memref<64x16xf32, #tpu.memory_space<vmem>>, vector<8x16xf32>
    tpu.vector_store %arg9[%903, %c0_271], %902 {strides = array<i32>} : memref<64x16xf32, #tpu.memory_space<vmem>>, vector<8x16xf32>,
    %c6_i32_272 = arith.constant 6 : i32
    %c8_i32_273 = arith.constant 8 : i32
    %905 = arith.muli %c6_i32_272, %c8_i32_273 : i32
    %906 = tpu.assume_multiple %905, 8 : i32
    %cst_274 = arith.constant dense<0.000000e+00> : vector<8x48xf32>
    %907 = tpu.matmul %902, %723, %cst_274 {dimension_numbers = #tpu.dot_dimension_numbers<[1], [0], [0], [1], [0, 0, 1, 1], [], []>} : vector<8x16xf32>, vector<16x48xf32>, vector<8x48xf32> -> vector<8x48xf32>
    %908 = arith.index_cast %906 : i32 to index
    %c0_275 = arith.constant 0 : index
    %909 = vector.load %arg10[%908, %c0_275] : memref<64x48xf32, #tpu.memory_space<vmem>>, vector<8x48xf32>
    %910 = vector.extract_strided_slice %909 {offsets = [0, 0], sizes = [8, 32], strides = [1, 1]} : vector<8x48xf32> to vector<8x32xf32>
    %911 = vector.extract_strided_slice %907 {offsets = [0, 0], sizes = [8, 32], strides = [1, 1]} : vector<8x48xf32> to vector<8x32xf32>
    %912 = arith.addf %910, %911 : vector<8x32xf32>
    %913 = arith.negf %912 : vector<8x32xf32>
    %914 = math.exp %913 : vector<8x32xf32>
    %cst_276 = arith.constant 1.000000e+00 : f32
    %915 = vector.broadcast %cst_276 : f32 to vector<8x32xf32>
    %916 = arith.addf %915, %914 : vector<8x32xf32>
    %917 = arith.divf %915, %916 : vector<8x32xf32>
    %918 = vector.extract_strided_slice %917 {offsets = [0, 0], sizes = [8, 16], strides = [1, 1]} : vector<8x32xf32> to vector<8x16xf32>
    %919 = vector.extract_strided_slice %917 {offsets = [0, 16], sizes = [8, 16], strides = [1, 1]} : vector<8x32xf32> to vector<8x16xf32>
    %920 = vector.extract_strided_slice %909 {offsets = [0, 32], sizes = [8, 16], strides = [1, 1]} : vector<8x48xf32> to vector<8x16xf32>
    %921 = vector.extract_strided_slice %907 {offsets = [0, 32], sizes = [8, 16], strides = [1, 1]} : vector<8x48xf32> to vector<8x16xf32>
    %922 = arith.addf %921, %727 : vector<8x16xf32>
    %923 = arith.mulf %918, %922 : vector<8x16xf32>
    %924 = arith.addf %920, %923 : vector<8x16xf32>
    %925 = math.tanh %924 : vector<8x16xf32>
    %cst_277 = arith.constant 1.000000e+00 : f32
    %926 = vector.broadcast %cst_277 : f32 to vector<8x16xf32>
    %927 = arith.subf %926, %919 : vector<8x16xf32>
    %928 = arith.mulf %927, %925 : vector<8x16xf32>
    %929 = arith.mulf %919, %902 : vector<8x16xf32>
    %930 = arith.addf %928, %929 : vector<8x16xf32>
    %931 = arith.index_cast %906 : i32 to index
    %c0_278 = arith.constant 0 : index
    %932 = vector.load %arg9[%931, %c0_278] : memref<64x16xf32, #tpu.memory_space<vmem>>, vector<8x16xf32>
    tpu.vector_store %arg9[%931, %c0_278], %930 {strides = array<i32>} : memref<64x16xf32, #tpu.memory_space<vmem>>, vector<8x16xf32>,
    %c7_i32_279 = arith.constant 7 : i32
    %c8_i32_280 = arith.constant 8 : i32
    %933 = arith.muli %c7_i32_279, %c8_i32_280 : i32
    %934 = tpu.assume_multiple %933, 8 : i32
    %cst_281 = arith.constant dense<0.000000e+00> : vector<8x48xf32>
    %935 = tpu.matmul %930, %723, %cst_281 {dimension_numbers = #tpu.dot_dimension_numbers<[1], [0], [0], [1], [0, 0, 1, 1], [], []>} : vector<8x16xf32>, vector<16x48xf32>, vector<8x48xf32> -> vector<8x48xf32>
    %936 = arith.index_cast %934 : i32 to index
    %c0_282 = arith.constant 0 : index
    %937 = vector.load %arg10[%936, %c0_282] : memref<64x48xf32, #tpu.memory_space<vmem>>, vector<8x48xf32>
    %938 = vector.extract_strided_slice %937 {offsets = [0, 0], sizes = [8, 32], strides = [1, 1]} : vector<8x48xf32> to vector<8x32xf32>
    %939 = vector.extract_strided_slice %935 {offsets = [0, 0], sizes = [8, 32], strides = [1, 1]} : vector<8x48xf32> to vector<8x32xf32>
    %940 = arith.addf %938, %939 : vector<8x32xf32>
    %941 = arith.negf %940 : vector<8x32xf32>
    %942 = math.exp %941 : vector<8x32xf32>
    %cst_283 = arith.constant 1.000000e+00 : f32
    %943 = vector.broadcast %cst_283 : f32 to vector<8x32xf32>
    %944 = arith.addf %943, %942 : vector<8x32xf32>
    %945 = arith.divf %943, %944 : vector<8x32xf32>
    %946 = vector.extract_strided_slice %945 {offsets = [0, 0], sizes = [8, 16], strides = [1, 1]} : vector<8x32xf32> to vector<8x16xf32>
    %947 = vector.extract_strided_slice %945 {offsets = [0, 16], sizes = [8, 16], strides = [1, 1]} : vector<8x32xf32> to vector<8x16xf32>
    %948 = vector.extract_strided_slice %937 {offsets = [0, 32], sizes = [8, 16], strides = [1, 1]} : vector<8x48xf32> to vector<8x16xf32>
    %949 = vector.extract_strided_slice %935 {offsets = [0, 32], sizes = [8, 16], strides = [1, 1]} : vector<8x48xf32> to vector<8x16xf32>
    %950 = arith.addf %949, %727 : vector<8x16xf32>
    %951 = arith.mulf %946, %950 : vector<8x16xf32>
    %952 = arith.addf %948, %951 : vector<8x16xf32>
    %953 = math.tanh %952 : vector<8x16xf32>
    %cst_284 = arith.constant 1.000000e+00 : f32
    %954 = vector.broadcast %cst_284 : f32 to vector<8x16xf32>
    %955 = arith.subf %954, %947 : vector<8x16xf32>
    %956 = arith.mulf %955, %953 : vector<8x16xf32>
    %957 = arith.mulf %947, %930 : vector<8x16xf32>
    %958 = arith.addf %956, %957 : vector<8x16xf32>
    %959 = arith.index_cast %934 : i32 to index
    %c0_285 = arith.constant 0 : index
    %960 = vector.load %arg9[%959, %c0_285] : memref<64x16xf32, #tpu.memory_space<vmem>>, vector<8x16xf32>
    tpu.vector_store %arg9[%959, %c0_285], %958 {strides = array<i32>} : memref<64x16xf32, #tpu.memory_space<vmem>>, vector<8x16xf32>,
    %c8_i32_286 = arith.constant 8 : i32
    %c0_287 = arith.constant 0 : index
    %c0_288 = arith.constant 0 : index
    %961 = vector.load %arg9[%c0_287, %c0_288] : memref<64x16xf32, #tpu.memory_space<vmem>>, vector<64x16xf32>
    %c0_289 = arith.constant 0 : index
    %c0_290 = arith.constant 0 : index
    %962 = vector.load %arg6[%c0_289, %c0_290] : memref<16x128xf32, #tpu.memory_space<vmem>>, vector<16x128xf32>
    %cst_291 = arith.constant dense<0.000000e+00> : vector<64x128xf32>
    %963 = tpu.matmul %961, %962, %cst_291 {dimension_numbers = #tpu.dot_dimension_numbers<[1], [0], [0], [1], [0, 0, 1, 1], [], []>} : vector<64x16xf32>, vector<16x128xf32>, vector<64x128xf32> -> vector<64x128xf32>
    %c0_292 = arith.constant 0 : index
    %c0_293 = arith.constant 0 : index
    %964 = vector.load %arg7[%c0_292, %c0_293] : memref<1x128xf32, #tpu.memory_space<vmem>>, vector<1x128xf32>
    %965 = vector.broadcast %964 : vector<1x128xf32> to vector<64x128xf32>
    %966 = arith.addf %963, %965 : vector<64x128xf32>
    %c0_294 = arith.constant 0 : index
    %c0_295 = arith.constant 0 : index
    %c0_296 = arith.constant 0 : index
    %967 = vector.load %arg8[%c0_294, %c0_295, %c0_296] : memref<1x64x128xf32, #tpu.memory_space<vmem>>, vector<1x64x128xf32>
    %968 = vector.shape_cast %967 : vector<1x64x128xf32> to vector<64x128xf32>
    %969 = vector.shape_cast %966 : vector<64x128xf32> to vector<1x64x128xf32>
    tpu.vector_store %arg8[%c0_294, %c0_295, %c0_296], %969 {strides = array<i32>} : memref<1x64x128xf32, #tpu.memory_space<vmem>>, vector<1x64x128xf32>,
    return
  }
  func.func @transform_0(%arg0: i32) -> (i32, i32, i32) {
    %c0_i32 = arith.constant 0 : i32
    %c0_i32_0 = arith.constant 0 : i32
    %c0_i32_1 = arith.constant 0 : i32
    return %arg0, %c0_i32, %c0_i32_0 : i32, i32, i32
  }
  func.func @transform_1(%arg0: i32) -> (i32, i32, i32) {
    %c0_i32 = arith.constant 0 : i32
    %c0_i32_0 = arith.constant 0 : i32
    %c0_i32_1 = arith.constant 0 : i32
    %c0_i32_2 = arith.constant 0 : i32
    return %c0_i32, %c0_i32_0, %c0_i32_1 : i32, i32, i32
  }
  func.func @transform_2(%arg0: i32) -> (i32, i32, i32) {
    %c0_i32 = arith.constant 0 : i32
    %c0_i32_0 = arith.constant 0 : i32
    %c0_i32_1 = arith.constant 0 : i32
    %c0_i32_2 = arith.constant 0 : i32
    return %c0_i32, %c0_i32_0, %c0_i32_1 : i32, i32, i32
  }
  func.func @transform_3(%arg0: i32) -> (i32, i32, i32) {
    %c0_i32 = arith.constant 0 : i32
    %c0_i32_0 = arith.constant 0 : i32
    %c0_i32_1 = arith.constant 0 : i32
    %c0_i32_2 = arith.constant 0 : i32
    return %c0_i32, %c0_i32_0, %c0_i32_1 : i32, i32, i32
  }
  func.func @transform_4(%arg0: i32) -> (i32, i32, i32) {
    %c0_i32 = arith.constant 0 : i32
    %c0_i32_0 = arith.constant 0 : i32
    %c0_i32_1 = arith.constant 0 : i32
    %c0_i32_2 = arith.constant 0 : i32
    return %c0_i32, %c0_i32_0, %c0_i32_1 : i32, i32, i32
  }
  func.func @transform_5(%arg0: i32) -> (i32, i32) {
    %c0_i32 = arith.constant 0 : i32
    %c0_i32_0 = arith.constant 0 : i32
    %c0_i32_1 = arith.constant 0 : i32
    return %c0_i32, %c0_i32_0 : i32, i32
  }
  func.func @transform_6(%arg0: i32) -> (i32, i32) {
    %c0_i32 = arith.constant 0 : i32
    %c0_i32_0 = arith.constant 0 : i32
    %c0_i32_1 = arith.constant 0 : i32
    return %c0_i32, %c0_i32_0 : i32, i32
  }
  func.func @transform_7(%arg0: i32) -> (i32, i32, i32) {
    %c0_i32 = arith.constant 0 : i32
    %c0_i32_0 = arith.constant 0 : i32
    %c0_i32_1 = arith.constant 0 : i32
    return %arg0, %c0_i32, %c0_i32_0 : i32, i32, i32
  }
}

</mosaic_0001>

<llo_original>
// kernel: gru_model_forward.1
$region0: #{gru_model_forward.1}
  #allocation0 [shape = 'u32[]', space=smem, size = 0x4, offset = 0x4, fixed_abs, tag = 'smem constant byte address 0x4 - core index']
  #allocation1 [shape = 'u32[144,128]{1,0:T(1,128)}', space=vmem, size = 0x12000, scoped, tag = 'internal scratch']
  #allocation2 [shape = 'f32[64,16]{1,0:T(8,128)}', space=vmem, size = 0x8000, scoped, tag = 'scratch operand']
  #allocation3 [shape = 'f32[64,48]{1,0:T(8,128)}', space=vmem, size = 0x8000, scoped, tag = 'scratch operand']
  %s0 = inlined_call_operand.vmem [shape: f32[1,64,16], index: 0, kind: input, shape index: {}]
  %s1 = inlined_call_operand.vmem [shape: f32[4,16,48], index: 1, kind: input, shape index: {}]
  %s2 = inlined_call_operand.vmem [shape: f32[4,16,48], index: 2, kind: input, shape index: {}]
  %s3 = inlined_call_operand.vmem [shape: f32[4,1,48], index: 3, kind: input, shape index: {}]
  %s4 = inlined_call_operand.vmem [shape: f32[4,1,16], index: 4, kind: input, shape index: {}]
  %s5 = inlined_call_operand.vmem [shape: f32[16,128], index: 5, kind: input, shape index: {}]
  %s6 = inlined_call_operand.vmem [shape: f32[1,128], index: 6, kind: input, shape index: {}]
  %s7 = inlined_call_operand.vmem [shape: f32[1,64,128], index: 7, kind: output, shape index: {}]
  %s8 = sld [smem:[#allocation0]]
  $region38: #{gru_model_forward.1} parent=0
    _
  %s10 = ssub.s32 1, %s8
  %s11 = scalar_select 0, %s10, %s8
  // Predicated region
  $region2: #{gru_model_forward.1} parent=0 // pred_check
    _
  $region3: #{gru_model_forward.1} parent=0 // pred_check_branch
    %13 = sbr.rel (0) target = $region5
  $region4: #{gru_model_forward.1} parent=0 // pred_region
    _
  $region5: #{gru_model_forward.1} parent=0 // pred_fallthru
    _
  // Predicated region
  $region6: #{gru_model_forward.1} parent=0 // pred_check
    _
  $region7: #{gru_model_forward.1} parent=0 // pred_check_branch
    %15 = sbr.rel (0) target = $region9
  $region8: #{gru_model_forward.1} parent=0 // pred_region
    _
  $region9: #{gru_model_forward.1} parent=0 // pred_fallthru
    _
  // Predicated region
  $region10: #{gru_model_forward.1} parent=0 // pred_check
    _
  $region11: #{gru_model_forward.1} parent=0 // pred_check_branch
    %17 = sbr.rel (0) target = $region13
  $region12: #{gru_model_forward.1} parent=0 // pred_region
    _
  $region13: #{gru_model_forward.1} parent=0 // pred_fallthru
    _
  // Predicated region
  $region14: #{gru_model_forward.1} parent=0 // pred_check
    _
  $region15: #{gru_model_forward.1} parent=0 // pred_check_branch
    %19 = sbr.rel (0) target = $region17
  $region16: #{gru_model_forward.1} parent=0 // pred_region
    _
  $region17: #{gru_model_forward.1} parent=0 // pred_fallthru
    _
  // Predicated region
  $region18: #{gru_model_forward.1} parent=0 // pred_check
    _
  $region19: #{gru_model_forward.1} parent=0 // pred_check_branch
    %21 = sbr.rel (0) target = $region21
  $region20: #{gru_model_forward.1} parent=0 // pred_region
    _
  $region21: #{gru_model_forward.1} parent=0 // pred_fallthru
    _
  // Predicated region
  $region22: #{gru_model_forward.1} parent=0 // pred_check
    _
  $region23: #{gru_model_forward.1} parent=0 // pred_check_branch
    %23 = sbr.rel (0) target = $region25
  $region24: #{gru_model_forward.1} parent=0 // pred_region
    _
  $region25: #{gru_model_forward.1} parent=0 // pred_fallthru
    _
  // Predicated region
  $region26: #{gru_model_forward.1} parent=0 // pred_check
    _
  $region27: #{gru_model_forward.1} parent=0 // pred_check_branch
    %25 = sbr.rel (0) target = $region29
  $region28: #{gru_model_forward.1} parent=0 // pred_region
    _
  $region29: #{gru_model_forward.1} parent=0 // pred_fallthru
    _
  %v26 = vld [vmem:[%s0] sm:$0xff]
  %v27 = vld [vmem:[%s0 + $0x8] sm:$0xff]
  %v28 = vld [vmem:[%s0 + $0x10] sm:$0xff]
  %v29 = vld [vmem:[%s0 + $0x18] sm:$0xff]
  %v30 = vld [vmem:[%s0 + $0x20] sm:$0xff]
  %v31 = vld [vmem:[%s0 + $0x28] sm:$0xff]
  %v32 = vld [vmem:[%s0 + $0x30] sm:$0xff]
  %v33 = vld [vmem:[%s0 + $0x38] sm:$0xff]
  %v34 = vld [vmem:[%s2] sm:$0xff]
  %v35 = vld [vmem:[%s2 + $0x8] sm:$0xff]
  %v36 = vld [vmem:[%s4] sm:$0x1]
  %v38 = vlaneseq
  %v39 = vshrl.u32 %v38, 7
  %v40 = vsub.s32 0, %v39
  %v41 = vrot.slane %v36, %v40
  %v42 = vld [vmem:[%s1] sm:$0xff]
  %v43 = vld [vmem:[%s1 + $0x8] sm:$0xff]
  %v44 = vld [vmem:[%s3] sm:$0x1]
  %v46 = vlaneseq
  %v47 = vshrl.u32 %v46, 7
  %v48 = vsub.s32 0, %v47
  %v49 = vrot.slane %v44, %v48
  %vm51 = vcmask 130048
  %v53 = vsel %vm51, %v26, 0
  %v56 = vsel %vm51, %v27, 0
  %v59 = vsel %vm51, %v28, 0
  %v62 = vsel %vm51, %v29, 0
  %v65 = vsel %vm51, %v30, 0
  %v68 = vsel %vm51, %v31, 0
  %v71 = vsel %vm51, %v32, 0
  %v74 = vsel %vm51, %v33, 0
  %76 = vmatprep.subr.mxu0 0.0
  %77 = vmatpush1.msra.mxu0 %v42
  %78 = vmatprep.subr.mxu0 0.0
  %79 = vmatpush1.msra.mxu0 %v43
  %80 = vmatprep.subr.mxu0 0.0
  %81 = vmatpush1.msra.mxu0 0.0
  %82 = vmatprep.subr.mxu0 0.0
  %83 = vmatpush1.msra.mxu0 0.0
  %84 = vmatprep.subr.mxu0 0.0
  %85 = vmatpush1.msra.mxu0 0.0
  %86 = vmatprep.subr.mxu0 0.0
  %87 = vmatpush1.msra.mxu0 0.0
  %88 = vmatprep.subr.mxu0 0.0
  %89 = vmatpush1.msra.mxu0 0.0
  %90 = vmatprep.subr.mxu0 0.0
  %91 = vmatpush1.msra.mxu0 0.0
  %92 = vmatprep.subr.mxu0 0.0
  %93 = vmatpush1.msra.mxu0 0.0
  %94 = vmatprep.subr.mxu0 0.0
  %95 = vmatpush1.msra.mxu0 0.0
  %96 = vmatprep.subr.mxu0 0.0
  %97 = vmatpush1.msra.mxu0 0.0
  %98 = vmatprep.subr.mxu0 0.0
  %99 = vmatpush1.msra.mxu0 0.0
  %100 = vmatprep.subr.mxu0 0.0
  %101 = vmatpush1.msra.mxu0 0.0
  %102 = vmatprep.subr.mxu0 0.0
  %103 = vmatpush1.msra.mxu0 0.0
  %104 = vmatprep.subr.mxu0 0.0
  %105 = vmatpush1.msra.mxu0 0.0
  %106 = vmatprep.subr.mxu0 0.0
  %107 = vmatpush1.msra.mxu0 0.0
  %108 = vmatprep.subr.mxu0 0.0
  %109 = vmatpush1.msra.mxu0 0.0
  %110 = vmatprep.subr.mxu0 0.0
  %111 = vmatpush1.msra.mxu0 0.0
  %112 = vmatprep.subr.mxu0 0.0
  %113 = vmatpush1.msra.mxu0 0.0
  %114 = vmatprep.subr.mxu0 0.0
  %115 = vmatpush1.msra.mxu0 0.0
  %116 = vmatprep.subr.mxu0 0.0
  %117 = vmatpush1.msra.mxu0 0.0
  %118 = vmatprep.subr.mxu0 0.0
  %119 = vmatpush1.msra.mxu0 0.0
  %120 = vmatprep.subr.mxu0 0.0
  %121 = vmatpush1.msra.mxu0 0.0
  %122 = vmatprep.subr.mxu0 0.0
  %123 = vmatpush1.msra.mxu0 0.0
  %124 = vmatprep.subr.mxu0 0.0
  %125 = vmatpush1.msra.mxu0 0.0
  %126 = vmatprep.subr.mxu0 0.0
  %127 = vmatpush1.msra.mxu0 0.0
  %128 = vmatprep.subr.mxu0 0.0
  %129 = vmatpush1.msra.mxu0 0.0
  %130 = vmatprep.subr.mxu0 0.0
  %131 = vmatpush1.msra.mxu0 0.0
  %132 = vmatprep.subr.mxu0 0.0
  %133 = vmatpush1.msra.mxu0 0.0
  %134 = vmatprep.subr.mxu0 0.0
  %135 = vmatpush1.msra.mxu0 0.0
  %136 = vmatprep.subr.mxu0 0.0
  %137 = vmatpush1.msra.mxu0 0.0
  %138 = vmatprep.subr.mxu0 0.0
  %139 = vmatpush1.msra.mxu0 0.0
  %140 = vmatprep.mubr.f32.mxu0 0.0
  %141 = vmatmul.mubr.f32.gmra.mrb[0].mxu0 %v53
  %v142 = vpop.f32.mrb[0].mxu0
  %v143 = vadd.f32 %v49, %v142
  %v144 = vpop.f32.mrb[0].mxu0
  %145 = vmatprep.mubr.f32.mxu0 0.0
  %146 = vmatmul.mubr.f32.gmra.mrb[0].mxu0 %v56
  %v147 = vpop.f32.mrb[0].mxu0
  %v148 = vadd.f32 %v49, %v147
  %v149 = vpop.f32.mrb[0].mxu0
  %150 = vmatprep.mubr.f32.mxu0 0.0
  %151 = vmatmul.mubr.f32.gmra.mrb[0].mxu0 %v59
  %v152 = vpop.f32.mrb[0].mxu0
  %v153 = vadd.f32 %v49, %v152
  %v154 = vpop.f32.mrb[0].mxu0
  %155 = vmatprep.mubr.f32.mxu0 0.0
  %156 = vmatmul.mubr.f32.gmra.mrb[0].mxu0 %v62
  %v157 = vpop.f32.mrb[0].mxu0
  %v158 = vadd.f32 %v49, %v157
  %v159 = vpop.f32.mrb[0].mxu0
  %160 = vmatprep.mubr.f32.mxu0 0.0
  %161 = vmatmul.mubr.f32.gmra.mrb[0].mxu0 %v65
  %v162 = vpop.f32.mrb[0].mxu0
  %v163 = vadd.f32 %v49, %v162
  %v164 = vpop.f32.mrb[0].mxu0
  %165 = vmatprep.mubr.f32.mxu0 0.0
  %166 = vmatmul.mubr.f32.gmra.mrb[0].mxu0 %v68
  %v167 = vpop.f32.mrb[0].mxu0
  %v168 = vadd.f32 %v49, %v167
  %v169 = vpop.f32.mrb[0].mxu0
  %170 = vmatprep.mubr.f32.mxu0 0.0
  %171 = vmatmul.mubr.f32.gmra.mrb[0].mxu0 %v71
  %v172 = vpop.f32.mrb[0].mxu0
  %v173 = vadd.f32 %v49, %v172
  %v174 = vpop.f32.mrb[0].mxu0
  %175 = vmatprep.mubr.f32.mxu0 0.0
  %176 = vmatmul.mubr.f32.gmra.mrb[0].mxu0 %v74
  %v177 = vpop.f32.mrb[0].mxu0
  %v178 = vadd.f32 %v49, %v177
  %v179 = vpop.f32.mrb[0].mxu0
  %180 = vdwg.mxu0
  %vm181 = vcmask 392192
  %182 = vst.msk [vmem:[#allocation3] sm:$0xff] %vm181, %v143
  %183 = vst.msk [vmem:[#allocation3 + $0x8] sm:$0xff] %vm181, %v148
  %184 = vst.msk [vmem:[#allocation3 + $0x10] sm:$0xff] %vm181, %v153
  %185 = vst.msk [vmem:[#allocation3 + $0x18] sm:$0xff] %vm181, %v158
  %186 = vst.msk [vmem:[#allocation3 + $0x20] sm:$0xff] %vm181, %v163
  %187 = vst.msk [vmem:[#allocation3 + $0x28] sm:$0xff] %vm181, %v168
  %188 = vst.msk [vmem:[#allocation3 + $0x30] sm:$0xff] %vm181, %v173
  %189 = vst.msk [vmem:[#allocation3 + $0x38] sm:$0xff] %vm181, %v178
  %v191 = vsel %vm51, 0.0, 0
  %193 = vmatprep.subr.mxu0 0.0
  %194 = vmatpush1.msra.mxu0 %v34
  %195 = vmatprep.subr.mxu0 0.0
  %196 = vmatpush1.msra.mxu0 %v35
  %197 = vmatprep.subr.mxu0 0.0
  %198 = vmatpush1.msra.mxu0 0.0
  %199 = vmatprep.subr.mxu0 0.0
  %200 = vmatpush1.msra.mxu0 0.0
  %201 = vmatprep.subr.mxu0 0.0
  %202 = vmatpush1.msra.mxu0 0.0
  %203 = vmatprep.subr.mxu0 0.0
  %204 = vmatpush1.msra.mxu0 0.0
  %205 = vmatprep.subr.mxu0 0.0
  %206 = vmatpush1.msra.mxu0 0.0
  %207 = vmatprep.subr.mxu0 0.0
  %208 = vmatpush1.msra.mxu0 0.0
  %209 = vmatprep.subr.mxu0 0.0
  %210 = vmatpush1.msra.mxu0 0.0
  %211 = vmatprep.subr.mxu0 0.0
  %212 = vmatpush1.msra.mxu0 0.0
  %213 = vmatprep.subr.mxu0 0.0
  %214 = vmatpush1.msra.mxu0 0.0
  %215 = vmatprep.subr.mxu0 0.0
  %216 = vmatpush1.msra.mxu0 0.0
  %217 = vmatprep.subr.mxu0 0.0
  %218 = vmatpush1.msra.mxu0 0.0
  %219 = vmatprep.subr.mxu0 0.0
  %220 = vmatpush1.msra.mxu0 0.0
  %221 = vmatprep.subr.mxu0 0.0
  %222 = vmatpush1.msra.mxu0 0.0
  %223 = vmatprep.subr.mxu0 0.0
  %224 = vmatpush1.msra.mxu0 0.0
  %225 = vmatprep.subr.mxu0 0.0
  %226 = vmatpush1.msra.mxu0 0.0
  %227 = vmatprep.subr.mxu0 0.0
  %228 = vmatpush1.msra.mxu0 0.0
  %229 = vmatprep.subr.mxu0 0.0
  %230 = vmatpush1.msra.mxu0 0.0
  %231 = vmatprep.subr.mxu0 0.0
  %232 = vmatpush1.msra.mxu0 0.0
  %233 = vmatprep.subr.mxu0 0.0
  %234 = vmatpush1.msra.mxu0 0.0
  %235 = vmatprep.subr.mxu0 0.0
  %236 = vmatpush1.msra.mxu0 0.0
  %237 = vmatprep.subr.mxu0 0.0
  %238 = vmatpush1.msra.mxu0 0.0
  %239 = vmatprep.subr.mxu0 0.0
  %240 = vmatpush1.msra.mxu0 0.0
  %241 = vmatprep.subr.mxu0 0.0
  %242 = vmatpush1.msra.mxu0 0.0
  %243 = vmatprep.subr.mxu0 0.0
  %244 = vmatpush1.msra.mxu0 0.0
  %245 = vmatprep.subr.mxu0 0.0
  %246 = vmatpush1.msra.mxu0 0.0
  %247 = vmatprep.subr.mxu0 0.0
  %248 = vmatpush1.msra.mxu0 0.0
  %249 = vmatprep.subr.mxu0 0.0
  %250 = vmatpush1.msra.mxu0 0.0
  %251 = vmatprep.subr.mxu0 0.0
  %252 = vmatpush1.msra.mxu0 0.0
  %253 = vmatprep.subr.mxu0 0.0
  %254 = vmatpush1.msra.mxu0 0.0
  %255 = vmatprep.subr.mxu0 0.0
  %256 = vmatpush1.msra.mxu0 0.0
  %257 = vmatprep.mubr.f32.mxu0 0.0
  %258 = vmatmul.mubr.f32.gmra.mrb[0].mxu0 %v191
  %v259 = vpop.f32.mrb[0].mxu0
  %v260 = vadd.f32 0.0, %v259
  %v261 = vpop.f32.mrb[0].mxu0
  %262 = vdwg.mxu0
  %v263 = vld [vmem:[#allocation3] sm:$0xff]
  %v264 = vadd.f32 %v263, %v260
  %v265 = vxor.u32 %v264, 2147483648
  %v266 = vmul.f32 %v265, 1.442695
  %v267 = vpow.pop %v266
  %v268 = vadd.f32 %v267, 1.0
  %v269 = vrcp.pop %v268
  %v270 = vmul.f32 1.0, %v269
  %271 = vrot.lane.b32.xlu0 %v41, 32
  %v272 = vpop.permute.xlu0 %271
  %v274 = vadd.f32 %v260, %v272
  %276 = vrot.lane.b32.xlu0 %v274, 96
  %v277 = vpop.permute.xlu0 %276
  %v279 = vmul.f32 %v270, %v277
  %281 = vrot.lane.b32.xlu0 %v279, 32
  %v282 = vpop.permute.xlu0 %281
  %v284 = vadd.f32 %v263, %v282
  %v285 = vtanh.pop %v284
  %v286 = vsub.f32 1.0, %v270
  %288 = vrot.lane.b32.xlu0 %v285, 112
  %v289 = vpop.permute.xlu0 %288
  %v291 = vmul.f32 %v286, %v289
  %v292 = vmul.f32 %v270, 0.0
  %v293 = vadd.f32 %v291, %v292
  %295 = vrot.lane.b32.xlu0 %v293, 112
  %v296 = vpop.permute.xlu0 %295
  %298 = vst.msk [vmem:[#allocation2] sm:$0xff] %vm51, %v296
  %v299 = vsel %vm51, %v296, 0
  %301 = vmatprep.subr.mxu0 0.0
  %302 = vmatpush1.msra.mxu0 %v34
  %303 = vmatprep.subr.mxu0 0.0
  %304 = vmatpush1.msra.mxu0 %v35
  %305 = vmatprep.subr.mxu0 0.0
  %306 = vmatpush1.msra.mxu0 0.0
  %307 = vmatprep.subr.mxu0 0.0
  %308 = vmatpush1.msra.mxu0 0.0
  %309 = vmatprep.subr.mxu0 0.0
  %310 = vmatpush1.msra.mxu0 0.0
  %311 = vmatprep.subr.mxu0 0.0
  %312 = vmatpush1.msra.mxu0 0.0
  %313 = vmatprep.subr.mxu0 0.0
  %314 = vmatpush1.msra.mxu0 0.0
  %315 = vmatprep.subr.mxu0 0.0
  %316 = vmatpush1.msra.mxu0 0.0
  %317 = vmatprep.subr.mxu0 0.0
  %318 = vmatpush1.msra.mxu0 0.0
  %319 = vmatprep.subr.mxu0 0.0
  %320 = vmatpush1.msra.mxu0 0.0
  %321 = vmatprep.subr.mxu0 0.0
  %322 = vmatpush1.msra.mxu0 0.0
  %323 = vmatprep.subr.mxu0 0.0
  %324 = vmatpush1.msra.mxu0 0.0
  %325 = vmatprep.subr.mxu0 0.0
  %326 = vmatpush1.msra.mxu0 0.0
  %327 = vmatprep.subr.mxu0 0.0
  %328 = vmatpush1.msra.mxu0 0.0
  %329 = vmatprep.subr.mxu0 0.0
  %330 = vmatpush1.msra.mxu0 0.0
  %331 = vmatprep.subr.mxu0 0.0
  %332 = vmatpush1.msra.mxu0 0.0
  %333 = vmatprep.subr.mxu0 0.0
  %334 = vmatpush1.msra.mxu0 0.0
  %335 = vmatprep.subr.mxu0 0.0
  %336 = vmatpush1.msra.mxu0 0.0
  %337 = vmatprep.subr.mxu0 0.0
  %338 = vmatpush1.msra.mxu0 0.0
  %339 = vmatprep.subr.mxu0 0.0
  %340 = vmatpush1.msra.mxu0 0.0
  %341 = vmatprep.subr.mxu0 0.0
  %342 = vmatpush1.msra.mxu0 0.0
  %343 = vmatprep.subr.mxu0 0.0
  %344 = vmatpush1.msra.mxu0 0.0
  %345 = vmatprep.subr.mxu0 0.0
  %346 = vmatpush1.msra.mxu0 0.0
  %347 = vmatprep.subr.mxu0 0.0
  %348 = vmatpush1.msra.mxu0 0.0
  %349 = vmatprep.subr.mxu0 0.0
  %350 = vmatpush1.msra.mxu0 0.0
  %351 = vmatprep.subr.mxu0 0.0
  %352 = vmatpush1.msra.mxu0 0.0
  %353 = vmatprep.subr.mxu0 0.0
  %354 = vmatpush1.msra.mxu0 0.0
  %355 = vmatprep.subr.mxu0 0.0
  %356 = vmatpush1.msra.mxu0 0.0
  %357 = vmatprep.subr.mxu0 0.0
  %358 = vmatpush1.msra.mxu0 0.0
  %359 = vmatprep.subr.mxu0 0.0
  %360 = vmatpush1.msra.mxu0 0.0
  %361 = vmatprep.subr.mxu0 0.0
  %362 = vmatpush1.msra.mxu0 0.0
  %363 = vmatprep.subr.mxu0 0.0
  %364 = vmatpush1.msra.mxu0 0.0
  %365 = vmatprep.mubr.f32.mxu0 0.0
  %366 = vmatmul.mubr.f32.gmra.mrb[0].mxu0 %v299
  %v367 = vpop.f32.mrb[0].mxu0
  %v368 = vadd.f32 0.0, %v367
  %v369 = vpop.f32.mrb[0].mxu0
  %370 = vdwg.mxu0
  %s371 = scalar_lea.vmem [#allocation3], 8
  %v372 = vld [vmem:[%s371] sm:$0xff]
  %v373 = vadd.f32 %v372, %v368
  %v374 = vxor.u32 %v373, 2147483648
  %v375 = vmul.f32 %v374, 1.442695
  %v376 = vpow.pop %v375
  %v377 = vadd.f32 %v376, 1.0
  %v378 = vrcp.pop %v377
  %v379 = vmul.f32 1.0, %v378
  %v380 = vadd.f32 %v368, %v272
  %382 = vrot.lane.b32.xlu0 %v380, 96
  %v383 = vpop.permute.xlu0 %382
  %v385 = vmul.f32 %v379, %v383
  %387 = vrot.lane.b32.xlu0 %v385, 32
  %v388 = vpop.permute.xlu0 %387
  %v390 = vadd.f32 %v372, %v388
  %v391 = vtanh.pop %v390
  %v392 = vsub.f32 1.0, %v379
  %394 = vrot.lane.b32.xlu0 %v391, 112
  %v395 = vpop.permute.xlu0 %394
  %v397 = vmul.f32 %v392, %v395
  %v398 = vmul.f32 %v379, %v293
  %v399 = vadd.f32 %v397, %v398
  %401 = vrot.lane.b32.xlu0 %v399, 112
  %v402 = vpop.permute.xlu0 %401
  %s404 = scalar_lea.vmem [#allocation2], 8
  %405 = vst.msk [vmem:[%s404] sm:$0xff] %vm51, %v402
  %v406 = vsel %vm51, %v402, 0
  %408 = vmatprep.subr.mxu0 0.0
  %409 = vmatpush1.msra.mxu0 %v34
  %410 = vmatprep.subr.mxu0 0.0
  %411 = vmatpush1.msra.mxu0 %v35
  %412 = vmatprep.subr.mxu0 0.0
  %413 = vmatpush1.msra.mxu0 0.0
  %414 = vmatprep.subr.mxu0 0.0
  %415 = vmatpush1.msra.mxu0 0.0
  %416 = vmatprep.subr.mxu0 0.0
  %417 = vmatpush1.msra.mxu0 0.0
  %418 = vmatprep.subr.mxu0 0.0
  %419 = vmatpush1.msra.mxu0 0.0
  %420 = vmatprep.subr.mxu0 0.0
  %421 = vmatpush1.msra.mxu0 0.0
  %422 = vmatprep.subr.mxu0 0.0
  %423 = vmatpush1.msra.mxu0 0.0
  %424 = vmatprep.subr.mxu0 0.0
  %425 = vmatpush1.msra.mxu0 0.0
  %426 = vmatprep.subr.mxu0 0.0
  %427 = vmatpush1.msra.mxu0 0.0
  %428 = vmatprep.subr.mxu0 0.0
  %429 = vmatpush1.msra.mxu0 0.0
  %430 = vmatprep.subr.mxu0 0.0
  %431 = vmatpush1.msra.mxu0 0.0
  %432 = vmatprep.subr.mxu0 0.0
  %433 = vmatpush1.msra.mxu0 0.0
  %434 = vmatprep.subr.mxu0 0.0
  %435 = vmatpush1.msra.mxu0 0.0
  %436 = vmatprep.subr.mxu0 0.0
  %437 = vmatpush1.msra.mxu0 0.0
  %438 = vmatprep.subr.mxu0 0.0
  %439 = vmatpush1.msra.mxu0 0.0
  %440 = vmatprep.subr.mxu0 0.0
  %441 = vmatpush1.msra.mxu0 0.0
  %442 = vmatprep.subr.mxu0 0.0
  %443 = vmatpush1.msra.mxu0 0.0
  %444 = vmatprep.subr.mxu0 0.0
  %445 = vmatpush1.msra.mxu0 0.0
  %446 = vmatprep.subr.mxu0 0.0
  %447 = vmatpush1.msra.mxu0 0.0
  %448 = vmatprep.subr.mxu0 0.0
  %449 = vmatpush1.msra.mxu0 0.0
  %450 = vmatprep.subr.mxu0 0.0
  %451 = vmatpush1.msra.mxu0 0.0
  %452 = vmatprep.subr.mxu0 0.0
  %453 = vmatpush1.msra.mxu0 0.0
  %454 = vmatprep.subr.mxu0 0.0
  %455 = vmatpush1.msra.mxu0 0.0
  %456 = vmatprep.subr.mxu0 0.0
  %457 = vmatpush1.msra.mxu0 0.0
  %458 = vmatprep.subr.mxu0 0.0
  %459 = vmatpush1.msra.mxu0 0.0
  %460 = vmatprep.subr.mxu0 0.0
  %461 = vmatpush1.msra.mxu0 0.0
  %462 = vmatprep.subr.mxu0 0.0
  %463 = vmatpush1.msra.mxu0 0.0
  %464 = vmatprep.subr.mxu0 0.0
  %465 = vmatpush1.msra.mxu0 0.0
  %466 = vmatprep.subr.mxu0 0.0
  %467 = vmatpush1.msra.mxu0 0.0
  %468 = vmatprep.subr.mxu0 0.0
  %469 = vmatpush1.msra.mxu0 0.0
  %470 = vmatprep.subr.mxu0 0.0
  %471 = vmatpush1.msra.mxu0 0.0
  %472 = vmatprep.mubr.f32.mxu0 0.0
  %473 = vmatmul.mubr.f32.gmra.mrb[0].mxu0 %v406
  %v474 = vpop.f32.mrb[0].mxu0
  %v475 = vadd.f32 0.0, %v474
  %v476 = vpop.f32.mrb[0].mxu0
  %477 = vdwg.mxu0
  %s478 = scalar_lea.vmem [#allocation3], 16
  %v479 = vld [vmem:[%s478] sm:$0xff]
  %v480 = vadd.f32 %v479, %v475
  %v481 = vxor.u32 %v480, 2147483648
  %v482 = vmul.f32 %v481, 1.442695
  %v483 = vpow.pop %v482
  %v484 = vadd.f32 %v483, 1.0
  %v485 = vrcp.pop %v484
  %v486 = vmul.f32 1.0, %v485
  %v487 = vadd.f32 %v475, %v272
  %489 = vrot.lane.b32.xlu0 %v487, 96
  %v490 = vpop.permute.xlu0 %489
  %v492 = vmul.f32 %v486, %v490
  %494 = vrot.lane.b32.xlu0 %v492, 32
  %v495 = vpop.permute.xlu0 %494
  %v497 = vadd.f32 %v479, %v495
  %v498 = vtanh.pop %v497
  %v499 = vsub.f32 1.0, %v486
  %501 = vrot.lane.b32.xlu0 %v498, 112
  %v502 = vpop.permute.xlu0 %501
  %v504 = vmul.f32 %v499, %v502
  %v505 = vmul.f32 %v486, %v399
  %v506 = vadd.f32 %v504, %v505
  %508 = vrot.lane.b32.xlu0 %v506, 112
  %v509 = vpop.permute.xlu0 %508
  %s511 = scalar_lea.vmem [#allocation2], 16
  %512 = vst.msk [vmem:[%s511] sm:$0xff] %vm51, %v509
  %v513 = vsel %vm51, %v509, 0
  %515 = vmatprep.subr.mxu0 0.0
  %516 = vmatpush1.msra.mxu0 %v34
  %517 = vmatprep.subr.mxu0 0.0
  %518 = vmatpush1.msra.mxu0 %v35
  %519 = vmatprep.subr.mxu0 0.0
  %520 = vmatpush1.msra.mxu0 0.0
  %521 = vmatprep.subr.mxu0 0.0
  %522 = vmatpush1.msra.mxu0 0.0
  %523 = vmatprep.subr.mxu0 0.0
  %524 = vmatpush1.msra.mxu0 0.0
  %525 = vmatprep.subr.mxu0 0.0
  %526 = vmatpush1.msra.mxu0 0.0
  %527 = vmatprep.subr.mxu0 0.0
  %528 = vmatpush1.msra.mxu0 0.0
  %529 = vmatprep.subr.mxu0 0.0
  %530 = vmatpush1.msra.mxu0 0.0
  %531 = vmatprep.subr.mxu0 0.0
  %532 = vmatpush1.msra.mxu0 0.0
  %533 = vmatprep.subr.mxu0 0.0
  %534 = vmatpush1.msra.mxu0 0.0
  %535 = vmatprep.subr.mxu0 0.0
  %536 = vmatpush1.msra.mxu0 0.0
  %537 = vmatprep.subr.mxu0 0.0
  %538 = vmatpush1.msra.mxu0 0.0
  %539 = vmatprep.subr.mxu0 0.0
  %540 = vmatpush1.msra.mxu0 0.0
  %541 = vmatprep.subr.mxu0 0.0
  %542 = vmatpush1.msra.mxu0 0.0
  %543 = vmatprep.subr.mxu0 0.0
  %544 = vmatpush1.msra.mxu0 0.0
  %545 = vmatprep.subr.mxu0 0.0
  %546 = vmatpush1.msra.mxu0 0.0
  %547 = vmatprep.subr.mxu0 0.0
  %548 = vmatpush1.msra.mxu0 0.0
  %549 = vmatprep.subr.mxu0 0.0
  %550 = vmatpush1.msra.mxu0 0.0
  %551 = vmatprep.subr.mxu0 0.0
  %552 = vmatpush1.msra.mxu0 0.0
  %553 = vmatprep.subr.mxu0 0.0
  %554 = vmatpush1.msra.mxu0 0.0
  %555 = vmatprep.subr.mxu0 0.0
  %556 = vmatpush1.msra.mxu0 0.0
  %557 = vmatprep.subr.mxu0 0.0
  %558 = vmatpush1.msra.mxu0 0.0
  %559 = vmatprep.subr.mxu0 0.0
  %560 = vmatpush1.msra.mxu0 0.0
  %561 = vmatprep.subr.mxu0 0.0
  %562 = vmatpush1.msra.mxu0 0.0
  %563 = vmatprep.subr.mxu0 0.0
  %564 = vmatpush1.msra.mxu0 0.0
  %565 = vmatprep.subr.mxu0 0.0
  %566 = vmatpush1.msra.mxu0 0.0
  %567 = vmatprep.subr.mxu0 0.0
  %568 = vmatpush1.msra.mxu0 0.0
  %569 = vmatprep.subr.mxu0 0.0
  %570 = vmatpush1.msra.mxu0 0.0
  %571 = vmatprep.subr.mxu0 0.0
  %572 = vmatpush1.msra.mxu0 0.0
  %573 = vmatprep.subr.mxu0 0.0
  %574 = vmatpush1.msra.mxu0 0.0
  %575 = vmatprep.subr.mxu0 0.0
  %576 = vmatpush1.msra.mxu0 0.0
  %577 = vmatprep.subr.mxu0 0.0
  %578 = vmatpush1.msra.mxu0 0.0
  %579 = vmatprep.mubr.f32.mxu0 0.0
  %580 = vmatmul.mubr.f32.gmra.mrb[0].mxu0 %v513
  %v581 = vpop.f32.mrb[0].mxu0
  %v582 = vadd.f32 0.0, %v581
  %v583 = vpop.f32.mrb[0].mxu0
  %584 = vdwg.mxu0
  %s585 = scalar_lea.vmem [#allocation3], 24
  %v586 = vld [vmem:[%s585] sm:$0xff]
  %v587 = vadd.f32 %v586, %v582
  %v588 = vxor.u32 %v587, 2147483648
  %v589 = vmul.f32 %v588, 1.442695
  %v590 = vpow.pop %v589
  %v591 = vadd.f32 %v590, 1.0
  %v592 = vrcp.pop %v591
  %v593 = vmul.f32 1.0, %v592
  %v594 = vadd.f32 %v582, %v272
  %596 = vrot.lane.b32.xlu0 %v594, 96
  %v597 = vpop.permute.xlu0 %596
  %v599 = vmul.f32 %v593, %v597
  %601 = vrot.lane.b32.xlu0 %v599, 32
  %v602 = vpop.permute.xlu0 %601
  %v604 = vadd.f32 %v586, %v602
  %v605 = vtanh.pop %v604
  %v606 = vsub.f32 1.0, %v593
  %608 = vrot.lane.b32.xlu0 %v605, 112
  %v609 = vpop.permute.xlu0 %608
  %v611 = vmul.f32 %v606, %v609
  %v612 = vmul.f32 %v593, %v506
  %v613 = vadd.f32 %v611, %v612
  %615 = vrot.lane.b32.xlu0 %v613, 112
  %v616 = vpop.permute.xlu0 %615
  %s618 = scalar_lea.vmem [#allocation2], 24
  %619 = vst.msk [vmem:[%s618] sm:$0xff] %vm51, %v616
  %v620 = vsel %vm51, %v616, 0
  %622 = vmatprep.subr.mxu0 0.0
  %623 = vmatpush1.msra.mxu0 %v34
  %624 = vmatprep.subr.mxu0 0.0
  %625 = vmatpush1.msra.mxu0 %v35
  %626 = vmatprep.subr.mxu0 0.0
  %627 = vmatpush1.msra.mxu0 0.0
  %628 = vmatprep.subr.mxu0 0.0
  %629 = vmatpush1.msra.mxu0 0.0
  %630 = vmatprep.subr.mxu0 0.0
  %631 = vmatpush1.msra.mxu0 0.0
  %632 = vmatprep.subr.mxu0 0.0
  %633 = vmatpush1.msra.mxu0 0.0
  %634 = vmatprep.subr.mxu0 0.0
  %635 = vmatpush1.msra.mxu0 0.0
  %636 = vmatprep.subr.mxu0 0.0
  %637 = vmatpush1.msra.mxu0 0.0
  %638 = vmatprep.subr.mxu0 0.0
  %639 = vmatpush1.msra.mxu0 0.0
  %640 = vmatprep.subr.mxu0 0.0
  %641 = vmatpush1.msra.mxu0 0.0
  %642 = vmatprep.subr.mxu0 0.0
  %643 = vmatpush1.msra.mxu0 0.0
  %644 = vmatprep.subr.mxu0 0.0
  %645 = vmatpush1.msra.mxu0 0.0
  %646 = vmatprep.subr.mxu0 0.0
  %647 = vmatpush1.msra.mxu0 0.0
  %648 = vmatprep.subr.mxu0 0.0
  %649 = vmatpush1.msra.mxu0 0.0
  %650 = vmatprep.subr.mxu0 0.0
  %651 = vmatpush1.msra.mxu0 0.0
  %652 = vmatprep.subr.mxu0 0.0
  %653 = vmatpush1.msra.mxu0 0.0
  %654 = vmatprep.subr.mxu0 0.0
  %655 = vmatpush1.msra.mxu0 0.0
  %656 = vmatprep.subr.mxu0 0.0
  %657 = vmatpush1.msra.mxu0 0.0
  %658 = vmatprep.subr.mxu0 0.0
  %659 = vmatpush1.msra.mxu0 0.0
  %660 = vmatprep.subr.mxu0 0.0
  %661 = vmatpush1.msra.mxu0 0.0
  %662 = vmatprep.subr.mxu0 0.0
  %663 = vmatpush1.msra.mxu0 0.0
  %664 = vmatprep.subr.mxu0 0.0
  %665 = vmatpush1.msra.mxu0 0.0
  %666 = vmatprep.subr.mxu0 0.0
  %667 = vmatpush1.msra.mxu0 0.0
  %668 = vmatprep.subr.mxu0 0.0
  %669 = vmatpush1.msra.mxu0 0.0
  %670 = vmatprep.subr.mxu0 0.0
  %671 = vmatpush1.msra.mxu0 0.0
  %672 = vmatprep.subr.mxu0 0.0
  %673 = vmatpush1.msra.mxu0 0.0
  %674 = vmatprep.subr.mxu0 0.0
  %675 = vmatpush1.msra.mxu0 0.0
  %676 = vmatprep.subr.mxu0 0.0
  %677 = vmatpush1.msra.mxu0 0.0
  %678 = vmatprep.subr.mxu0 0.0
  %679 = vmatpush1.msra.mxu0 0.0
  %680 = vmatprep.subr.mxu0 0.0
  %681 = vmatpush1.msra.mxu0 0.0
  %682 = vmatprep.subr.mxu0 0.0
  %683 = vmatpush1.msra.mxu0 0.0
  %684 = vmatprep.subr.mxu0 0.0
  %685 = vmatpush1.msra.mxu0 0.0
  %686 = vmatprep.mubr.f32.mxu0 0.0
  %687 = vmatmul.mubr.f32.gmra.mrb[0].mxu0 %v620
  %v688 = vpop.f32.mrb[0].mxu0
  %v689 = vadd.f32 0.0, %v688
  %v690 = vpop.f32.mrb[0].mxu0
  %691 = vdwg.mxu0
  %s692 = scalar_lea.vmem [#allocation3], 32
  %v693 = vld [vmem:[%s692] sm:$0xff]
  %v694 = vadd.f32 %v693, %v689
  %v695 = vxor.u32 %v694, 2147483648
  %v696 = vmul.f32 %v695, 1.442695
  %v697 = vpow.pop %v696
  %v698 = vadd.f32 %v697, 1.0
  %v699 = vrcp.pop %v698
  %v700 = vmul.f32 1.0, %v699
  %v701 = vadd.f32 %v689, %v272
  %703 = vrot.lane.b32.xlu0 %v701, 96
  %v704 = vpop.permute.xlu0 %703
  %v706 = vmul.f32 %v700, %v704
  %708 = vrot.lane.b32.xlu0 %v706, 32
  %v709 = vpop.permute.xlu0 %708
  %v711 = vadd.f32 %v693, %v709
  %v712 = vtanh.pop %v711
  %v713 = vsub.f32 1.0, %v700
  %715 = vrot.lane.b32.xlu0 %v712, 112
  %v716 = vpop.permute.xlu0 %715
  %v718 = vmul.f32 %v713, %v716
  %v719 = vmul.f32 %v700, %v613
  %v720 = vadd.f32 %v718, %v719
  %722 = vrot.lane.b32.xlu0 %v720, 112
  %v723 = vpop.permute.xlu0 %722
  %s725 = scalar_lea.vmem [#allocation2], 32
  %726 = vst.msk [vmem:[%s725] sm:$0xff] %vm51, %v723
  %v727 = vsel %vm51, %v723, 0
  %729 = vmatprep.subr.mxu0 0.0
  %730 = vmatpush1.msra.mxu0 %v34
  %731 = vmatprep.subr.mxu0 0.0
  %732 = vmatpush1.msra.mxu0 %v35
  %733 = vmatprep.subr.mxu0 0.0
  %734 = vmatpush1.msra.mxu0 0.0
  %735 = vmatprep.subr.mxu0 0.0
  %736 = vmatpush1.msra.mxu0 0.0
  %737 = vmatprep.subr.mxu0 0.0
  %738 = vmatpush1.msra.mxu0 0.0
  %739 = vmatprep.subr.mxu0 0.0
  %740 = vmatpush1.msra.mxu0 0.0
  %741 = vmatprep.subr.mxu0 0.0
  %742 = vmatpush1.msra.mxu0 0.0
  %743 = vmatprep.subr.mxu0 0.0
  %744 = vmatpush1.msra.mxu0 0.0
  %745 = vmatprep.subr.mxu0 0.0
  %746 = vmatpush1.msra.mxu0 0.0
  %747 = vmatprep.subr.mxu0 0.0
  %748 = vmatpush1.msra.mxu0 0.0
  %749 = vmatprep.subr.mxu0 0.0
  %750 = vmatpush1.msra.mxu0 0.0
  %751 = vmatprep.subr.mxu0 0.0
  %752 = vmatpush1.msra.mxu0 0.0
  %753 = vmatprep.subr.mxu0 0.0
  %754 = vmatpush1.msra.mxu0 0.0
  %755 = vmatprep.subr.mxu0 0.0
  %756 = vmatpush1.msra.mxu0 0.0
  %757 = vmatprep.subr.mxu0 0.0
  %758 = vmatpush1.msra.mxu0 0.0
  %759 = vmatprep.subr.mxu0 0.0
  %760 = vmatpush1.msra.mxu0 0.0
  %761 = vmatprep.subr.mxu0 0.0
  %762 = vmatpush1.msra.mxu0 0.0
  %763 = vmatprep.subr.mxu0 0.0
  %764 = vmatpush1.msra.mxu0 0.0
  %765 = vmatprep.subr.mxu0 0.0
  %766 = vmatpush1.msra.mxu0 0.0
  %767 = vmatprep.subr.mxu0 0.0
  %768 = vmatpush1.msra.mxu0 0.0
  %769 = vmatprep.subr.mxu0 0.0
  %770 = vmatpush1.msra.mxu0 0.0
  %771 = vmatprep.subr.mxu0 0.0
  %772 = vmatpush1.msra.mxu0 0.0
  %773 = vmatprep.subr.mxu0 0.0
  %774 = vmatpush1.msra.mxu0 0.0
  %775 = vmatprep.subr.mxu0 0.0
  %776 = vmatpush1.msra.mxu0 0.0
  %777 = vmatprep.subr.mxu0 0.0
  %778 = vmatpush1.msra.mxu0 0.0
  %779 = vmatprep.subr.mxu0 0.0
  %780 = vmatpush1.msra.mxu0 0.0
  %781 = vmatprep.subr.mxu0 0.0
  %782 = vmatpush1.msra.mxu0 0.0
  %783 = vmatprep.subr.mxu0 0.0
  %784 = vmatpush1.msra.mxu0 0.0
  %785 = vmatprep.subr.mxu0 0.0
  %786 = vmatpush1.msra.mxu0 0.0
  %787 = vmatprep.subr.mxu0 0.0
  %788 = vmatpush1.msra.mxu0 0.0
  %789 = vmatprep.subr.mxu0 0.0
  %790 = vmatpush1.msra.mxu0 0.0
  %791 = vmatprep.subr.mxu0 0.0
  %792 = vmatpush1.msra.mxu0 0.0
  %793 = vmatprep.mubr.f32.mxu0 0.0
  %794 = vmatmul.mubr.f32.gmra.mrb[0].mxu0 %v727
  %v795 = vpop.f32.mrb[0].mxu0
  %v796 = vadd.f32 0.0, %v795
  %v797 = vpop.f32.mrb[0].mxu0
  %798 = vdwg.mxu0
  %s799 = scalar_lea.vmem [#allocation3], 40
  %v800 = vld [vmem:[%s799] sm:$0xff]
  %v801 = vadd.f32 %v800, %v796
  %v802 = vxor.u32 %v801, 2147483648
  %v803 = vmul.f32 %v802, 1.442695
  %v804 = vpow.pop %v803
  %v805 = vadd.f32 %v804, 1.0
  %v806 = vrcp.pop %v805
  %v807 = vmul.f32 1.0, %v806
  %v808 = vadd.f32 %v796, %v272
  %810 = vrot.lane.b32.xlu0 %v808, 96
  %v811 = vpop.permute.xlu0 %810
  %v813 = vmul.f32 %v807, %v811
  %815 = vrot.lane.b32.xlu0 %v813, 32
  %v816 = vpop.permute.xlu0 %815
  %v818 = vadd.f32 %v800, %v816
  %v819 = vtanh.pop %v818
  %v820 = vsub.f32 1.0, %v807
  %822 = vrot.lane.b32.xlu0 %v819, 112
  %v823 = vpop.permute.xlu0 %822
  %v825 = vmul.f32 %v820, %v823
  %v826 = vmul.f32 %v807, %v720
  %v827 = vadd.f32 %v825, %v826
  %829 = vrot.lane.b32.xlu0 %v827, 112
  %v830 = vpop.permute.xlu0 %829
  %s832 = scalar_lea.vmem [#allocation2], 40
  %833 = vst.msk [vmem:[%s832] sm:$0xff] %vm51, %v830
  %v834 = vsel %vm51, %v830, 0
  %836 = vmatprep.subr.mxu0 0.0
  %837 = vmatpush1.msra.mxu0 %v34
  %838 = vmatprep.subr.mxu0 0.0
  %839 = vmatpush1.msra.mxu0 %v35
  %840 = vmatprep.subr.mxu0 0.0
  %841 = vmatpush1.msra.mxu0 0.0
  %842 = vmatprep.subr.mxu0 0.0
  %843 = vmatpush1.msra.mxu0 0.0
  %844 = vmatprep.subr.mxu0 0.0
  %845 = vmatpush1.msra.mxu0 0.0
  %846 = vmatprep.subr.mxu0 0.0
  %847 = vmatpush1.msra.mxu0 0.0
  %848 = vmatprep.subr.mxu0 0.0
  %849 = vmatpush1.msra.mxu0 0.0
  %850 = vmatprep.subr.mxu0 0.0
  %851 = vmatpush1.msra.mxu0 0.0
  %852 = vmatprep.subr.mxu0 0.0
  %853 = vmatpush1.msra.mxu0 0.0
  %854 = vmatprep.subr.mxu0 0.0
  %855 = vmatpush1.msra.mxu0 0.0
  %856 = vmatprep.subr.mxu0 0.0
  %857 = vmatpush1.msra.mxu0 0.0
  %858 = vmatprep.subr.mxu0 0.0
  %859 = vmatpush1.msra.mxu0 0.0
  %860 = vmatprep.subr.mxu0 0.0
  %861 = vmatpush1.msra.mxu0 0.0
  %862 = vmatprep.subr.mxu0 0.0
  %863 = vmatpush1.msra.mxu0 0.0
  %864 = vmatprep.subr.mxu0 0.0
  %865 = vmatpush1.msra.mxu0 0.0
  %866 = vmatprep.subr.mxu0 0.0
  %867 = vmatpush1.msra.mxu0 0.0
  %868 = vmatprep.subr.mxu0 0.0
  %869 = vmatpush1.msra.mxu0 0.0
  %870 = vmatprep.subr.mxu0 0.0
  %871 = vmatpush1.msra.mxu0 0.0
  %872 = vmatprep.subr.mxu0 0.0
  %873 = vmatpush1.msra.mxu0 0.0
  %874 = vmatprep.subr.mxu0 0.0
  %875 = vmatpush1.msra.mxu0 0.0
  %876 = vmatprep.subr.mxu0 0.0
  %877 = vmatpush1.msra.mxu0 0.0
  %878 = vmatprep.subr.mxu0 0.0
  %879 = vmatpush1.msra.mxu0 0.0
  %880 = vmatprep.subr.mxu0 0.0
  %881 = vmatpush1.msra.mxu0 0.0
  %882 = vmatprep.subr.mxu0 0.0
  %883 = vmatpush1.msra.mxu0 0.0
  %884 = vmatprep.subr.mxu0 0.0
  %885 = vmatpush1.msra.mxu0 0.0
  %886 = vmatprep.subr.mxu0 0.0
  %887 = vmatpush1.msra.mxu0 0.0
  %888 = vmatprep.subr.mxu0 0.0
  %889 = vmatpush1.msra.mxu0 0.0
  %890 = vmatprep.subr.mxu0 0.0
  %891 = vmatpush1.msra.mxu0 0.0
  %892 = vmatprep.subr.mxu0 0.0
  %893 = vmatpush1.msra.mxu0 0.0
  %894 = vmatprep.subr.mxu0 0.0
  %895 = vmatpush1.msra.mxu0 0.0
  %896 = vmatprep.subr.mxu0 0.0
  %897 = vmatpush1.msra.mxu0 0.0
  %898 = vmatprep.subr.mxu0 0.0
  %899 = vmatpush1.msra.mxu0 0.0
  %900 = vmatprep.mubr.f32.mxu0 0.0
  %901 = vmatmul.mubr.f32.gmra.mrb[0].mxu0 %v834
  %v902 = vpop.f32.mrb[0].mxu0
  %v903 = vadd.f32 0.0, %v902
  %v904 = vpop.f32.mrb[0].mxu0
  %905 = vdwg.mxu0
  %s906 = scalar_lea.vmem [#allocation3], 48
  %v907 = vld [vmem:[%s906] sm:$0xff]
  %v908 = vadd.f32 %v907, %v903
  %v909 = vxor.u32 %v908, 2147483648
  %v910 = vmul.f32 %v909, 1.442695
  %v911 = vpow.pop %v910
  %v912 = vadd.f32 %v911, 1.0
  %v913 = vrcp.pop %v912
  %v914 = vmul.f32 1.0, %v913
  %v915 = vadd.f32 %v903, %v272
  %917 = vrot.lane.b32.xlu0 %v915, 96
  %v918 = vpop.permute.xlu0 %917
  %v920 = vmul.f32 %v914, %v918
  %922 = vrot.lane.b32.xlu0 %v920, 32
  %v923 = vpop.permute.xlu0 %922
  %v925 = vadd.f32 %v907, %v923
  %v926 = vtanh.pop %v925
  %v927 = vsub.f32 1.0, %v914
  %929 = vrot.lane.b32.xlu0 %v926, 112
  %v930 = vpop.permute.xlu0 %929
  %v932 = vmul.f32 %v927, %v930
  %v933 = vmul.f32 %v914, %v827
  %v934 = vadd.f32 %v932, %v933
  %936 = vrot.lane.b32.xlu0 %v934, 112
  %v937 = vpop.permute.xlu0 %936
  %s939 = scalar_lea.vmem [#allocation2], 48
  %940 = vst.msk [vmem:[%s939] sm:$0xff] %vm51, %v937
  %v941 = vsel %vm51, %v937, 0
  %943 = vmatprep.subr.mxu0 0.0
  %944 = vmatpush1.msra.mxu0 %v34
  %945 = vmatprep.subr.mxu0 0.0
  %946 = vmatpush1.msra.mxu0 %v35
  %947 = vmatprep.subr.mxu0 0.0
  %948 = vmatpush1.msra.mxu0 0.0
  %949 = vmatprep.subr.mxu0 0.0
  %950 = vmatpush1.msra.mxu0 0.0
  %951 = vmatprep.subr.mxu0 0.0
  %952 = vmatpush1.msra.mxu0 0.0
  %953 = vmatprep.subr.mxu0 0.0
  %954 = vmatpush1.msra.mxu0 0.0
  %955 = vmatprep.subr.mxu0 0.0
  %956 = vmatpush1.msra.mxu0 0.0
  %957 = vmatprep.subr.mxu0 0.0
  %958 = vmatpush1.msra.mxu0 0.0
  %959 = vmatprep.subr.mxu0 0.0
  %960 = vmatpush1.msra.mxu0 0.0
  %961 = vmatprep.subr.mxu0 0.0
  %962 = vmatpush1.msra.mxu0 0.0
  %963 = vmatprep.subr.mxu0 0.0
  %964 = vmatpush1.msra.mxu0 0.0
  %965 = vmatprep.subr.mxu0 0.0
  %966 = vmatpush1.msra.mxu0 0.0
  %967 = vmatprep.subr.mxu0 0.0
  %968 = vmatpush1.msra.mxu0 0.0
  %969 = vmatprep.subr.mxu0 0.0
  %970 = vmatpush1.msra.mxu0 0.0
  %971 = vmatprep.subr.mxu0 0.0
  %972 = vmatpush1.msra.mxu0 0.0
  %973 = vmatprep.subr.mxu0 0.0
  %974 = vmatpush1.msra.mxu0 0.0
  %975 = vmatprep.subr.mxu0 0.0
  %976 = vmatpush1.msra.mxu0 0.0
  %977 = vmatprep.subr.mxu0 0.0
  %978 = vmatpush1.msra.mxu0 0.0
  %979 = vmatprep.subr.mxu0 0.0
  %980 = vmatpush1.msra.mxu0 0.0
  %981 = vmatprep.subr.mxu0 0.0
  %982 = vmatpush1.msra.mxu0 0.0
  %983 = vmatprep.subr.mxu0 0.0
  %984 = vmatpush1.msra.mxu0 0.0
  %985 = vmatprep.subr.mxu0 0.0
  %986 = vmatpush1.msra.mxu0 0.0
  %987 = vmatprep.subr.mxu0 0.0
  %988 = vmatpush1.msra.mxu0 0.0
  %989 = vmatprep.subr.mxu0 0.0
  %990 = vmatpush1.msra.mxu0 0.0
  %991 = vmatprep.subr.mxu0 0.0
  %992 = vmatpush1.msra.mxu0 0.0
  %993 = vmatprep.subr.mxu0 0.0
  %994 = vmatpush1.msra.mxu0 0.0
  %995 = vmatprep.subr.mxu0 0.0
  %996 = vmatpush1.msra.mxu0 0.0
  %997 = vmatprep.subr.mxu0 0.0
  %998 = vmatpush1.msra.mxu0 0.0
  %999 = vmatprep.subr.mxu0 0.0
  %1000 = vmatpush1.msra.mxu0 0.0
  %1001 = vmatprep.subr.mxu0 0.0
  %1002 = vmatpush1.msra.mxu0 0.0
  %1003 = vmatprep.subr.mxu0 0.0
  %1004 = vmatpush1.msra.mxu0 0.0
  %1005 = vmatprep.subr.mxu0 0.0
  %1006 = vmatpush1.msra.mxu0 0.0
  %1007 = vmatprep.mubr.f32.mxu0 0.0
  %1008 = vmatmul.mubr.f32.gmra.mrb[0].mxu0 %v941
  %v1009 = vpop.f32.mrb[0].mxu0
  %v1010 = vadd.f32 0.0, %v1009
  %v1011 = vpop.f32.mrb[0].mxu0
  %1012 = vdwg.mxu0
  %s1013 = scalar_lea.vmem [#allocation3], 56
  %v1014 = vld [vmem:[%s1013] sm:$0xff]
  %v1015 = vadd.f32 %v1014, %v1010
  %v1016 = vxor.u32 %v1015, 2147483648
  %v1017 = vmul.f32 %v1016, 1.442695
  %v1018 = vpow.pop %v1017
  %v1019 = vadd.f32 %v1018, 1.0
  %v1020 = vrcp.pop %v1019
  %v1021 = vmul.f32 1.0, %v1020
  %v1022 = vadd.f32 %v1010, %v272
  %1024 = vrot.lane.b32.xlu0 %v1022, 96
  %v1025 = vpop.permute.xlu0 %1024
  %v1027 = vmul.f32 %v1021, %v1025
  %1029 = vrot.lane.b32.xlu0 %v1027, 32
  %v1030 = vpop.permute.xlu0 %1029
  %v1032 = vadd.f32 %v1014, %v1030
  %v1033 = vtanh.pop %v1032
  %v1034 = vsub.f32 1.0, %v1021
  %1036 = vrot.lane.b32.xlu0 %v1033, 112
  %v1037 = vpop.permute.xlu0 %1036
  %v1039 = vmul.f32 %v1034, %v1037
  %v1040 = vmul.f32 %v1021, %v934
  %v1041 = vadd.f32 %v1039, %v1040
  %1043 = vrot.lane.b32.xlu0 %v1041, 112
  %v1044 = vpop.permute.xlu0 %1043
  %s1046 = scalar_lea.vmem [#allocation2], 56
  %1047 = vst.msk [vmem:[%s1046] sm:$0xff] %vm51, %v1044
  %v1048 = vld [vmem:[#allocation2] sm:$0xff]
  %v1049 = vld [vmem:[#allocation2 + $0x8] sm:$0xff]
  %v1050 = vld [vmem:[#allocation2 + $0x10] sm:$0xff]
  %v1051 = vld [vmem:[#allocation2 + $0x18] sm:$0xff]
  %v1052 = vld [vmem:[#allocation2 + $0x20] sm:$0xff]
  %v1053 = vld [vmem:[#allocation2 + $0x28] sm:$0xff]
  %v1054 = vld [vmem:[#allocation2 + $0x30] sm:$0xff]
  %v1055 = vld [vmem:[#allocation2 + $0x38] sm:$0xff]
  %s1056 = scalar_lea.vmem %s2, 16
  %v1057 = vld [vmem:[%s1056] sm:$0xff]
  %v1058 = vld [vmem:[%s1056 + $0x8] sm:$0xff]
  %s1059 = scalar_lea.vmem %s4, 1
  %v1060 = vld [vmem:[%s1059] sm:$0x1]
  %v1062 = vlaneseq
  %v1063 = vshrl.u32 %v1062, 7
  %v1064 = vsub.s32 0, %v1063
  %v1065 = vrot.slane %v1060, %v1064
  %s1066 = scalar_lea.vmem %s1, 16
  %v1067 = vld [vmem:[%s1066] sm:$0xff]
  %v1068 = vld [vmem:[%s1066 + $0x8] sm:$0xff]
  %s1069 = scalar_lea.vmem %s3, 1
  %v1070 = vld [vmem:[%s1069] sm:$0x1]
  %v1072 = vlaneseq
  %v1073 = vshrl.u32 %v1072, 7
  %v1074 = vsub.s32 0, %v1073
  %v1075 = vrot.slane %v1070, %v1074
  %v1078 = vsel %vm51, %v1048, 0
  %v1081 = vsel %vm51, %v1049, 0
  %v1084 = vsel %vm51, %v1050, 0
  %v1087 = vsel %vm51, %v1051, 0
  %v1090 = vsel %vm51, %v1052, 0
  %v1093 = vsel %vm51, %v1053, 0
  %v1096 = vsel %vm51, %v1054, 0
  %v1099 = vsel %vm51, %v1055, 0
  %1101 = vmatprep.subr.mxu0 0.0
  %1102 = vmatpush1.msra.mxu0 %v1067
  %1103 = vmatprep.subr.mxu0 0.0
  %1104 = vmatpush1.msra.mxu0 %v1068
  %1105 = vmatprep.subr.mxu0 0.0
  %1106 = vmatpush1.msra.mxu0 0.0
  %1107 = vmatprep.subr.mxu0 0.0
  %1108 = vmatpush1.msra.mxu0 0.0
  %1109 = vmatprep.subr.mxu0 0.0
  %1110 = vmatpush1.msra.mxu0 0.0
  %1111 = vmatprep.subr.mxu0 0.0
  %1112 = vmatpush1.msra.mxu0 0.0
  %1113 = vmatprep.subr.mxu0 0.0
  %1114 = vmatpush1.msra.mxu0 0.0
  %1115 = vmatprep.subr.mxu0 0.0
  %1116 = vmatpush1.msra.mxu0 0.0
  %1117 = vmatprep.subr.mxu0 0.0
  %1118 = vmatpush1.msra.mxu0 0.0
  %1119 = vmatprep.subr.mxu0 0.0
  %1120 = vmatpush1.msra.mxu0 0.0
  %1121 = vmatprep.subr.mxu0 0.0
  %1122 = vmatpush1.msra.mxu0 0.0
  %1123 = vmatprep.subr.mxu0 0.0
  %1124 = vmatpush1.msra.mxu0 0.0
  %1125 = vmatprep.subr.mxu0 0.0
  %1126 = vmatpush1.msra.mxu0 0.0
  %1127 = vmatprep.subr.mxu0 0.0
  %1128 = vmatpush1.msra.mxu0 0.0
  %1129 = vmatprep.subr.mxu0 0.0
  %1130 = vmatpush1.msra.mxu0 0.0
  %1131 = vmatprep.subr.mxu0 0.0
  %1132 = vmatpush1.msra.mxu0 0.0
  %1133 = vmatprep.subr.mxu0 0.0
  %1134 = vmatpush1.msra.mxu0 0.0
  %1135 = vmatprep.subr.mxu0 0.0
  %1136 = vmatpush1.msra.mxu0 0.0
  %1137 = vmatprep.subr.mxu0 0.0
  %1138 = vmatpush1.msra.mxu0 0.0
  %1139 = vmatprep.subr.mxu0 0.0
  %1140 = vmatpush1.msra.mxu0 0.0
  %1141 = vmatprep.subr.mxu0 0.0
  %1142 = vmatpush1.msra.mxu0 0.0
  %1143 = vmatprep.subr.mxu0 0.0
  %1144 = vmatpush1.msra.mxu0 0.0
  %1145 = vmatprep.subr.mxu0 0.0
  %1146 = vmatpush1.msra.mxu0 0.0
  %1147 = vmatprep.subr.mxu0 0.0
  %1148 = vmatpush1.msra.mxu0 0.0
  %1149 = vmatprep.subr.mxu0 0.0
  %1150 = vmatpush1.msra.mxu0 0.0
  %1151 = vmatprep.subr.mxu0 0.0
  %1152 = vmatpush1.msra.mxu0 0.0
  %1153 = vmatprep.subr.mxu0 0.0
  %1154 = vmatpush1.msra.mxu0 0.0
  %1155 = vmatprep.subr.mxu0 0.0
  %1156 = vmatpush1.msra.mxu0 0.0
  %1157 = vmatprep.subr.mxu0 0.0
  %1158 = vmatpush1.msra.mxu0 0.0
  %1159 = vmatprep.subr.mxu0 0.0
  %1160 = vmatpush1.msra.mxu0 0.0
  %1161 = vmatprep.subr.mxu0 0.0
  %1162 = vmatpush1.msra.mxu0 0.0
  %1163 = vmatprep.subr.mxu0 0.0
  %1164 = vmatpush1.msra.mxu0 0.0
  %1165 = vmatprep.mubr.f32.mxu0 0.0
  %1166 = vmatmul.mubr.f32.gmra.mrb[0].mxu0 %v1078
  %v1167 = vpop.f32.mrb[0].mxu0
  %v1168 = vadd.f32 %v1075, %v1167
  %v1169 = vpop.f32.mrb[0].mxu0
  %1170 = vmatprep.mubr.f32.mxu0 0.0
  %1171 = vmatmul.mubr.f32.gmra.mrb[0].mxu0 %v1081
  %v1172 = vpop.f32.mrb[0].mxu0
  %v1173 = vadd.f32 %v1075, %v1172
  %v1174 = vpop.f32.mrb[0].mxu0
  %1175 = vmatprep.mubr.f32.mxu0 0.0
  %1176 = vmatmul.mubr.f32.gmra.mrb[0].mxu0 %v1084
  %v1177 = vpop.f32.mrb[0].mxu0
  %v1178 = vadd.f32 %v1075, %v1177
  %v1179 = vpop.f32.mrb[0].mxu0
  %1180 = vmatprep.mubr.f32.mxu0 0.0
  %1181 = vmatmul.mubr.f32.gmra.mrb[0].mxu0 %v1087
  %v1182 = vpop.f32.mrb[0].mxu0
  %v1183 = vadd.f32 %v1075, %v1182
  %v1184 = vpop.f32.mrb[0].mxu0
  %1185 = vmatprep.mubr.f32.mxu0 0.0
  %1186 = vmatmul.mubr.f32.gmra.mrb[0].mxu0 %v1090
  %v1187 = vpop.f32.mrb[0].mxu0
  %v1188 = vadd.f32 %v1075, %v1187
  %v1189 = vpop.f32.mrb[0].mxu0
  %1190 = vmatprep.mubr.f32.mxu0 0.0
  %1191 = vmatmul.mubr.f32.gmra.mrb[0].mxu0 %v1093
  %v1192 = vpop.f32.mrb[0].mxu0
  %v1193 = vadd.f32 %v1075, %v1192
  %v1194 = vpop.f32.mrb[0].mxu0
  %1195 = vmatprep.mubr.f32.mxu0 0.0
  %1196 = vmatmul.mubr.f32.gmra.mrb[0].mxu0 %v1096
  %v1197 = vpop.f32.mrb[0].mxu0
  %v1198 = vadd.f32 %v1075, %v1197
  %v1199 = vpop.f32.mrb[0].mxu0
  %1200 = vmatprep.mubr.f32.mxu0 0.0
  %1201 = vmatmul.mubr.f32.gmra.mrb[0].mxu0 %v1099
  %v1202 = vpop.f32.mrb[0].mxu0
  %v1203 = vadd.f32 %v1075, %v1202
  %v1204 = vpop.f32.mrb[0].mxu0
  %1205 = vdwg.mxu0
  %1206 = vst.msk [vmem:[#allocation3] sm:$0xff] %vm181, %v1168
  %1207 = vst.msk [vmem:[#allocation3 + $0x8] sm:$0xff] %vm181, %v1173
  %1208 = vst.msk [vmem:[#allocation3 + $0x10] sm:$0xff] %vm181, %v1178
  %1209 = vst.msk [vmem:[#allocation3 + $0x18] sm:$0xff] %vm181, %v1183
  %1210 = vst.msk [vmem:[#allocation3 + $0x20] sm:$0xff] %vm181, %v1188
  %1211 = vst.msk [vmem:[#allocation3 + $0x28] sm:$0xff] %vm181, %v1193
  %1212 = vst.msk [vmem:[#allocation3 + $0x30] sm:$0xff] %vm181, %v1198
  %1213 = vst.msk [vmem:[#allocation3 + $0x38] sm:$0xff] %vm181, %v1203
  %1214 = vmatprep.subr.mxu0 0.0
  %1215 = vmatpush1.msra.mxu0 %v1057
  %1216 = vmatprep.subr.mxu0 0.0
  %1217 = vmatpush1.msra.mxu0 %v1058
  %1218 = vmatprep.subr.mxu0 0.0
  %1219 = vmatpush1.msra.mxu0 0.0
  %1220 = vmatprep.subr.mxu0 0.0
  %1221 = vmatpush1.msra.mxu0 0.0
  %1222 = vmatprep.subr.mxu0 0.0
  %1223 = vmatpush1.msra.mxu0 0.0
  %1224 = vmatprep.subr.mxu0 0.0
  %1225 = vmatpush1.msra.mxu0 0.0
  %1226 = vmatprep.subr.mxu0 0.0
  %1227 = vmatpush1.msra.mxu0 0.0
  %1228 = vmatprep.subr.mxu0 0.0
  %1229 = vmatpush1.msra.mxu0 0.0
  %1230 = vmatprep.subr.mxu0 0.0
  %1231 = vmatpush1.msra.mxu0 0.0
  %1232 = vmatprep.subr.mxu0 0.0
  %1233 = vmatpush1.msra.mxu0 0.0
  %1234 = vmatprep.subr.mxu0 0.0
  %1235 = vmatpush1.msra.mxu0 0.0
  %1236 = vmatprep.subr.mxu0 0.0
  %1237 = vmatpush1.msra.mxu0 0.0
  %1238 = vmatprep.subr.mxu0 0.0
  %1239 = vmatpush1.msra.mxu0 0.0
  %1240 = vmatprep.subr.mxu0 0.0
  %1241 = vmatpush1.msra.mxu0 0.0
  %1242 = vmatprep.subr.mxu0 0.0
  %1243 = vmatpush1.msra.mxu0 0.0
  %1244 = vmatprep.subr.mxu0 0.0
  %1245 = vmatpush1.msra.mxu0 0.0
  %1246 = vmatprep.subr.mxu0 0.0
  %1247 = vmatpush1.msra.mxu0 0.0
  %1248 = vmatprep.subr.mxu0 0.0
  %1249 = vmatpush1.msra.mxu0 0.0
  %1250 = vmatprep.subr.mxu0 0.0
  %1251 = vmatpush1.msra.mxu0 0.0
  %1252 = vmatprep.subr.mxu0 0.0
  %1253 = vmatpush1.msra.mxu0 0.0
  %1254 = vmatprep.subr.mxu0 0.0
  %1255 = vmatpush1.msra.mxu0 0.0
  %1256 = vmatprep.subr.mxu0 0.0
  %1257 = vmatpush1.msra.mxu0 0.0
  %1258 = vmatprep.subr.mxu0 0.0
  %1259 = vmatpush1.msra.mxu0 0.0
  %1260 = vmatprep.subr.mxu0 0.0
  %1261 = vmatpush1.msra.mxu0 0.0
  %1262 = vmatprep.subr.mxu0 0.0
  %1263 = vmatpush1.msra.mxu0 0.0
  %1264 = vmatprep.subr.mxu0 0.0
  %1265 = vmatpush1.msra.mxu0 0.0
  %1266 = vmatprep.subr.mxu0 0.0
  %1267 = vmatpush1.msra.mxu0 0.0
  %1268 = vmatprep.subr.mxu0 0.0
  %1269 = vmatpush1.msra.mxu0 0.0
  %1270 = vmatprep.subr.mxu0 0.0
  %1271 = vmatpush1.msra.mxu0 0.0
  %1272 = vmatprep.subr.mxu0 0.0
  %1273 = vmatpush1.msra.mxu0 0.0
  %1274 = vmatprep.subr.mxu0 0.0
  %1275 = vmatpush1.msra.mxu0 0.0
  %1276 = vmatprep.subr.mxu0 0.0
  %1277 = vmatpush1.msra.mxu0 0.0
  %1278 = vmatprep.mubr.f32.mxu0 0.0
  %1279 = vmatmul.mubr.f32.gmra.mrb[0].mxu0 %v191
  %v1280 = vpop.f32.mrb[0].mxu0
  %v1281 = vadd.f32 0.0, %v1280
  %v1282 = vpop.f32.mrb[0].mxu0
  %1283 = vdwg.mxu0
  %v1284 = vld [vmem:[#allocation3] sm:$0xff]
  %v1285 = vadd.f32 %v1284, %v1281
  %v1286 = vxor.u32 %v1285, 2147483648
  %v1287 = vmul.f32 %v1286, 1.442695
  %v1288 = vpow.pop %v1287
  %v1289 = vadd.f32 %v1288, 1.0
  %v1290 = vrcp.pop %v1289
  %v1291 = vmul.f32 1.0, %v1290
  %1292 = vrot.lane.b32.xlu0 %v1065, 32
  %v1293 = vpop.permute.xlu0 %1292
  %v1295 = vadd.f32 %v1281, %v1293
  %1297 = vrot.lane.b32.xlu0 %v1295, 96
  %v1298 = vpop.permute.xlu0 %1297
  %v1300 = vmul.f32 %v1291, %v1298
  %1302 = vrot.lane.b32.xlu0 %v1300, 32
  %v1303 = vpop.permute.xlu0 %1302
  %v1305 = vadd.f32 %v1284, %v1303
  %v1306 = vtanh.pop %v1305
  %v1307 = vsub.f32 1.0, %v1291
  %1309 = vrot.lane.b32.xlu0 %v1306, 112
  %v1310 = vpop.permute.xlu0 %1309
  %v1312 = vmul.f32 %v1307, %v1310
  %v1313 = vmul.f32 %v1291, 0.0
  %v1314 = vadd.f32 %v1312, %v1313
  %1316 = vrot.lane.b32.xlu0 %v1314, 112
  %v1317 = vpop.permute.xlu0 %1316
  %1319 = vst.msk [vmem:[#allocation2] sm:$0xff] %vm51, %v1317
  %v1320 = vsel %vm51, %v1317, 0
  %1322 = vmatprep.subr.mxu0 0.0
  %1323 = vmatpush1.msra.mxu0 %v1057
  %1324 = vmatprep.subr.mxu0 0.0
  %1325 = vmatpush1.msra.mxu0 %v1058
  %1326 = vmatprep.subr.mxu0 0.0
  %1327 = vmatpush1.msra.mxu0 0.0
  %1328 = vmatprep.subr.mxu0 0.0
  %1329 = vmatpush1.msra.mxu0 0.0
  %1330 = vmatprep.subr.mxu0 0.0
  %1331 = vmatpush1.msra.mxu0 0.0
  %1332 = vmatprep.subr.mxu0 0.0
  %1333 = vmatpush1.msra.mxu0 0.0
  %1334 = vmatprep.subr.mxu0 0.0
  %1335 = vmatpush1.msra.mxu0 0.0
  %1336 = vmatprep.subr.mxu0 0.0
  %1337 = vmatpush1.msra.mxu0 0.0
  %1338 = vmatprep.subr.mxu0 0.0
  %1339 = vmatpush1.msra.mxu0 0.0
  %1340 = vmatprep.subr.mxu0 0.0
  %1341 = vmatpush1.msra.mxu0 0.0
  %1342 = vmatprep.subr.mxu0 0.0
  %1343 = vmatpush1.msra.mxu0 0.0
  %1344 = vmatprep.subr.mxu0 0.0
  %1345 = vmatpush1.msra.mxu0 0.0
  %1346 = vmatprep.subr.mxu0 0.0
  %1347 = vmatpush1.msra.mxu0 0.0
  %1348 = vmatprep.subr.mxu0 0.0
  %1349 = vmatpush1.msra.mxu0 0.0
  %1350 = vmatprep.subr.mxu0 0.0
  %1351 = vmatpush1.msra.mxu0 0.0
  %1352 = vmatprep.subr.mxu0 0.0
  %1353 = vmatpush1.msra.mxu0 0.0
  %1354 = vmatprep.subr.mxu0 0.0
  %1355 = vmatpush1.msra.mxu0 0.0
  %1356 = vmatprep.subr.mxu0 0.0
  %1357 = vmatpush1.msra.mxu0 0.0
  %1358 = vmatprep.subr.mxu0 0.0
  %1359 = vmatpush1.msra.mxu0 0.0
  %1360 = vmatprep.subr.mxu0 0.0
  %1361 = vmatpush1.msra.mxu0 0.0
  %1362 = vmatprep.subr.mxu0 0.0
  %1363 = vmatpush1.msra.mxu0 0.0
  %1364 = vmatprep.subr.mxu0 0.0
  %1365 = vmatpush1.msra.mxu0 0.0
  %1366 = vmatprep.subr.mxu0 0.0
  %1367 = vmatpush1.msra.mxu0 0.0
  %1368 = vmatprep.subr.mxu0 0.0
  %1369 = vmatpush1.msra.mxu0 0.0
  %1370 = vmatprep.subr.mxu0 0.0
  %1371 = vmatpush1.msra.mxu0 0.0
  %1372 = vmatprep.subr.mxu0 0.0
  %1373 = vmatpush1.msra.mxu0 0.0
  %1374 = vmatprep.subr.mxu0 0.0
  %1375 = vmatpush1.msra.mxu0 0.0
  %1376 = vmatprep.subr.mxu0 0.0
  %1377 = vmatpush1.msra.mxu0 0.0
  %1378 = vmatprep.subr.mxu0 0.0
  %1379 = vmatpush1.msra.mxu0 0.0
  %1380 = vmatprep.subr.mxu0 0.0
  %1381 = vmatpush1.msra.mxu0 0.0
  %1382 = vmatprep.subr.mxu0 0.0
  %1383 = vmatpush1.msra.mxu0 0.0
  %1384 = vmatprep.subr.mxu0 0.0
  %1385 = vmatpush1.msra.mxu0 0.0
  %1386 = vmatprep.mubr.f32.mxu0 0.0
  %1387 = vmatmul.mubr.f32.gmra.mrb[0].mxu0 %v1320
  %v1388 = vpop.f32.mrb[0].mxu0
  %v1389 = vadd.f32 0.0, %v1388
  %v1390 = vpop.f32.mrb[0].mxu0
  %1391 = vdwg.mxu0
  %v1392 = vld [vmem:[%s371] sm:$0xff]
  %v1393 = vadd.f32 %v1392, %v1389
  %v1394 = vxor.u32 %v1393, 2147483648
  %v1395 = vmul.f32 %v1394, 1.442695
  %v1396 = vpow.pop %v1395
  %v1397 = vadd.f32 %v1396, 1.0
  %v1398 = vrcp.pop %v1397
  %v1399 = vmul.f32 1.0, %v1398
  %v1400 = vadd.f32 %v1389, %v1293
  %1402 = vrot.lane.b32.xlu0 %v1400, 96
  %v1403 = vpop.permute.xlu0 %1402
  %v1405 = vmul.f32 %v1399, %v1403
  %1407 = vrot.lane.b32.xlu0 %v1405, 32
  %v1408 = vpop.permute.xlu0 %1407
  %v1410 = vadd.f32 %v1392, %v1408
  %v1411 = vtanh.pop %v1410
  %v1412 = vsub.f32 1.0, %v1399
  %1414 = vrot.lane.b32.xlu0 %v1411, 112
  %v1415 = vpop.permute.xlu0 %1414
  %v1417 = vmul.f32 %v1412, %v1415
  %v1418 = vmul.f32 %v1399, %v1314
  %v1419 = vadd.f32 %v1417, %v1418
  %1421 = vrot.lane.b32.xlu0 %v1419, 112
  %v1422 = vpop.permute.xlu0 %1421
  %1424 = vst.msk [vmem:[%s404] sm:$0xff] %vm51, %v1422
  %v1425 = vsel %vm51, %v1422, 0
  %1427 = vmatprep.subr.mxu0 0.0
  %1428 = vmatpush1.msra.mxu0 %v1057
  %1429 = vmatprep.subr.mxu0 0.0
  %1430 = vmatpush1.msra.mxu0 %v1058
  %1431 = vmatprep.subr.mxu0 0.0
  %1432 = vmatpush1.msra.mxu0 0.0
  %1433 = vmatprep.subr.mxu0 0.0
  %1434 = vmatpush1.msra.mxu0 0.0
  %1435 = vmatprep.subr.mxu0 0.0
  %1436 = vmatpush1.msra.mxu0 0.0
  %1437 = vmatprep.subr.mxu0 0.0
  %1438 = vmatpush1.msra.mxu0 0.0
  %1439 = vmatprep.subr.mxu0 0.0
  %1440 = vmatpush1.msra.mxu0 0.0
  %1441 = vmatprep.subr.mxu0 0.0
  %1442 = vmatpush1.msra.mxu0 0.0
  %1443 = vmatprep.subr.mxu0 0.0
  %1444 = vmatpush1.msra.mxu0 0.0
  %1445 = vmatprep.subr.mxu0 0.0
  %1446 = vmatpush1.msra.mxu0 0.0
  %1447 = vmatprep.subr.mxu0 0.0
  %1448 = vmatpush1.msra.mxu0 0.0
  %1449 = vmatprep.subr.mxu0 0.0
  %1450 = vmatpush1.msra.mxu0 0.0
  %1451 = vmatprep.subr.mxu0 0.0
  %1452 = vmatpush1.msra.mxu0 0.0
  %1453 = vmatprep.subr.mxu0 0.0
  %1454 = vmatpush1.msra.mxu0 0.0
  %1455 = vmatprep.subr.mxu0 0.0
  %1456 = vmatpush1.msra.mxu0 0.0
  %1457 = vmatprep.subr.mxu0 0.0
  %1458 = vmatpush1.msra.mxu0 0.0
  %1459 = vmatprep.subr.mxu0 0.0
  %1460 = vmatpush1.msra.mxu0 0.0
  %1461 = vmatprep.subr.mxu0 0.0
  %1462 = vmatpush1.msra.mxu0 0.0
  %1463 = vmatprep.subr.mxu0 0.0
  %1464 = vmatpush1.msra.mxu0 0.0
  %1465 = vmatprep.subr.mxu0 0.0
  %1466 = vmatpush1.msra.mxu0 0.0
  %1467 = vmatprep.subr.mxu0 0.0
  %1468 = vmatpush1.msra.mxu0 0.0
  %1469 = vmatprep.subr.mxu0 0.0
  %1470 = vmatpush1.msra.mxu0 0.0
  %1471 = vmatprep.subr.mxu0 0.0
  %1472 = vmatpush1.msra.mxu0 0.0
  %1473 = vmatprep.subr.mxu0 0.0
  %1474 = vmatpush1.msra.mxu0 0.0
  %1475 = vmatprep.subr.mxu0 0.0
  %1476 = vmatpush1.msra.mxu0 0.0
  %1477 = vmatprep.subr.mxu0 0.0
  %1478 = vmatpush1.msra.mxu0 0.0
  %1479 = vmatprep.subr.mxu0 0.0
  %1480 = vmatpush1.msra.mxu0 0.0
  %1481 = vmatprep.subr.mxu0 0.0
  %1482 = vmatpush1.msra.mxu0 0.0
  %1483 = vmatprep.subr.mxu0 0.0
  %1484 = vmatpush1.msra.mxu0 0.0
  %1485 = vmatprep.subr.mxu0 0.0
  %1486 = vmatpush1.msra.mxu0 0.0
  %1487 = vmatprep.subr.mxu0 0.0
  %1488 = vmatpush1.msra.mxu0 0.0
  %1489 = vmatprep.subr.mxu0 0.0
  %1490 = vmatpush1.msra.mxu0 0.0
  %1491 = vmatprep.mubr.f32.mxu0 0.0
  %1492 = vmatmul.mubr.f32.gmra.mrb[0].mxu0 %v1425
  %v1493 = vpop.f32.mrb[0].mxu0
  %v1494 = vadd.f32 0.0, %v1493
  %v1495 = vpop.f32.mrb[0].mxu0
  %1496 = vdwg.mxu0
  %v1497 = vld [vmem:[%s478] sm:$0xff]
  %v1498 = vadd.f32 %v1497, %v1494
  %v1499 = vxor.u32 %v1498, 2147483648
  %v1500 = vmul.f32 %v1499, 1.442695
  %v1501 = vpow.pop %v1500
  %v1502 = vadd.f32 %v1501, 1.0
  %v1503 = vrcp.pop %v1502
  %v1504 = vmul.f32 1.0, %v1503
  %v1505 = vadd.f32 %v1494, %v1293
  %1507 = vrot.lane.b32.xlu0 %v1505, 96
  %v1508 = vpop.permute.xlu0 %1507
  %v1510 = vmul.f32 %v1504, %v1508
  %1512 = vrot.lane.b32.xlu0 %v1510, 32
  %v1513 = vpop.permute.xlu0 %1512
  %v1515 = vadd.f32 %v1497, %v1513
  %v1516 = vtanh.pop %v1515
  %v1517 = vsub.f32 1.0, %v1504
  %1519 = vrot.lane.b32.xlu0 %v1516, 112
  %v1520 = vpop.permute.xlu0 %1519
  %v1522 = vmul.f32 %v1517, %v1520
  %v1523 = vmul.f32 %v1504, %v1419
  %v1524 = vadd.f32 %v1522, %v1523
  %1526 = vrot.lane.b32.xlu0 %v1524, 112
  %v1527 = vpop.permute.xlu0 %1526
  %1529 = vst.msk [vmem:[%s511] sm:$0xff] %vm51, %v1527
  %v1530 = vsel %vm51, %v1527, 0
  %1532 = vmatprep.subr.mxu0 0.0
  %1533 = vmatpush1.msra.mxu0 %v1057
  %1534 = vmatprep.subr.mxu0 0.0
  %1535 = vmatpush1.msra.mxu0 %v1058
  %1536 = vmatprep.subr.mxu0 0.0
  %1537 = vmatpush1.msra.mxu0 0.0
  %1538 = vmatprep.subr.mxu0 0.0
  %1539 = vmatpush1.msra.mxu0 0.0
  %1540 = vmatprep.subr.mxu0 0.0
  %1541 = vmatpush1.msra.mxu0 0.0
  %1542 = vmatprep.subr.mxu0 0.0
  %1543 = vmatpush1.msra.mxu0 0.0
  %1544 = vmatprep.subr.mxu0 0.0
  %1545 = vmatpush1.msra.mxu0 0.0
  %1546 = vmatprep.subr.mxu0 0.0
  %1547 = vmatpush1.msra.mxu0 0.0
  %1548 = vmatprep.subr.mxu0 0.0
  %1549 = vmatpush1.msra.mxu0 0.0
  %1550 = vmatprep.subr.mxu0 0.0
  %1551 = vmatpush1.msra.mxu0 0.0
  %1552 = vmatprep.subr.mxu0 0.0
  %1553 = vmatpush1.msra.mxu0 0.0
  %1554 = vmatprep.subr.mxu0 0.0
  %1555 = vmatpush1.msra.mxu0 0.0
  %1556 = vmatprep.subr.mxu0 0.0
  %1557 = vmatpush1.msra.mxu0 0.0
  %1558 = vmatprep.subr.mxu0 0.0
  %1559 = vmatpush1.msra.mxu0 0.0
  %1560 = vmatprep.subr.mxu0 0.0
  %1561 = vmatpush1.msra.mxu0 0.0
  %1562 = vmatprep.subr.mxu0 0.0
  %1563 = vmatpush1.msra.mxu0 0.0
  %1564 = vmatprep.subr.mxu0 0.0
  %1565 = vmatpush1.msra.mxu0 0.0
  %1566 = vmatprep.subr.mxu0 0.0
  %1567 = vmatpush1.msra.mxu0 0.0
  %1568 = vmatprep.subr.mxu0 0.0
  %1569 = vmatpush1.msra.mxu0 0.0
  %1570 = vmatprep.subr.mxu0 0.0
  %1571 = vmatpush1.msra.mxu0 0.0
  %1572 = vmatprep.subr.mxu0 0.0
  %1573 = vmatpush1.msra.mxu0 0.0
  %1574 = vmatprep.subr.mxu0 0.0
  %1575 = vmatpush1.msra.mxu0 0.0
  %1576 = vmatprep.subr.mxu0 0.0
  %1577 = vmatpush1.msra.mxu0 0.0
  %1578 = vmatprep.subr.mxu0 0.0
  %1579 = vmatpush1.msra.mxu0 0.0
  %1580 = vmatprep.subr.mxu0 0.0
  %1581 = vmatpush1.msra.mxu0 0.0
  %1582 = vmatprep.subr.mxu0 0.0
  %1583 = vmatpush1.msra.mxu0 0.0
  %1584 = vmatprep.subr.mxu0 0.0
  %1585 = vmatpush1.msra.mxu0 0.0
  %1586 = vmatprep.subr.mxu0 0.0
  %1587 = vmatpush1.msra.mxu0 0.0
  %1588 = vmatprep.subr.mxu0 0.0
  %1589 = vmatpush1.msra.mxu0 0.0
  %1590 = vmatprep.subr.mxu0 0.0
  %1591 = vmatpush1.msra.mxu0 0.0
  %1592 = vmatprep.subr.mxu0 0.0
  %1593 = vmatpush1.msra.mxu0 0.0
  %1594 = vmatprep.subr.mxu0 0.0
  %1595 = vmatpush1.msra.mxu0 0.0
  %1596 = vmatprep.mubr.f32.mxu0 0.0
  %1597 = vmatmul.mubr.f32.gmra.mrb[0].mxu0 %v1530
  %v1598 = vpop.f32.mrb[0].mxu0
  %v1599 = vadd.f32 0.0, %v1598
  %v1600 = vpop.f32.mrb[0].mxu0
  %1601 = vdwg.mxu0
  %v1602 = vld [vmem:[%s585] sm:$0xff]
  %v1603 = vadd.f32 %v1602, %v1599
  %v1604 = vxor.u32 %v1603, 2147483648
  %v1605 = vmul.f32 %v1604, 1.442695
  %v1606 = vpow.pop %v1605
  %v1607 = vadd.f32 %v1606, 1.0
  %v1608 = vrcp.pop %v1607
  %v1609 = vmul.f32 1.0, %v1608
  %v1610 = vadd.f32 %v1599, %v1293
  %1612 = vrot.lane.b32.xlu0 %v1610, 96
  %v1613 = vpop.permute.xlu0 %1612
  %v1615 = vmul.f32 %v1609, %v1613
  %1617 = vrot.lane.b32.xlu0 %v1615, 32
  %v1618 = vpop.permute.xlu0 %1617
  %v1620 = vadd.f32 %v1602, %v1618
  %v1621 = vtanh.pop %v1620
  %v1622 = vsub.f32 1.0, %v1609
  %1624 = vrot.lane.b32.xlu0 %v1621, 112
  %v1625 = vpop.permute.xlu0 %1624
  %v1627 = vmul.f32 %v1622, %v1625
  %v1628 = vmul.f32 %v1609, %v1524
  %v1629 = vadd.f32 %v1627, %v1628
  %1631 = vrot.lane.b32.xlu0 %v1629, 112
  %v1632 = vpop.permute.xlu0 %1631
  %1634 = vst.msk [vmem:[%s618] sm:$0xff] %vm51, %v1632
  %v1635 = vsel %vm51, %v1632, 0
  %1637 = vmatprep.subr.mxu0 0.0
  %1638 = vmatpush1.msra.mxu0 %v1057
  %1639 = vmatprep.subr.mxu0 0.0
  %1640 = vmatpush1.msra.mxu0 %v1058
  %1641 = vmatprep.subr.mxu0 0.0
  %1642 = vmatpush1.msra.mxu0 0.0
  %1643 = vmatprep.subr.mxu0 0.0
  %1644 = vmatpush1.msra.mxu0 0.0
  %1645 = vmatprep.subr.mxu0 0.0
  %1646 = vmatpush1.msra.mxu0 0.0
  %1647 = vmatprep.subr.mxu0 0.0
  %1648 = vmatpush1.msra.mxu0 0.0
  %1649 = vmatprep.subr.mxu0 0.0
  %1650 = vmatpush1.msra.mxu0 0.0
  %1651 = vmatprep.subr.mxu0 0.0
  %1652 = vmatpush1.msra.mxu0 0.0
  %1653 = vmatprep.subr.mxu0 0.0
  %1654 = vmatpush1.msra.mxu0 0.0
  %1655 = vmatprep.subr.mxu0 0.0
  %1656 = vmatpush1.msra.mxu0 0.0
  %1657 = vmatprep.subr.mxu0 0.0
  %1658 = vmatpush1.msra.mxu0 0.0
  %1659 = vmatprep.subr.mxu0 0.0
  %1660 = vmatpush1.msra.mxu0 0.0
  %1661 = vmatprep.subr.mxu0 0.0
  %1662 = vmatpush1.msra.mxu0 0.0
  %1663 = vmatprep.subr.mxu0 0.0
  %1664 = vmatpush1.msra.mxu0 0.0
  %1665 = vmatprep.subr.mxu0 0.0
  %1666 = vmatpush1.msra.mxu0 0.0
  %1667 = vmatprep.subr.mxu0 0.0
  %1668 = vmatpush1.msra.mxu0 0.0
  %1669 = vmatprep.subr.mxu0 0.0
  %1670 = vmatpush1.msra.mxu0 0.0
  %1671 = vmatprep.subr.mxu0 0.0
  %1672 = vmatpush1.msra.mxu0 0.0
  %1673 = vmatprep.subr.mxu0 0.0
  %1674 = vmatpush1.msra.mxu0 0.0
  %1675 = vmatprep.subr.mxu0 0.0
  %1676 = vmatpush1.msra.mxu0 0.0
  %1677 = vmatprep.subr.mxu0 0.0
  %1678 = vmatpush1.msra.mxu0 0.0
  %1679 = vmatprep.subr.mxu0 0.0
  %1680 = vmatpush1.msra.mxu0 0.0
  %1681 = vmatprep.subr.mxu0 0.0
  %1682 = vmatpush1.msra.mxu0 0.0
  %1683 = vmatprep.subr.mxu0 0.0
  %1684 = vmatpush1.msra.mxu0 0.0
  %1685 = vmatprep.subr.mxu0 0.0
  %1686 = vmatpush1.msra.mxu0 0.0
  %1687 = vmatprep.subr.mxu0 0.0
  %1688 = vmatpush1.msra.mxu0 0.0
  %1689 = vmatprep.subr.mxu0 0.0
  %1690 = vmatpush1.msra.mxu0 0.0
  %1691 = vmatprep.subr.mxu0 0.0
  %1692 = vmatpush1.msra.mxu0 0.0
  %1693 = vmatprep.subr.mxu0 0.0
  %1694 = vmatpush1.msra.mxu0 0.0
  %1695 = vmatprep.subr.mxu0 0.0
  %1696 = vmatpush1.msra.mxu0 0.0
  %1697 = vmatprep.subr.mxu0 0.0
  %1698 = vmatpush1.msra.mxu0 0.0
  %1699 = vmatprep.subr.mxu0 0.0
  %1700 = vmatpush1.msra.mxu0 0.0
  %1701 = vmatprep.mubr.f32.mxu0 0.0
  %1702 = vmatmul.mubr.f32.gmra.mrb[0].mxu0 %v1635
  %v1703 = vpop.f32.mrb[0].mxu0
  %v1704 = vadd.f32 0.0, %v1703
  %v1705 = vpop.f32.mrb[0].mxu0
  %1706 = vdwg.mxu0
  %v1707 = vld [vmem:[%s692] sm:$0xff]
  %v1708 = vadd.f32 %v1707, %v1704
  %v1709 = vxor.u32 %v1708, 2147483648
  %v1710 = vmul.f32 %v1709, 1.442695
  %v1711 = vpow.pop %v1710
  %v1712 = vadd.f32 %v1711, 1.0
  %v1713 = vrcp.pop %v1712
  %v1714 = vmul.f32 1.0, %v1713
  %v1715 = vadd.f32 %v1704, %v1293
  %1717 = vrot.lane.b32.xlu0 %v1715, 96
  %v1718 = vpop.permute.xlu0 %1717
  %v1720 = vmul.f32 %v1714, %v1718
  %1722 = vrot.lane.b32.xlu0 %v1720, 32
  %v1723 = vpop.permute.xlu0 %1722
  %v1725 = vadd.f32 %v1707, %v1723
  %v1726 = vtanh.pop %v1725
  %v1727 = vsub.f32 1.0, %v1714
  %1729 = vrot.lane.b32.xlu0 %v1726, 112
  %v1730 = vpop.permute.xlu0 %1729
  %v1732 = vmul.f32 %v1727, %v1730
  %v1733 = vmul.f32 %v1714, %v1629
  %v1734 = vadd.f32 %v1732, %v1733
  %1736 = vrot.lane.b32.xlu0 %v1734, 112
  %v1737 = vpop.permute.xlu0 %1736
  %1739 = vst.msk [vmem:[%s725] sm:$0xff] %vm51, %v1737
  %v1740 = vsel %vm51, %v1737, 0
  %1742 = vmatprep.subr.mxu0 0.0
  %1743 = vmatpush1.msra.mxu0 %v1057
  %1744 = vmatprep.subr.mxu0 0.0
  %1745 = vmatpush1.msra.mxu0 %v1058
  %1746 = vmatprep.subr.mxu0 0.0
  %1747 = vmatpush1.msra.mxu0 0.0
  %1748 = vmatprep.subr.mxu0 0.0
  %1749 = vmatpush1.msra.mxu0 0.0
  %1750 = vmatprep.subr.mxu0 0.0
  %1751 = vmatpush1.msra.mxu0 0.0
  %1752 = vmatprep.subr.mxu0 0.0
  %1753 = vmatpush1.msra.mxu0 0.0
  %1754 = vmatprep.subr.mxu0 0.0
  %1755 = vmatpush1.msra.mxu0 0.0
  %1756 = vmatprep.subr.mxu0 0.0
  %1757 = vmatpush1.msra.mxu0 0.0
  %1758 = vmatprep.subr.mxu0 0.0
  %1759 = vmatpush1.msra.mxu0 0.0
  %1760 = vmatprep.subr.mxu0 0.0
  %1761 = vmatpush1.msra.mxu0 0.0
  %1762 = vmatprep.subr.mxu0 0.0
  %1763 = vmatpush1.msra.mxu0 0.0
  %1764 = vmatprep.subr.mxu0 0.0
  %1765 = vmatpush1.msra.mxu0 0.0
  %1766 = vmatprep.subr.mxu0 0.0
  %1767 = vmatpush1.msra.mxu0 0.0
  %1768 = vmatprep.subr.mxu0 0.0
  %1769 = vmatpush1.msra.mxu0 0.0
  %1770 = vmatprep.subr.mxu0 0.0
  %1771 = vmatpush1.msra.mxu0 0.0
  %1772 = vmatprep.subr.mxu0 0.0
  %1773 = vmatpush1.msra.mxu0 0.0
  %1774 = vmatprep.subr.mxu0 0.0
  %1775 = vmatpush1.msra.mxu0 0.0
  %1776 = vmatprep.subr.mxu0 0.0
  %1777 = vmatpush1.msra.mxu0 0.0
  %1778 = vmatprep.subr.mxu0 0.0
  %1779 = vmatpush1.msra.mxu0 0.0
  %1780 = vmatprep.subr.mxu0 0.0
  %1781 = vmatpush1.msra.mxu0 0.0
  %1782 = vmatprep.subr.mxu0 0.0
  %1783 = vmatpush1.msra.mxu0 0.0
  %1784 = vmatprep.subr.mxu0 0.0
  %1785 = vmatpush1.msra.mxu0 0.0
  %1786 = vmatprep.subr.mxu0 0.0
  %1787 = vmatpush1.msra.mxu0 0.0
  %1788 = vmatprep.subr.mxu0 0.0
  %1789 = vmatpush1.msra.mxu0 0.0
  %1790 = vmatprep.subr.mxu0 0.0
  %1791 = vmatpush1.msra.mxu0 0.0
  %1792 = vmatprep.subr.mxu0 0.0
  %1793 = vmatpush1.msra.mxu0 0.0
  %1794 = vmatprep.subr.mxu0 0.0
  %1795 = vmatpush1.msra.mxu0 0.0
  %1796 = vmatprep.subr.mxu0 0.0
  %1797 = vmatpush1.msra.mxu0 0.0
  %1798 = vmatprep.subr.mxu0 0.0
  %1799 = vmatpush1.msra.mxu0 0.0
  %1800 = vmatprep.subr.mxu0 0.0
  %1801 = vmatpush1.msra.mxu0 0.0
  %1802 = vmatprep.subr.mxu0 0.0
  %1803 = vmatpush1.msra.mxu0 0.0
  %1804 = vmatprep.subr.mxu0 0.0
  %1805 = vmatpush1.msra.mxu0 0.0
  %1806 = vmatprep.mubr.f32.mxu0 0.0
  %1807 = vmatmul.mubr.f32.gmra.mrb[0].mxu0 %v1740
  %v1808 = vpop.f32.mrb[0].mxu0
  %v1809 = vadd.f32 0.0, %v1808
  %v1810 = vpop.f32.mrb[0].mxu0
  %1811 = vdwg.mxu0
  %v1812 = vld [vmem:[%s799] sm:$0xff]
  %v1813 = vadd.f32 %v1812, %v1809
  %v1814 = vxor.u32 %v1813, 2147483648
  %v1815 = vmul.f32 %v1814, 1.442695
  %v1816 = vpow.pop %v1815
  %v1817 = vadd.f32 %v1816, 1.0
  %v1818 = vrcp.pop %v1817
  %v1819 = vmul.f32 1.0, %v1818
  %v1820 = vadd.f32 %v1809, %v1293
  %1822 = vrot.lane.b32.xlu0 %v1820, 96
  %v1823 = vpop.permute.xlu0 %1822
  %v1825 = vmul.f32 %v1819, %v1823
  %1827 = vrot.lane.b32.xlu0 %v1825, 32
  %v1828 = vpop.permute.xlu0 %1827
  %v1830 = vadd.f32 %v1812, %v1828
  %v1831 = vtanh.pop %v1830
  %v1832 = vsub.f32 1.0, %v1819
  %1834 = vrot.lane.b32.xlu0 %v1831, 112
  %v1835 = vpop.permute.xlu0 %1834
  %v1837 = vmul.f32 %v1832, %v1835
  %v1838 = vmul.f32 %v1819, %v1734
  %v1839 = vadd.f32 %v1837, %v1838
  %1841 = vrot.lane.b32.xlu0 %v1839, 112
  %v1842 = vpop.permute.xlu0 %1841
  %1844 = vst.msk [vmem:[%s832] sm:$0xff] %vm51, %v1842
  %v1845 = vsel %vm51, %v1842, 0
  %1847 = vmatprep.subr.mxu0 0.0
  %1848 = vmatpush1.msra.mxu0 %v1057
  %1849 = vmatprep.subr.mxu0 0.0
  %1850 = vmatpush1.msra.mxu0 %v1058
  %1851 = vmatprep.subr.mxu0 0.0
  %1852 = vmatpush1.msra.mxu0 0.0
  %1853 = vmatprep.subr.mxu0 0.0
  %1854 = vmatpush1.msra.mxu0 0.0
  %1855 = vmatprep.subr.mxu0 0.0
  %1856 = vmatpush1.msra.mxu0 0.0
  %1857 = vmatprep.subr.mxu0 0.0
  %1858 = vmatpush1.msra.mxu0 0.0
  %1859 = vmatprep.subr.mxu0 0.0
  %1860 = vmatpush1.msra.mxu0 0.0
  %1861 = vmatprep.subr.mxu0 0.0
  %1862 = vmatpush1.msra.mxu0 0.0
  %1863 = vmatprep.subr.mxu0 0.0
  %1864 = vmatpush1.msra.mxu0 0.0
  %1865 = vmatprep.subr.mxu0 0.0
  %1866 = vmatpush1.msra.mxu0 0.0
  %1867 = vmatprep.subr.mxu0 0.0
  %1868 = vmatpush1.msra.mxu0 0.0
  %1869 = vmatprep.subr.mxu0 0.0
  %1870 = vmatpush1.msra.mxu0 0.0
  %1871 = vmatprep.subr.mxu0 0.0
  %1872 = vmatpush1.msra.mxu0 0.0
  %1873 = vmatprep.subr.mxu0 0.0
  %1874 = vmatpush1.msra.mxu0 0.0
  %1875 = vmatprep.subr.mxu0 0.0
  %1876 = vmatpush1.msra.mxu0 0.0
  %1877 = vmatprep.subr.mxu0 0.0
  %1878 = vmatpush1.msra.mxu0 0.0
  %1879 = vmatprep.subr.mxu0 0.0
  %1880 = vmatpush1.msra.mxu0 0.0
  %1881 = vmatprep.subr.mxu0 0.0
  %1882 = vmatpush1.msra.mxu0 0.0
  %1883 = vmatprep.subr.mxu0 0.0
  %1884 = vmatpush1.msra.mxu0 0.0
  %1885 = vmatprep.subr.mxu0 0.0
  %1886 = vmatpush1.msra.mxu0 0.0
  %1887 = vmatprep.subr.mxu0 0.0
  %1888 = vmatpush1.msra.mxu0 0.0
  %1889 = vmatprep.subr.mxu0 0.0
  %1890 = vmatpush1.msra.mxu0 0.0
  %1891 = vmatprep.subr.mxu0 0.0
  %1892 = vmatpush1.msra.mxu0 0.0
  %1893 = vmatprep.subr.mxu0 0.0
  %1894 = vmatpush1.msra.mxu0 0.0
  %1895 = vmatprep.subr.mxu0 0.0
  %1896 = vmatpush1.msra.mxu0 0.0
  %1897 = vmatprep.subr.mxu0 0.0
  %1898 = vmatpush1.msra.mxu0 0.0
  %1899 = vmatprep.subr.mxu0 0.0
  %1900 = vmatpush1.msra.mxu0 0.0
  %1901 = vmatprep.subr.mxu0 0.0
  %1902 = vmatpush1.msra.mxu0 0.0
  %1903 = vmatprep.subr.mxu0 0.0
  %1904 = vmatpush1.msra.mxu0 0.0
  %1905 = vmatprep.subr.mxu0 0.0
  %1906 = vmatpush1.msra.mxu0 0.0
  %1907 = vmatprep.subr.mxu0 0.0
  %1908 = vmatpush1.msra.mxu0 0.0
  %1909 = vmatprep.subr.mxu0 0.0
  %1910 = vmatpush1.msra.mxu0 0.0
  %1911 = vmatprep.mubr.f32.mxu0 0.0
  %1912 = vmatmul.mubr.f32.gmra.mrb[0].mxu0 %v1845
  %v1913 = vpop.f32.mrb[0].mxu0
  %v1914 = vadd.f32 0.0, %v1913
  %v1915 = vpop.f32.mrb[0].mxu0
  %1916 = vdwg.mxu0
  %v1917 = vld [vmem:[%s906] sm:$0xff]
  %v1918 = vadd.f32 %v1917, %v1914
  %v1919 = vxor.u32 %v1918, 2147483648
  %v1920 = vmul.f32 %v1919, 1.442695
  %v1921 = vpow.pop %v1920
  %v1922 = vadd.f32 %v1921, 1.0
  %v1923 = vrcp.pop %v1922
  %v1924 = vmul.f32 1.0, %v1923
  %v1925 = vadd.f32 %v1914, %v1293
  %1927 = vrot.lane.b32.xlu0 %v1925, 96
  %v1928 = vpop.permute.xlu0 %1927
  %v1930 = vmul.f32 %v1924, %v1928
  %1932 = vrot.lane.b32.xlu0 %v1930, 32
  %v1933 = vpop.permute.xlu0 %1932
  %v1935 = vadd.f32 %v1917, %v1933
  %v1936 = vtanh.pop %v1935
  %v1937 = vsub.f32 1.0, %v1924
  %1939 = vrot.lane.b32.xlu0 %v1936, 112
  %v1940 = vpop.permute.xlu0 %1939
  %v1942 = vmul.f32 %v1937, %v1940
  %v1943 = vmul.f32 %v1924, %v1839
  %v1944 = vadd.f32 %v1942, %v1943
  %1946 = vrot.lane.b32.xlu0 %v1944, 112
  %v1947 = vpop.permute.xlu0 %1946
  %1949 = vst.msk [vmem:[%s939] sm:$0xff] %vm51, %v1947
  %v1950 = vsel %vm51, %v1947, 0
  %1952 = vmatprep.subr.mxu0 0.0
  %1953 = vmatpush1.msra.mxu0 %v1057
  %1954 = vmatprep.subr.mxu0 0.0
  %1955 = vmatpush1.msra.mxu0 %v1058
  %1956 = vmatprep.subr.mxu0 0.0
  %1957 = vmatpush1.msra.mxu0 0.0
  %1958 = vmatprep.subr.mxu0 0.0
  %1959 = vmatpush1.msra.mxu0 0.0
  %1960 = vmatprep.subr.mxu0 0.0
  %1961 = vmatpush1.msra.mxu0 0.0
  %1962 = vmatprep.subr.mxu0 0.0
  %1963 = vmatpush1.msra.mxu0 0.0
  %1964 = vmatprep.subr.mxu0 0.0
  %1965 = vmatpush1.msra.mxu0 0.0
  %1966 = vmatprep.subr.mxu0 0.0
  %1967 = vmatpush1.msra.mxu0 0.0
  %1968 = vmatprep.subr.mxu0 0.0
  %1969 = vmatpush1.msra.mxu0 0.0
  %1970 = vmatprep.subr.mxu0 0.0
  %1971 = vmatpush1.msra.mxu0 0.0
  %1972 = vmatprep.subr.mxu0 0.0
  %1973 = vmatpush1.msra.mxu0 0.0
  %1974 = vmatprep.subr.mxu0 0.0
  %1975 = vmatpush1.msra.mxu0 0.0
  %1976 = vmatprep.subr.mxu0 0.0
  %1977 = vmatpush1.msra.mxu0 0.0
  %1978 = vmatprep.subr.mxu0 0.0
  %1979 = vmatpush1.msra.mxu0 0.0
  %1980 = vmatprep.subr.mxu0 0.0
  %1981 = vmatpush1.msra.mxu0 0.0
  %1982 = vmatprep.subr.mxu0 0.0
  %1983 = vmatpush1.msra.mxu0 0.0
  %1984 = vmatprep.subr.mxu0 0.0
  %1985 = vmatpush1.msra.mxu0 0.0
  %1986 = vmatprep.subr.mxu0 0.0
  %1987 = vmatpush1.msra.mxu0 0.0
  %1988 = vmatprep.subr.mxu0 0.0
  %1989 = vmatpush1.msra.mxu0 0.0
  %1990 = vmatprep.subr.mxu0 0.0
  %1991 = vmatpush1.msra.mxu0 0.0
  %1992 = vmatprep.subr.mxu0 0.0
  %1993 = vmatpush1.msra.mxu0 0.0
  %1994 = vmatprep.subr.mxu0 0.0
  %1995 = vmatpush1.msra.mxu0 0.0
  %1996 = vmatprep.subr.mxu0 0.0
  %1997 = vmatpush1.msra.mxu0 0.0
  %1998 = vmatprep.subr.mxu0 0.0
  %1999 = vmatpush1.msra.mxu0 0.0
  %2000 = vmatprep.subr.mxu0 0.0
  %2001 = vmatpush1.msra.mxu0 0.0
  %2002 = vmatprep.subr.mxu0 0.0
  %2003 = vmatpush1.msra.mxu0 0.0
  %2004 = vmatprep.subr.mxu0 0.0
  %2005 = vmatpush1.msra.mxu0 0.0
  %2006 = vmatprep.subr.mxu0 0.0
  %2007 = vmatpush1.msra.mxu0 0.0
  %2008 = vmatprep.subr.mxu0 0.0
  %2009 = vmatpush1.msra.mxu0 0.0
  %2010 = vmatprep.subr.mxu0 0.0
  %2011 = vmatpush1.msra.mxu0 0.0
  %2012 = vmatprep.subr.mxu0 0.0
  %2013 = vmatpush1.msra.mxu0 0.0
  %2014 = vmatprep.subr.mxu0 0.0
  %2015 = vmatpush1.msra.mxu0 0.0
  %2016 = vmatprep.mubr.f32.mxu0 0.0
  %2017 = vmatmul.mubr.f32.gmra.mrb[0].mxu0 %v1950
  %v2018 = vpop.f32.mrb[0].mxu0
  %v2019 = vadd.f32 0.0, %v2018
  %v2020 = vpop.f32.mrb[0].mxu0
  %2021 = vdwg.mxu0
  %v2022 = vld [vmem:[%s1013] sm:$0xff]
  %v2023 = vadd.f32 %v2022, %v2019
  %v2024 = vxor.u32 %v2023, 2147483648
  %v2025 = vmul.f32 %v2024, 1.442695
  %v2026 = vpow.pop %v2025
  %v2027 = vadd.f32 %v2026, 1.0
  %v2028 = vrcp.pop %v2027
  %v2029 = vmul.f32 1.0, %v2028
  %v2030 = vadd.f32 %v2019, %v1293
  %2032 = vrot.lane.b32.xlu0 %v2030, 96
  %v2033 = vpop.permute.xlu0 %2032
  %v2035 = vmul.f32 %v2029, %v2033
  %2037 = vrot.lane.b32.xlu0 %v2035, 32
  %v2038 = vpop.permute.xlu0 %2037
  %v2040 = vadd.f32 %v2022, %v2038
  %v2041 = vtanh.pop %v2040
  %v2042 = vsub.f32 1.0, %v2029
  %2044 = vrot.lane.b32.xlu0 %v2041, 112
  %v2045 = vpop.permute.xlu0 %2044
  %v2047 = vmul.f32 %v2042, %v2045
  %v2048 = vmul.f32 %v2029, %v1944
  %v2049 = vadd.f32 %v2047, %v2048
  %2051 = vrot.lane.b32.xlu0 %v2049, 112
  %v2052 = vpop.permute.xlu0 %2051
  %2054 = vst.msk [vmem:[%s1046] sm:$0xff] %vm51, %v2052
  %v2055 = vld [vmem:[#allocation2] sm:$0xff]
  %v2056 = vld [vmem:[#allocation2 + $0x8] sm:$0xff]
  %v2057 = vld [vmem:[#allocation2 + $0x10] sm:$0xff]
  %v2058 = vld [vmem:[#allocation2 + $0x18] sm:$0xff]
  %v2059 = vld [vmem:[#allocation2 + $0x20] sm:$0xff]
  %v2060 = vld [vmem:[#allocation2 + $0x28] sm:$0xff]
  %v2061 = vld [vmem:[#allocation2 + $0x30] sm:$0xff]
  %v2062 = vld [vmem:[#allocation2 + $0x38] sm:$0xff]
  %s2063 = scalar_lea.vmem %s2, 32
  %v2064 = vld [vmem:[%s2063] sm:$0xff]
  %v2065 = vld [vmem:[%s2063 + $0x8] sm:$0xff]
  %s2066 = scalar_lea.vmem %s4, 2
  %v2067 = vld [vmem:[%s2066] sm:$0x1]
  %v2069 = vlaneseq
  %v2070 = vshrl.u32 %v2069, 7
  %v2071 = vsub.s32 0, %v2070
  %v2072 = vrot.slane %v2067, %v2071
  %s2073 = scalar_lea.vmem %s1, 32
  %v2074 = vld [vmem:[%s2073] sm:$0xff]
  %v2075 = vld [vmem:[%s2073 + $0x8] sm:$0xff]
  %s2076 = scalar_lea.vmem %s3, 2
  %v2077 = vld [vmem:[%s2076] sm:$0x1]
  %v2079 = vlaneseq
  %v2080 = vshrl.u32 %v2079, 7
  %v2081 = vsub.s32 0, %v2080
  %v2082 = vrot.slane %v2077, %v2081
  %v2085 = vsel %vm51, %v2055, 0
  %v2088 = vsel %vm51, %v2056, 0
  %v2091 = vsel %vm51, %v2057, 0
  %v2094 = vsel %vm51, %v2058, 0
  %v2097 = vsel %vm51, %v2059, 0
  %v2100 = vsel %vm51, %v2060, 0
  %v2103 = vsel %vm51, %v2061, 0
  %v2106 = vsel %vm51, %v2062, 0
  %2108 = vmatprep.subr.mxu0 0.0
  %2109 = vmatpush1.msra.mxu0 %v2074
  %2110 = vmatprep.subr.mxu0 0.0
  %2111 = vmatpush1.msra.mxu0 %v2075
  %2112 = vmatprep.subr.mxu0 0.0
  %2113 = vmatpush1.msra.mxu0 0.0
  %2114 = vmatprep.subr.mxu0 0.0
  %2115 = vmatpush1.msra.mxu0 0.0
  %2116 = vmatprep.subr.mxu0 0.0
  %2117 = vmatpush1.msra.mxu0 0.0
  %2118 = vmatprep.subr.mxu0 0.0
  %2119 = vmatpush1.msra.mxu0 0.0
  %2120 = vmatprep.subr.mxu0 0.0
  %2121 = vmatpush1.msra.mxu0 0.0
  %2122 = vmatprep.subr.mxu0 0.0
  %2123 = vmatpush1.msra.mxu0 0.0
  %2124 = vmatprep.subr.mxu0 0.0
  %2125 = vmatpush1.msra.mxu0 0.0
  %2126 = vmatprep.subr.mxu0 0.0
  %2127 = vmatpush1.msra.mxu0 0.0
  %2128 = vmatprep.subr.mxu0 0.0
  %2129 = vmatpush1.msra.mxu0 0.0
  %2130 = vmatprep.subr.mxu0 0.0
  %2131 = vmatpush1.msra.mxu0 0.0
  %2132 = vmatprep.subr.mxu0 0.0
  %2133 = vmatpush1.msra.mxu0 0.0
  %2134 = vmatprep.subr.mxu0 0.0
  %2135 = vmatpush1.msra.mxu0 0.0
  %2136 = vmatprep.subr.mxu0 0.0
  %2137 = vmatpush1.msra.mxu0 0.0
  %2138 = vmatprep.subr.mxu0 0.0
  %2139 = vmatpush1.msra.mxu0 0.0
  %2140 = vmatprep.subr.mxu0 0.0
  %2141 = vmatpush1.msra.mxu0 0.0
  %2142 = vmatprep.subr.mxu0 0.0
  %2143 = vmatpush1.msra.mxu0 0.0
  %2144 = vmatprep.subr.mxu0 0.0
  %2145 = vmatpush1.msra.mxu0 0.0
  %2146 = vmatprep.subr.mxu0 0.0
  %2147 = vmatpush1.msra.mxu0 0.0
  %2148 = vmatprep.subr.mxu0 0.0
  %2149 = vmatpush1.msra.mxu0 0.0
  %2150 = vmatprep.subr.mxu0 0.0
  %2151 = vmatpush1.msra.mxu0 0.0
  %2152 = vmatprep.subr.mxu0 0.0
  %2153 = vmatpush1.msra.mxu0 0.0
  %2154 = vmatprep.subr.mxu0 0.0
  %2155 = vmatpush1.msra.mxu0 0.0
  %2156 = vmatprep.subr.mxu0 0.0
  %2157 = vmatpush1.msra.mxu0 0.0
  %2158 = vmatprep.subr.mxu0 0.0
  %2159 = vmatpush1.msra.mxu0 0.0
  %2160 = vmatprep.subr.mxu0 0.0
  %2161 = vmatpush1.msra.mxu0 0.0
  %2162 = vmatprep.subr.mxu0 0.0
  %2163 = vmatpush1.msra.mxu0 0.0
  %2164 = vmatprep.subr.mxu0 0.0
  %2165 = vmatpush1.msra.mxu0 0.0
  %2166 = vmatprep.subr.mxu0 0.0
  %2167 = vmatpush1.msra.mxu0 0.0
  %2168 = vmatprep.subr.mxu0 0.0
  %2169 = vmatpush1.msra.mxu0 0.0
  %2170 = vmatprep.subr.mxu0 0.0
  %2171 = vmatpush1.msra.mxu0 0.0
  %2172 = vmatprep.mubr.f32.mxu0 0.0
  %2173 = vmatmul.mubr.f32.gmra.mrb[0].mxu0 %v2085
  %v2174 = vpop.f32.mrb[0].mxu0
  %v2175 = vadd.f32 %v2082, %v2174
  %v2176 = vpop.f32.mrb[0].mxu0
  %2177 = vmatprep.mubr.f32.mxu0 0.0
  %2178 = vmatmul.mubr.f32.gmra.mrb[0].mxu0 %v2088
  %v2179 = vpop.f32.mrb[0].mxu0
  %v2180 = vadd.f32 %v2082, %v2179
  %v2181 = vpop.f32.mrb[0].mxu0
  %2182 = vmatprep.mubr.f32.mxu0 0.0
  %2183 = vmatmul.mubr.f32.gmra.mrb[0].mxu0 %v2091
  %v2184 = vpop.f32.mrb[0].mxu0
  %v2185 = vadd.f32 %v2082, %v2184
  %v2186 = vpop.f32.mrb[0].mxu0
  %2187 = vmatprep.mubr.f32.mxu0 0.0
  %2188 = vmatmul.mubr.f32.gmra.mrb[0].mxu0 %v2094
  %v2189 = vpop.f32.mrb[0].mxu0
  %v2190 = vadd.f32 %v2082, %v2189
  %v2191 = vpop.f32.mrb[0].mxu0
  %2192 = vmatprep.mubr.f32.mxu0 0.0
  %2193 = vmatmul.mubr.f32.gmra.mrb[0].mxu0 %v2097
  %v2194 = vpop.f32.mrb[0].mxu0
  %v2195 = vadd.f32 %v2082, %v2194
  %v2196 = vpop.f32.mrb[0].mxu0
  %2197 = vmatprep.mubr.f32.mxu0 0.0
  %2198 = vmatmul.mubr.f32.gmra.mrb[0].mxu0 %v2100
  %v2199 = vpop.f32.mrb[0].mxu0
  %v2200 = vadd.f32 %v2082, %v2199
  %v2201 = vpop.f32.mrb[0].mxu0
  %2202 = vmatprep.mubr.f32.mxu0 0.0
  %2203 = vmatmul.mubr.f32.gmra.mrb[0].mxu0 %v2103
  %v2204 = vpop.f32.mrb[0].mxu0
  %v2205 = vadd.f32 %v2082, %v2204
  %v2206 = vpop.f32.mrb[0].mxu0
  %2207 = vmatprep.mubr.f32.mxu0 0.0
  %2208 = vmatmul.mubr.f32.gmra.mrb[0].mxu0 %v2106
  %v2209 = vpop.f32.mrb[0].mxu0
  %v2210 = vadd.f32 %v2082, %v2209
  %v2211 = vpop.f32.mrb[0].mxu0
  %2212 = vdwg.mxu0
  %2213 = vst.msk [vmem:[#allocation3] sm:$0xff] %vm181, %v2175
  %2214 = vst.msk [vmem:[#allocation3 + $0x8] sm:$0xff] %vm181, %v2180
  %2215 = vst.msk [vmem:[#allocation3 + $0x10] sm:$0xff] %vm181, %v2185
  %2216 = vst.msk [vmem:[#allocation3 + $0x18] sm:$0xff] %vm181, %v2190
  %2217 = vst.msk [vmem:[#allocation3 + $0x20] sm:$0xff] %vm181, %v2195
  %2218 = vst.msk [vmem:[#allocation3 + $0x28] sm:$0xff] %vm181, %v2200
  %2219 = vst.msk [vmem:[#allocation3 + $0x30] sm:$0xff] %vm181, %v2205
  %2220 = vst.msk [vmem:[#allocation3 + $0x38] sm:$0xff] %vm181, %v2210
  %2221 = vmatprep.subr.mxu0 0.0
  %2222 = vmatpush1.msra.mxu0 %v2064
  %2223 = vmatprep.subr.mxu0 0.0
  %2224 = vmatpush1.msra.mxu0 %v2065
  %2225 = vmatprep.subr.mxu0 0.0
  %2226 = vmatpush1.msra.mxu0 0.0
  %2227 = vmatprep.subr.mxu0 0.0
  %2228 = vmatpush1.msra.mxu0 0.0
  %2229 = vmatprep.subr.mxu0 0.0
  %2230 = vmatpush1.msra.mxu0 0.0
  %2231 = vmatprep.subr.mxu0 0.0
  %2232 = vmatpush1.msra.mxu0 0.0
  %2233 = vmatprep.subr.mxu0 0.0
  %2234 = vmatpush1.msra.mxu0 0.0
  %2235 = vmatprep.subr.mxu0 0.0
  %2236 = vmatpush1.msra.mxu0 0.0
  %2237 = vmatprep.subr.mxu0 0.0
  %2238 = vmatpush1.msra.mxu0 0.0
  %2239 = vmatprep.subr.mxu0 0.0
  %2240 = vmatpush1.msra.mxu0 0.0
  %2241 = vmatprep.subr.mxu0 0.0
  %2242 = vmatpush1.msra.mxu0 0.0
  %2243 = vmatprep.subr.mxu0 0.0
  %2244 = vmatpush1.msra.mxu0 0.0
  %2245 = vmatprep.subr.mxu0 0.0
  %2246 = vmatpush1.msra.mxu0 0.0
  %2247 = vmatprep.subr.mxu0 0.0
  %2248 = vmatpush1.msra.mxu0 0.0
  %2249 = vmatprep.subr.mxu0 0.0
  %2250 = vmatpush1.msra.mxu0 0.0
  %2251 = vmatprep.subr.mxu0 0.0
  %2252 = vmatpush1.msra.mxu0 0.0
  %2253 = vmatprep.subr.mxu0 0.0
  %2254 = vmatpush1.msra.mxu0 0.0
  %2255 = vmatprep.subr.mxu0 0.0
  %2256 = vmatpush1.msra.mxu0 0.0
  %2257 = vmatprep.subr.mxu0 0.0
  %2258 = vmatpush1.msra.mxu0 0.0
  %2259 = vmatprep.subr.mxu0 0.0
  %2260 = vmatpush1.msra.mxu0 0.0
  %2261 = vmatprep.subr.mxu0 0.0
  %2262 = vmatpush1.msra.mxu0 0.0
  %2263 = vmatprep.subr.mxu0 0.0
  %2264 = vmatpush1.msra.mxu0 0.0
  %2265 = vmatprep.subr.mxu0 0.0
  %2266 = vmatpush1.msra.mxu0 0.0
  %2267 = vmatprep.subr.mxu0 0.0
  %2268 = vmatpush1.msra.mxu0 0.0
  %2269 = vmatprep.subr.mxu0 0.0
  %2270 = vmatpush1.msra.mxu0 0.0
  %2271 = vmatprep.subr.mxu0 0.0
  %2272 = vmatpush1.msra.mxu0 0.0
  %2273 = vmatprep.subr.mxu0 0.0
  %2274 = vmatpush1.msra.mxu0 0.0
  %2275 = vmatprep.subr.mxu0 0.0
  %2276 = vmatpush1.msra.mxu0 0.0
  %2277 = vmatprep.subr.mxu0 0.0
  %2278 = vmatpush1.msra.mxu0 0.0
  %2279 = vmatprep.subr.mxu0 0.0
  %2280 = vmatpush1.msra.mxu0 0.0
  %2281 = vmatprep.subr.mxu0 0.0
  %2282 = vmatpush1.msra.mxu0 0.0
  %2283 = vmatprep.subr.mxu0 0.0
  %2284 = vmatpush1.msra.mxu0 0.0
  %2285 = vmatprep.mubr.f32.mxu0 0.0
  %2286 = vmatmul.mubr.f32.gmra.mrb[0].mxu0 %v191
  %v2287 = vpop.f32.mrb[0].mxu0
  %v2288 = vadd.f32 0.0, %v2287
  %v2289 = vpop.f32.mrb[0].mxu0
  %2290 = vdwg.mxu0
  %v2291 = vld [vmem:[#allocation3] sm:$0xff]
  %v2292 = vadd.f32 %v2291, %v2288
  %v2293 = vxor.u32 %v2292, 2147483648
  %v2294 = vmul.f32 %v2293, 1.442695
  %v2295 = vpow.pop %v2294
  %v2296 = vadd.f32 %v2295, 1.0
  %v2297 = vrcp.pop %v2296
  %v2298 = vmul.f32 1.0, %v2297
  %2299 = vrot.lane.b32.xlu0 %v2072, 32
  %v2300 = vpop.permute.xlu0 %2299
  %v2302 = vadd.f32 %v2288, %v2300
  %2304 = vrot.lane.b32.xlu0 %v2302, 96
  %v2305 = vpop.permute.xlu0 %2304
  %v2307 = vmul.f32 %v2298, %v2305
  %2309 = vrot.lane.b32.xlu0 %v2307, 32
  %v2310 = vpop.permute.xlu0 %2309
  %v2312 = vadd.f32 %v2291, %v2310
  %v2313 = vtanh.pop %v2312
  %v2314 = vsub.f32 1.0, %v2298
  %2316 = vrot.lane.b32.xlu0 %v2313, 112
  %v2317 = vpop.permute.xlu0 %2316
  %v2319 = vmul.f32 %v2314, %v2317
  %v2320 = vmul.f32 %v2298, 0.0
  %v2321 = vadd.f32 %v2319, %v2320
  %2323 = vrot.lane.b32.xlu0 %v2321, 112
  %v2324 = vpop.permute.xlu0 %2323
  %2326 = vst.msk [vmem:[#allocation2] sm:$0xff] %vm51, %v2324
  %v2327 = vsel %vm51, %v2324, 0
  %2329 = vmatprep.subr.mxu0 0.0
  %2330 = vmatpush1.msra.mxu0 %v2064
  %2331 = vmatprep.subr.mxu0 0.0
  %2332 = vmatpush1.msra.mxu0 %v2065
  %2333 = vmatprep.subr.mxu0 0.0
  %2334 = vmatpush1.msra.mxu0 0.0
  %2335 = vmatprep.subr.mxu0 0.0
  %2336 = vmatpush1.msra.mxu0 0.0
  %2337 = vmatprep.subr.mxu0 0.0
  %2338 = vmatpush1.msra.mxu0 0.0
  %2339 = vmatprep.subr.mxu0 0.0
  %2340 = vmatpush1.msra.mxu0 0.0
  %2341 = vmatprep.subr.mxu0 0.0
  %2342 = vmatpush1.msra.mxu0 0.0
  %2343 = vmatprep.subr.mxu0 0.0
  %2344 = vmatpush1.msra.mxu0 0.0
  %2345 = vmatprep.subr.mxu0 0.0
  %2346 = vmatpush1.msra.mxu0 0.0
  %2347 = vmatprep.subr.mxu0 0.0
  %2348 = vmatpush1.msra.mxu0 0.0
  %2349 = vmatprep.subr.mxu0 0.0
  %2350 = vmatpush1.msra.mxu0 0.0
  %2351 = vmatprep.subr.mxu0 0.0
  %2352 = vmatpush1.msra.mxu0 0.0
  %2353 = vmatprep.subr.mxu0 0.0
  %2354 = vmatpush1.msra.mxu0 0.0
  %2355 = vmatprep.subr.mxu0 0.0
  %2356 = vmatpush1.msra.mxu0 0.0
  %2357 = vmatprep.subr.mxu0 0.0
  %2358 = vmatpush1.msra.mxu0 0.0
  %2359 = vmatprep.subr.mxu0 0.0
  %2360 = vmatpush1.msra.mxu0 0.0
  %2361 = vmatprep.subr.mxu0 0.0
  %2362 = vmatpush1.msra.mxu0 0.0
  %2363 = vmatprep.subr.mxu0 0.0
  %2364 = vmatpush1.msra.mxu0 0.0
  %2365 = vmatprep.subr.mxu0 0.0
  %2366 = vmatpush1.msra.mxu0 0.0
  %2367 = vmatprep.subr.mxu0 0.0
  %2368 = vmatpush1.msra.mxu0 0.0
  %2369 = vmatprep.subr.mxu0 0.0
  %2370 = vmatpush1.msra.mxu0 0.0
  %2371 = vmatprep.subr.mxu0 0.0
  %2372 = vmatpush1.msra.mxu0 0.0
  %2373 = vmatprep.subr.mxu0 0.0
  %2374 = vmatpush1.msra.mxu0 0.0
  %2375 = vmatprep.subr.mxu0 0.0
  %2376 = vmatpush1.msra.mxu0 0.0
  %2377 = vmatprep.subr.mxu0 0.0
  %2378 = vmatpush1.msra.mxu0 0.0
  %2379 = vmatprep.subr.mxu0 0.0
  %2380 = vmatpush1.msra.mxu0 0.0
  %2381 = vmatprep.subr.mxu0 0.0
  %2382 = vmatpush1.msra.mxu0 0.0
  %2383 = vmatprep.subr.mxu0 0.0
  %2384 = vmatpush1.msra.mxu0 0.0
  %2385 = vmatprep.subr.mxu0 0.0
  %2386 = vmatpush1.msra.mxu0 0.0
  %2387 = vmatprep.subr.mxu0 0.0
  %2388 = vmatpush1.msra.mxu0 0.0
  %2389 = vmatprep.subr.mxu0 0.0
  %2390 = vmatpush1.msra.mxu0 0.0
  %2391 = vmatprep.subr.mxu0 0.0
  %2392 = vmatpush1.msra.mxu0 0.0
  %2393 = vmatprep.mubr.f32.mxu0 0.0
  %2394 = vmatmul.mubr.f32.gmra.mrb[0].mxu0 %v2327
  %v2395 = vpop.f32.mrb[0].mxu0
  %v2396 = vadd.f32 0.0, %v2395
  %v2397 = vpop.f32.mrb[0].mxu0
  %2398 = vdwg.mxu0
  %v2399 = vld [vmem:[%s371] sm:$0xff]
  %v2400 = vadd.f32 %v2399, %v2396
  %v2401 = vxor.u32 %v2400, 2147483648
  %v2402 = vmul.f32 %v2401, 1.442695
  %v2403 = vpow.pop %v2402
  %v2404 = vadd.f32 %v2403, 1.0
  %v2405 = vrcp.pop %v2404
  %v2406 = vmul.f32 1.0, %v2405
  %v2407 = vadd.f32 %v2396, %v2300
  %2409 = vrot.lane.b32.xlu0 %v2407, 96
  %v2410 = vpop.permute.xlu0 %2409
  %v2412 = vmul.f32 %v2406, %v2410
  %2414 = vrot.lane.b32.xlu0 %v2412, 32
  %v2415 = vpop.permute.xlu0 %2414
  %v2417 = vadd.f32 %v2399, %v2415
  %v2418 = vtanh.pop %v2417
  %v2419 = vsub.f32 1.0, %v2406
  %2421 = vrot.lane.b32.xlu0 %v2418, 112
  %v2422 = vpop.permute.xlu0 %2421
  %v2424 = vmul.f32 %v2419, %v2422
  %v2425 = vmul.f32 %v2406, %v2321
  %v2426 = vadd.f32 %v2424, %v2425
  %2428 = vrot.lane.b32.xlu0 %v2426, 112
  %v2429 = vpop.permute.xlu0 %2428
  %2431 = vst.msk [vmem:[%s404] sm:$0xff] %vm51, %v2429
  %v2432 = vsel %vm51, %v2429, 0
  %2434 = vmatprep.subr.mxu0 0.0
  %2435 = vmatpush1.msra.mxu0 %v2064
  %2436 = vmatprep.subr.mxu0 0.0
  %2437 = vmatpush1.msra.mxu0 %v2065
  %2438 = vmatprep.subr.mxu0 0.0
  %2439 = vmatpush1.msra.mxu0 0.0
  %2440 = vmatprep.subr.mxu0 0.0
  %2441 = vmatpush1.msra.mxu0 0.0
  %2442 = vmatprep.subr.mxu0 0.0
  %2443 = vmatpush1.msra.mxu0 0.0
  %2444 = vmatprep.subr.mxu0 0.0
  %2445 = vmatpush1.msra.mxu0 0.0
  %2446 = vmatprep.subr.mxu0 0.0
  %2447 = vmatpush1.msra.mxu0 0.0
  %2448 = vmatprep.subr.mxu0 0.0
  %2449 = vmatpush1.msra.mxu0 0.0
  %2450 = vmatprep.subr.mxu0 0.0
  %2451 = vmatpush1.msra.mxu0 0.0
  %2452 = vmatprep.subr.mxu0 0.0
  %2453 = vmatpush1.msra.mxu0 0.0
  %2454 = vmatprep.subr.mxu0 0.0
  %2455 = vmatpush1.msra.mxu0 0.0
  %2456 = vmatprep.subr.mxu0 0.0
  %2457 = vmatpush1.msra.mxu0 0.0
  %2458 = vmatprep.subr.mxu0 0.0
  %2459 = vmatpush1.msra.mxu0 0.0
  %2460 = vmatprep.subr.mxu0 0.0
  %2461 = vmatpush1.msra.mxu0 0.0
  %2462 = vmatprep.subr.mxu0 0.0
  %2463 = vmatpush1.msra.mxu0 0.0
  %2464 = vmatprep.subr.mxu0 0.0
  %2465 = vmatpush1.msra.mxu0 0.0
  %2466 = vmatprep.subr.mxu0 0.0
  %2467 = vmatpush1.msra.mxu0 0.0
  %2468 = vmatprep.subr.mxu0 0.0
  %2469 = vmatpush1.msra.mxu0 0.0
  %2470 = vmatprep.subr.mxu0 0.0
  %2471 = vmatpush1.msra.mxu0 0.0
  %2472 = vmatprep.subr.mxu0 0.0
  %2473 = vmatpush1.msra.mxu0 0.0
  %2474 = vmatprep.subr.mxu0 0.0
  %2475 = vmatpush1.msra.mxu0 0.0
  %2476 = vmatprep.subr.mxu0 0.0
  %2477 = vmatpush1.msra.mxu0 0.0
  %2478 = vmatprep.subr.mxu0 0.0
  %2479 = vmatpush1.msra.mxu0 0.0
  %2480 = vmatprep.subr.mxu0 0.0
  %2481 = vmatpush1.msra.mxu0 0.0
  %2482 = vmatprep.subr.mxu0 0.0
  %2483 = vmatpush1.msra.mxu0 0.0
  %2484 = vmatprep.subr.mxu0 0.0
  %2485 = vmatpush1.msra.mxu0 0.0
  %2486 = vmatprep.subr.mxu0 0.0
  %2487 = vmatpush1.msra.mxu0 0.0
  %2488 = vmatprep.subr.mxu0 0.0
  %2489 = vmatpush1.msra.mxu0 0.0
  %2490 = vmatprep.subr.mxu0 0.0
  %2491 = vmatpush1.msra.mxu0 0.0
  %2492 = vmatprep.subr.mxu0 0.0
  %2493 = vmatpush1.msra.mxu0 0.0
  %2494 = vmatprep.subr.mxu0 0.0
  %2495 = vmatpush1.msra.mxu0 0.0
  %2496 = vmatprep.subr.mxu0 0.0
  %2497 = vmatpush1.msra.mxu0 0.0
  %2498 = vmatprep.mubr.f32.mxu0 0.0
  %2499 = vmatmul.mubr.f32.gmra.mrb[0].mxu0 %v2432
  %v2500 = vpop.f32.mrb[0].mxu0
  %v2501 = vadd.f32 0.0, %v2500
  %v2502 = vpop.f32.mrb[0].mxu0
  %2503 = vdwg.mxu0
  %v2504 = vld [vmem:[%s478] sm:$0xff]
  %v2505 = vadd.f32 %v2504, %v2501
  %v2506 = vxor.u32 %v2505, 2147483648
  %v2507 = vmul.f32 %v2506, 1.442695
  %v2508 = vpow.pop %v2507
  %v2509 = vadd.f32 %v2508, 1.0
  %v2510 = vrcp.pop %v2509
  %v2511 = vmul.f32 1.0, %v2510
  %v2512 = vadd.f32 %v2501, %v2300
  %2514 = vrot.lane.b32.xlu0 %v2512, 96
  %v2515 = vpop.permute.xlu0 %2514
  %v2517 = vmul.f32 %v2511, %v2515
  %2519 = vrot.lane.b32.xlu0 %v2517, 32
  %v2520 = vpop.permute.xlu0 %2519
  %v2522 = vadd.f32 %v2504, %v2520
  %v2523 = vtanh.pop %v2522
  %v2524 = vsub.f32 1.0, %v2511
  %2526 = vrot.lane.b32.xlu0 %v2523, 112
  %v2527 = vpop.permute.xlu0 %2526
  %v2529 = vmul.f32 %v2524, %v2527
  %v2530 = vmul.f32 %v2511, %v2426
  %v2531 = vadd.f32 %v2529, %v2530
  %2533 = vrot.lane.b32.xlu0 %v2531, 112
  %v2534 = vpop.permute.xlu0 %2533
  %2536 = vst.msk [vmem:[%s511] sm:$0xff] %vm51, %v2534
  %v2537 = vsel %vm51, %v2534, 0
  %2539 = vmatprep.subr.mxu0 0.0
  %2540 = vmatpush1.msra.mxu0 %v2064
  %2541 = vmatprep.subr.mxu0 0.0
  %2542 = vmatpush1.msra.mxu0 %v2065
  %2543 = vmatprep.subr.mxu0 0.0
  %2544 = vmatpush1.msra.mxu0 0.0
  %2545 = vmatprep.subr.mxu0 0.0
  %2546 = vmatpush1.msra.mxu0 0.0
  %2547 = vmatprep.subr.mxu0 0.0
  %2548 = vmatpush1.msra.mxu0 0.0
  %2549 = vmatprep.subr.mxu0 0.0
  %2550 = vmatpush1.msra.mxu0 0.0
  %2551 = vmatprep.subr.mxu0 0.0
  %2552 = vmatpush1.msra.mxu0 0.0
  %2553 = vmatprep.subr.mxu0 0.0
  %2554 = vmatpush1.msra.mxu0 0.0
  %2555 = vmatprep.subr.mxu0 0.0
  %2556 = vmatpush1.msra.mxu0 0.0
  %2557 = vmatprep.subr.mxu0 0.0
  %2558 = vmatpush1.msra.mxu0 0.0
  %2559 = vmatprep.subr.mxu0 0.0
  %2560 = vmatpush1.msra.mxu0 0.0
  %2561 = vmatprep.subr.mxu0 0.0
  %2562 = vmatpush1.msra.mxu0 0.0
  %2563 = vmatprep.subr.mxu0 0.0
  %2564 = vmatpush1.msra.mxu0 0.0
  %2565 = vmatprep.subr.mxu0 0.0
  %2566 = vmatpush1.msra.mxu0 0.0
  %2567 = vmatprep.subr.mxu0 0.0
  %2568 = vmatpush1.msra.mxu0 0.0
  %2569 = vmatprep.subr.mxu0 0.0
  %2570 = vmatpush1.msra.mxu0 0.0
  %2571 = vmatprep.subr.mxu0 0.0
  %2572 = vmatpush1.msra.mxu0 0.0
  %2573 = vmatprep.subr.mxu0 0.0
  %2574 = vmatpush1.msra.mxu0 0.0
  %2575 = vmatprep.subr.mxu0 0.0
  %2576 = vmatpush1.msra.mxu0 0.0
  %2577 = vmatprep.subr.mxu0 0.0
  %2578 = vmatpush1.msra.mxu0 0.0
  %2579 = vmatprep.subr.mxu0 0.0
  %2580 = vmatpush1.msra.mxu0 0.0
  %2581 = vmatprep.subr.mxu0 0.0
  %2582 = vmatpush1.msra.mxu0 0.0
  %2583 = vmatprep.subr.mxu0 0.0
  %2584 = vmatpush1.msra.mxu0 0.0
  %2585 = vmatprep.subr.mxu0 0.0
  %2586 = vmatpush1.msra.mxu0 0.0
  %2587 = vmatprep.subr.mxu0 0.0
  %2588 = vmatpush1.msra.mxu0 0.0
  %2589 = vmatprep.subr.mxu0 0.0
  %2590 = vmatpush1.msra.mxu0 0.0
  %2591 = vmatprep.subr.mxu0 0.0
  %2592 = vmatpush1.msra.mxu0 0.0
  %2593 = vmatprep.subr.mxu0 0.0
  %2594 = vmatpush1.msra.mxu0 0.0
  %2595 = vmatprep.subr.mxu0 0.0
  %2596 = vmatpush1.msra.mxu0 0.0
  %2597 = vmatprep.subr.mxu0 0.0
  %2598 = vmatpush1.msra.mxu0 0.0
  %2599 = vmatprep.subr.mxu0 0.0
  %2600 = vmatpush1.msra.mxu0 0.0
  %2601 = vmatprep.subr.mxu0 0.0
  %2602 = vmatpush1.msra.mxu0 0.0
  %2603 = vmatprep.mubr.f32.mxu0 0.0
  %2604 = vmatmul.mubr.f32.gmra.mrb[0].mxu0 %v2537
  %v2605 = vpop.f32.mrb[0].mxu0
  %v2606 = vadd.f32 0.0, %v2605
  %v2607 = vpop.f32.mrb[0].mxu0
  %2608 = vdwg.mxu0
  %v2609 = vld [vmem:[%s585] sm:$0xff]
  %v2610 = vadd.f32 %v2609, %v2606
  %v2611 = vxor.u32 %v2610, 2147483648
  %v2612 = vmul.f32 %v2611, 1.442695
  %v2613 = vpow.pop %v2612
  %v2614 = vadd.f32 %v2613, 1.0
  %v2615 = vrcp.pop %v2614
  %v2616 = vmul.f32 1.0, %v2615
  %v2617 = vadd.f32 %v2606, %v2300
  %2619 = vrot.lane.b32.xlu0 %v2617, 96
  %v2620 = vpop.permute.xlu0 %2619
  %v2622 = vmul.f32 %v2616, %v2620
  %2624 = vrot.lane.b32.xlu0 %v2622, 32
  %v2625 = vpop.permute.xlu0 %2624
  %v2627 = vadd.f32 %v2609, %v2625
  %v2628 = vtanh.pop %v2627
  %v2629 = vsub.f32 1.0, %v2616
  %2631 = vrot.lane.b32.xlu0 %v2628, 112
  %v2632 = vpop.permute.xlu0 %2631
  %v2634 = vmul.f32 %v2629, %v2632
  %v2635 = vmul.f32 %v2616, %v2531
  %v2636 = vadd.f32 %v2634, %v2635
  %2638 = vrot.lane.b32.xlu0 %v2636, 112
  %v2639 = vpop.permute.xlu0 %2638
  %2641 = vst.msk [vmem:[%s618] sm:$0xff] %vm51, %v2639
  %v2642 = vsel %vm51, %v2639, 0
  %2644 = vmatprep.subr.mxu0 0.0
  %2645 = vmatpush1.msra.mxu0 %v2064
  %2646 = vmatprep.subr.mxu0 0.0
  %2647 = vmatpush1.msra.mxu0 %v2065
  %2648 = vmatprep.subr.mxu0 0.0
  %2649 = vmatpush1.msra.mxu0 0.0
  %2650 = vmatprep.subr.mxu0 0.0
  %2651 = vmatpush1.msra.mxu0 0.0
  %2652 = vmatprep.subr.mxu0 0.0
  %2653 = vmatpush1.msra.mxu0 0.0
  %2654 = vmatprep.subr.mxu0 0.0
  %2655 = vmatpush1.msra.mxu0 0.0
  %2656 = vmatprep.subr.mxu0 0.0
  %2657 = vmatpush1.msra.mxu0 0.0
  %2658 = vmatprep.subr.mxu0 0.0
  %2659 = vmatpush1.msra.mxu0 0.0
  %2660 = vmatprep.subr.mxu0 0.0
  %2661 = vmatpush1.msra.mxu0 0.0
  %2662 = vmatprep.subr.mxu0 0.0
  %2663 = vmatpush1.msra.mxu0 0.0
  %2664 = vmatprep.subr.mxu0 0.0
  %2665 = vmatpush1.msra.mxu0 0.0
  %2666 = vmatprep.subr.mxu0 0.0
  %2667 = vmatpush1.msra.mxu0 0.0
  %2668 = vmatprep.subr.mxu0 0.0
  %2669 = vmatpush1.msra.mxu0 0.0
  %2670 = vmatprep.subr.mxu0 0.0
  %2671 = vmatpush1.msra.mxu0 0.0
  %2672 = vmatprep.subr.mxu0 0.0
  %2673 = vmatpush1.msra.mxu0 0.0
  %2674 = vmatprep.subr.mxu0 0.0
  %2675 = vmatpush1.msra.mxu0 0.0
  %2676 = vmatprep.subr.mxu0 0.0
  %2677 = vmatpush1.msra.mxu0 0.0
  %2678 = vmatprep.subr.mxu0 0.0
  %2679 = vmatpush1.msra.mxu0 0.0
  %2680 = vmatprep.subr.mxu0 0.0
  %2681 = vmatpush1.msra.mxu0 0.0
  %2682 = vmatprep.subr.mxu0 0.0
  %2683 = vmatpush1.msra.mxu0 0.0
  %2684 = vmatprep.subr.mxu0 0.0
  %2685 = vmatpush1.msra.mxu0 0.0
  %2686 = vmatprep.subr.mxu0 0.0
  %2687 = vmatpush1.msra.mxu0 0.0
  %2688 = vmatprep.subr.mxu0 0.0
  %2689 = vmatpush1.msra.mxu0 0.0
  %2690 = vmatprep.subr.mxu0 0.0
  %2691 = vmatpush1.msra.mxu0 0.0
  %2692 = vmatprep.subr.mxu0 0.0
  %2693 = vmatpush1.msra.mxu0 0.0
  %2694 = vmatprep.subr.mxu0 0.0
  %2695 = vmatpush1.msra.mxu0 0.0
  %2696 = vmatprep.subr.mxu0 0.0
  %2697 = vmatpush1.msra.mxu0 0.0
  %2698 = vmatprep.subr.mxu0 0.0
  %2699 = vmatpush1.msra.mxu0 0.0
  %2700 = vmatprep.subr.mxu0 0.0
  %2701 = vmatpush1.msra.mxu0 0.0
  %2702 = vmatprep.subr.mxu0 0.0
  %2703 = vmatpush1.msra.mxu0 0.0
  %2704 = vmatprep.subr.mxu0 0.0
  %2705 = vmatpush1.msra.mxu0 0.0
  %2706 = vmatprep.subr.mxu0 0.0
  %2707 = vmatpush1.msra.mxu0 0.0
  %2708 = vmatprep.mubr.f32.mxu0 0.0
  %2709 = vmatmul.mubr.f32.gmra.mrb[0].mxu0 %v2642
  %v2710 = vpop.f32.mrb[0].mxu0
  %v2711 = vadd.f32 0.0, %v2710
  %v2712 = vpop.f32.mrb[0].mxu0
  %2713 = vdwg.mxu0
  %v2714 = vld [vmem:[%s692] sm:$0xff]
  %v2715 = vadd.f32 %v2714, %v2711
  %v2716 = vxor.u32 %v2715, 2147483648
  %v2717 = vmul.f32 %v2716, 1.442695
  %v2718 = vpow.pop %v2717
  %v2719 = vadd.f32 %v2718, 1.0
  %v2720 = vrcp.pop %v2719
  %v2721 = vmul.f32 1.0, %v2720
  %v2722 = vadd.f32 %v2711, %v2300
  %2724 = vrot.lane.b32.xlu0 %v2722, 96
  %v2725 = vpop.permute.xlu0 %2724
  %v2727 = vmul.f32 %v2721, %v2725
  %2729 = vrot.lane.b32.xlu0 %v2727, 32
  %v2730 = vpop.permute.xlu0 %2729
  %v2732 = vadd.f32 %v2714, %v2730
  %v2733 = vtanh.pop %v2732
  %v2734 = vsub.f32 1.0, %v2721
  %2736 = vrot.lane.b32.xlu0 %v2733, 112
  %v2737 = vpop.permute.xlu0 %2736
  %v2739 = vmul.f32 %v2734, %v2737
  %v2740 = vmul.f32 %v2721, %v2636
  %v2741 = vadd.f32 %v2739, %v2740
  %2743 = vrot.lane.b32.xlu0 %v2741, 112
  %v2744 = vpop.permute.xlu0 %2743
  %2746 = vst.msk [vmem:[%s725] sm:$0xff] %vm51, %v2744
  %v2747 = vsel %vm51, %v2744, 0
  %2749 = vmatprep.subr.mxu0 0.0
  %2750 = vmatpush1.msra.mxu0 %v2064
  %2751 = vmatprep.subr.mxu0 0.0
  %2752 = vmatpush1.msra.mxu0 %v2065
  %2753 = vmatprep.subr.mxu0 0.0
  %2754 = vmatpush1.msra.mxu0 0.0
  %2755 = vmatprep.subr.mxu0 0.0
  %2756 = vmatpush1.msra.mxu0 0.0
  %2757 = vmatprep.subr.mxu0 0.0
  %2758 = vmatpush1.msra.mxu0 0.0
  %2759 = vmatprep.subr.mxu0 0.0
  %2760 = vmatpush1.msra.mxu0 0.0
  %2761 = vmatprep.subr.mxu0 0.0
  %2762 = vmatpush1.msra.mxu0 0.0
  %2763 = vmatprep.subr.mxu0 0.0
  %2764 = vmatpush1.msra.mxu0 0.0
  %2765 = vmatprep.subr.mxu0 0.0
  %2766 = vmatpush1.msra.mxu0 0.0
  %2767 = vmatprep.subr.mxu0 0.0
  %2768 = vmatpush1.msra.mxu0 0.0
  %2769 = vmatprep.subr.mxu0 0.0
  %2770 = vmatpush1.msra.mxu0 0.0
  %2771 = vmatprep.subr.mxu0 0.0
  %2772 = vmatpush1.msra.mxu0 0.0
  %2773 = vmatprep.subr.mxu0 0.0
  %2774 = vmatpush1.msra.mxu0 0.0
  %2775 = vmatprep.subr.mxu0 0.0
  %2776 = vmatpush1.msra.mxu0 0.0
  %2777 = vmatprep.subr.mxu0 0.0
  %2778 = vmatpush1.msra.mxu0 0.0
  %2779 = vmatprep.subr.mxu0 0.0
  %2780 = vmatpush1.msra.mxu0 0.0
  %2781 = vmatprep.subr.mxu0 0.0
  %2782 = vmatpush1.msra.mxu0 0.0
  %2783 = vmatprep.subr.mxu0 0.0
  %2784 = vmatpush1.msra.mxu0 0.0
  %2785 = vmatprep.subr.mxu0 0.0
  %2786 = vmatpush1.msra.mxu0 0.0
  %2787 = vmatprep.subr.mxu0 0.0
  %2788 = vmatpush1.msra.mxu0 0.0
  %2789 = vmatprep.subr.mxu0 0.0
  %2790 = vmatpush1.msra.mxu0 0.0
  %2791 = vmatprep.subr.mxu0 0.0
  %2792 = vmatpush1.msra.mxu0 0.0
  %2793 = vmatprep.subr.mxu0 0.0
  %2794 = vmatpush1.msra.mxu0 0.0
  %2795 = vmatprep.subr.mxu0 0.0
  %2796 = vmatpush1.msra.mxu0 0.0
  %2797 = vmatprep.subr.mxu0 0.0
  %2798 = vmatpush1.msra.mxu0 0.0
  %2799 = vmatprep.subr.mxu0 0.0
  %2800 = vmatpush1.msra.mxu0 0.0
  %2801 = vmatprep.subr.mxu0 0.0
  %2802 = vmatpush1.msra.mxu0 0.0
  %2803 = vmatprep.subr.mxu0 0.0
  %2804 = vmatpush1.msra.mxu0 0.0
  %2805 = vmatprep.subr.mxu0 0.0
  %2806 = vmatpush1.msra.mxu0 0.0
  %2807 = vmatprep.subr.mxu0 0.0
  %2808 = vmatpush1.msra.mxu0 0.0
  %2809 = vmatprep.subr.mxu0 0.0
  %2810 = vmatpush1.msra.mxu0 0.0
  %2811 = vmatprep.subr.mxu0 0.0
  %2812 = vmatpush1.msra.mxu0 0.0
  %2813 = vmatprep.mubr.f32.mxu0 0.0
  %2814 = vmatmul.mubr.f32.gmra.mrb[0].mxu0 %v2747
  %v2815 = vpop.f32.mrb[0].mxu0
  %v2816 = vadd.f32 0.0, %v2815
  %v2817 = vpop.f32.mrb[0].mxu0
  %2818 = vdwg.mxu0
  %v2819 = vld [vmem:[%s799] sm:$0xff]
  %v2820 = vadd.f32 %v2819, %v2816
  %v2821 = vxor.u32 %v2820, 2147483648
  %v2822 = vmul.f32 %v2821, 1.442695
  %v2823 = vpow.pop %v2822
  %v2824 = vadd.f32 %v2823, 1.0
  %v2825 = vrcp.pop %v2824
  %v2826 = vmul.f32 1.0, %v2825
  %v2827 = vadd.f32 %v2816, %v2300
  %2829 = vrot.lane.b32.xlu0 %v2827, 96
  %v2830 = vpop.permute.xlu0 %2829
  %v2832 = vmul.f32 %v2826, %v2830
  %2834 = vrot.lane.b32.xlu0 %v2832, 32
  %v2835 = vpop.permute.xlu0 %2834
  %v2837 = vadd.f32 %v2819, %v2835
  %v2838 = vtanh.pop %v2837
  %v2839 = vsub.f32 1.0, %v2826
  %2841 = vrot.lane.b32.xlu0 %v2838, 112
  %v2842 = vpop.permute.xlu0 %2841
  %v2844 = vmul.f32 %v2839, %v2842
  %v2845 = vmul.f32 %v2826, %v2741
  %v2846 = vadd.f32 %v2844, %v2845
  %2848 = vrot.lane.b32.xlu0 %v2846, 112
  %v2849 = vpop.permute.xlu0 %2848
  %2851 = vst.msk [vmem:[%s832] sm:$0xff] %vm51, %v2849
  %v2852 = vsel %vm51, %v2849, 0
  %2854 = vmatprep.subr.mxu0 0.0
  %2855 = vmatpush1.msra.mxu0 %v2064
  %2856 = vmatprep.subr.mxu0 0.0
  %2857 = vmatpush1.msra.mxu0 %v2065
  %2858 = vmatprep.subr.mxu0 0.0
  %2859 = vmatpush1.msra.mxu0 0.0
  %2860 = vmatprep.subr.mxu0 0.0
  %2861 = vmatpush1.msra.mxu0 0.0
  %2862 = vmatprep.subr.mxu0 0.0
  %2863 = vmatpush1.msra.mxu0 0.0
  %2864 = vmatprep.subr.mxu0 0.0
  %2865 = vmatpush1.msra.mxu0 0.0
  %2866 = vmatprep.subr.mxu0 0.0
  %2867 = vmatpush1.msra.mxu0 0.0
  %2868 = vmatprep.subr.mxu0 0.0
  %2869 = vmatpush1.msra.mxu0 0.0
  %2870 = vmatprep.subr.mxu0 0.0
  %2871 = vmatpush1.msra.mxu0 0.0
  %2872 = vmatprep.subr.mxu0 0.0
  %2873 = vmatpush1.msra.mxu0 0.0
  %2874 = vmatprep.subr.mxu0 0.0
  %2875 = vmatpush1.msra.mxu0 0.0
  %2876 = vmatprep.subr.mxu0 0.0
  %2877 = vmatpush1.msra.mxu0 0.0
  %2878 = vmatprep.subr.mxu0 0.0
  %2879 = vmatpush1.msra.mxu0 0.0
  %2880 = vmatprep.subr.mxu0 0.0
  %2881 = vmatpush1.msra.mxu0 0.0
  %2882 = vmatprep.subr.mxu0 0.0
  %2883 = vmatpush1.msra.mxu0 0.0
  %2884 = vmatprep.subr.mxu0 0.0
  %2885 = vmatpush1.msra.mxu0 0.0
  %2886 = vmatprep.subr.mxu0 0.0
  %2887 = vmatpush1.msra.mxu0 0.0
  %2888 = vmatprep.subr.mxu0 0.0
  %2889 = vmatpush1.msra.mxu0 0.0
  %2890 = vmatprep.subr.mxu0 0.0
  %2891 = vmatpush1.msra.mxu0 0.0
  %2892 = vmatprep.subr.mxu0 0.0
  %2893 = vmatpush1.msra.mxu0 0.0
  %2894 = vmatprep.subr.mxu0 0.0
  %2895 = vmatpush1.msra.mxu0 0.0
  %2896 = vmatprep.subr.mxu0 0.0
  %2897 = vmatpush1.msra.mxu0 0.0
  %2898 = vmatprep.subr.mxu0 0.0
  %2899 = vmatpush1.msra.mxu0 0.0
  %2900 = vmatprep.subr.mxu0 0.0
  %2901 = vmatpush1.msra.mxu0 0.0
  %2902 = vmatprep.subr.mxu0 0.0
  %2903 = vmatpush1.msra.mxu0 0.0
  %2904 = vmatprep.subr.mxu0 0.0
  %2905 = vmatpush1.msra.mxu0 0.0
  %2906 = vmatprep.subr.mxu0 0.0
  %2907 = vmatpush1.msra.mxu0 0.0
  %2908 = vmatprep.subr.mxu0 0.0
  %2909 = vmatpush1.msra.mxu0 0.0
  %2910 = vmatprep.subr.mxu0 0.0
  %2911 = vmatpush1.msra.mxu0 0.0
  %2912 = vmatprep.subr.mxu0 0.0
  %2913 = vmatpush1.msra.mxu0 0.0
  %2914 = vmatprep.subr.mxu0 0.0
  %2915 = vmatpush1.msra.mxu0 0.0
  %2916 = vmatprep.subr.mxu0 0.0
  %2917 = vmatpush1.msra.mxu0 0.0
  %2918 = vmatprep.mubr.f32.mxu0 0.0
  %2919 = vmatmul.mubr.f32.gmra.mrb[0].mxu0 %v2852
  %v2920 = vpop.f32.mrb[0].mxu0
  %v2921 = vadd.f32 0.0, %v2920
  %v2922 = vpop.f32.mrb[0].mxu0
  %2923 = vdwg.mxu0
  %v2924 = vld [vmem:[%s906] sm:$0xff]
  %v2925 = vadd.f32 %v2924, %v2921
  %v2926 = vxor.u32 %v2925, 2147483648
  %v2927 = vmul.f32 %v2926, 1.442695
  %v2928 = vpow.pop %v2927
  %v2929 = vadd.f32 %v2928, 1.0
  %v2930 = vrcp.pop %v2929
  %v2931 = vmul.f32 1.0, %v2930
  %v2932 = vadd.f32 %v2921, %v2300
  %2934 = vrot.lane.b32.xlu0 %v2932, 96
  %v2935 = vpop.permute.xlu0 %2934
  %v2937 = vmul.f32 %v2931, %v2935
  %2939 = vrot.lane.b32.xlu0 %v2937, 32
  %v2940 = vpop.permute.xlu0 %2939
  %v2942 = vadd.f32 %v2924, %v2940
  %v2943 = vtanh.pop %v2942
  %v2944 = vsub.f32 1.0, %v2931
  %2946 = vrot.lane.b32.xlu0 %v2943, 112
  %v2947 = vpop.permute.xlu0 %2946
  %v2949 = vmul.f32 %v2944, %v2947
  %v2950 = vmul.f32 %v2931, %v2846
  %v2951 = vadd.f32 %v2949, %v2950
  %2953 = vrot.lane.b32.xlu0 %v2951, 112
  %v2954 = vpop.permute.xlu0 %2953
  %2956 = vst.msk [vmem:[%s939] sm:$0xff] %vm51, %v2954
  %v2957 = vsel %vm51, %v2954, 0
  %2959 = vmatprep.subr.mxu0 0.0
  %2960 = vmatpush1.msra.mxu0 %v2064
  %2961 = vmatprep.subr.mxu0 0.0
  %2962 = vmatpush1.msra.mxu0 %v2065
  %2963 = vmatprep.subr.mxu0 0.0
  %2964 = vmatpush1.msra.mxu0 0.0
  %2965 = vmatprep.subr.mxu0 0.0
  %2966 = vmatpush1.msra.mxu0 0.0
  %2967 = vmatprep.subr.mxu0 0.0
  %2968 = vmatpush1.msra.mxu0 0.0
  %2969 = vmatprep.subr.mxu0 0.0
  %2970 = vmatpush1.msra.mxu0 0.0
  %2971 = vmatprep.subr.mxu0 0.0
  %2972 = vmatpush1.msra.mxu0 0.0
  %2973 = vmatprep.subr.mxu0 0.0
  %2974 = vmatpush1.msra.mxu0 0.0
  %2975 = vmatprep.subr.mxu0 0.0
  %2976 = vmatpush1.msra.mxu0 0.0
  %2977 = vmatprep.subr.mxu0 0.0
  %2978 = vmatpush1.msra.mxu0 0.0
  %2979 = vmatprep.subr.mxu0 0.0
  %2980 = vmatpush1.msra.mxu0 0.0
  %2981 = vmatprep.subr.mxu0 0.0
  %2982 = vmatpush1.msra.mxu0 0.0
  %2983 = vmatprep.subr.mxu0 0.0
  %2984 = vmatpush1.msra.mxu0 0.0
  %2985 = vmatprep.subr.mxu0 0.0
  %2986 = vmatpush1.msra.mxu0 0.0
  %2987 = vmatprep.subr.mxu0 0.0
  %2988 = vmatpush1.msra.mxu0 0.0
  %2989 = vmatprep.subr.mxu0 0.0
  %2990 = vmatpush1.msra.mxu0 0.0
  %2991 = vmatprep.subr.mxu0 0.0
  %2992 = vmatpush1.msra.mxu0 0.0
  %2993 = vmatprep.subr.mxu0 0.0
  %2994 = vmatpush1.msra.mxu0 0.0
  %2995 = vmatprep.subr.mxu0 0.0
  %2996 = vmatpush1.msra.mxu0 0.0
  %2997 = vmatprep.subr.mxu0 0.0
  %2998 = vmatpush1.msra.mxu0 0.0
  %2999 = vmatprep.subr.mxu0 0.0
  %3000 = vmatpush1.msra.mxu0 0.0
  %3001 = vmatprep.subr.mxu0 0.0
  %3002 = vmatpush1.msra.mxu0 0.0
  %3003 = vmatprep.subr.mxu0 0.0
  %3004 = vmatpush1.msra.mxu0 0.0
  %3005 = vmatprep.subr.mxu0 0.0
  %3006 = vmatpush1.msra.mxu0 0.0
  %3007 = vmatprep.subr.mxu0 0.0
  %3008 = vmatpush1.msra.mxu0 0.0
  %3009 = vmatprep.subr.mxu0 0.0
  %3010 = vmatpush1.msra.mxu0 0.0
  %3011 = vmatprep.subr.mxu0 0.0
  %3012 = vmatpush1.msra.mxu0 0.0
  %3013 = vmatprep.subr.mxu0 0.0
  %3014 = vmatpush1.msra.mxu0 0.0
  %3015 = vmatprep.subr.mxu0 0.0
  %3016 = vmatpush1.msra.mxu0 0.0
  %3017 = vmatprep.subr.mxu0 0.0
  %3018 = vmatpush1.msra.mxu0 0.0
  %3019 = vmatprep.subr.mxu0 0.0
  %3020 = vmatpush1.msra.mxu0 0.0
  %3021 = vmatprep.subr.mxu0 0.0
  %3022 = vmatpush1.msra.mxu0 0.0
  %3023 = vmatprep.mubr.f32.mxu0 0.0
  %3024 = vmatmul.mubr.f32.gmra.mrb[0].mxu0 %v2957
  %v3025 = vpop.f32.mrb[0].mxu0
  %v3026 = vadd.f32 0.0, %v3025
  %v3027 = vpop.f32.mrb[0].mxu0
  %3028 = vdwg.mxu0
  %v3029 = vld [vmem:[%s1013] sm:$0xff]
  %v3030 = vadd.f32 %v3029, %v3026
  %v3031 = vxor.u32 %v3030, 2147483648
  %v3032 = vmul.f32 %v3031, 1.442695
  %v3033 = vpow.pop %v3032
  %v3034 = vadd.f32 %v3033, 1.0
  %v3035 = vrcp.pop %v3034
  %v3036 = vmul.f32 1.0, %v3035
  %v3037 = vadd.f32 %v3026, %v2300
  %3039 = vrot.lane.b32.xlu0 %v3037, 96
  %v3040 = vpop.permute.xlu0 %3039
  %v3042 = vmul.f32 %v3036, %v3040
  %3044 = vrot.lane.b32.xlu0 %v3042, 32
  %v3045 = vpop.permute.xlu0 %3044
  %v3047 = vadd.f32 %v3029, %v3045
  %v3048 = vtanh.pop %v3047
  %v3049 = vsub.f32 1.0, %v3036
  %3051 = vrot.lane.b32.xlu0 %v3048, 112
  %v3052 = vpop.permute.xlu0 %3051
  %v3054 = vmul.f32 %v3049, %v3052
  %v3055 = vmul.f32 %v3036, %v2951
  %v3056 = vadd.f32 %v3054, %v3055
  %3058 = vrot.lane.b32.xlu0 %v3056, 112
  %v3059 = vpop.permute.xlu0 %3058
  %3061 = vst.msk [vmem:[%s1046] sm:$0xff] %vm51, %v3059
  %v3062 = vld [vmem:[#allocation2] sm:$0xff]
  %v3063 = vld [vmem:[#allocation2 + $0x8] sm:$0xff]
  %v3064 = vld [vmem:[#allocation2 + $0x10] sm:$0xff]
  %v3065 = vld [vmem:[#allocation2 + $0x18] sm:$0xff]
  %v3066 = vld [vmem:[#allocation2 + $0x20] sm:$0xff]
  %v3067 = vld [vmem:[#allocation2 + $0x28] sm:$0xff]
  %v3068 = vld [vmem:[#allocation2 + $0x30] sm:$0xff]
  %v3069 = vld [vmem:[#allocation2 + $0x38] sm:$0xff]
  %s3070 = scalar_lea.vmem %s2, 48
  %v3071 = vld [vmem:[%s3070] sm:$0xff]
  %v3072 = vld [vmem:[%s3070 + $0x8] sm:$0xff]
  %s3073 = scalar_lea.vmem %s4, 3
  %v3074 = vld [vmem:[%s3073] sm:$0x1]
  %v3076 = vlaneseq
  %v3077 = vshrl.u32 %v3076, 7
  %v3078 = vsub.s32 0, %v3077
  %v3079 = vrot.slane %v3074, %v3078
  %s3080 = scalar_lea.vmem %s1, 48
  %v3081 = vld [vmem:[%s3080] sm:$0xff]
  %v3082 = vld [vmem:[%s3080 + $0x8] sm:$0xff]
  %s3083 = scalar_lea.vmem %s3, 3
  %v3084 = vld [vmem:[%s3083] sm:$0x1]
  %v3086 = vlaneseq
  %v3087 = vshrl.u32 %v3086, 7
  %v3088 = vsub.s32 0, %v3087
  %v3089 = vrot.slane %v3084, %v3088
  %v3092 = vsel %vm51, %v3062, 0
  %v3095 = vsel %vm51, %v3063, 0
  %v3098 = vsel %vm51, %v3064, 0
  %v3101 = vsel %vm51, %v3065, 0
  %v3104 = vsel %vm51, %v3066, 0
  %v3107 = vsel %vm51, %v3067, 0
  %v3110 = vsel %vm51, %v3068, 0
  %v3113 = vsel %vm51, %v3069, 0
  %3115 = vmatprep.subr.mxu0 0.0
  %3116 = vmatpush1.msra.mxu0 %v3081
  %3117 = vmatprep.subr.mxu0 0.0
  %3118 = vmatpush1.msra.mxu0 %v3082
  %3119 = vmatprep.subr.mxu0 0.0
  %3120 = vmatpush1.msra.mxu0 0.0
  %3121 = vmatprep.subr.mxu0 0.0
  %3122 = vmatpush1.msra.mxu0 0.0
  %3123 = vmatprep.subr.mxu0 0.0
  %3124 = vmatpush1.msra.mxu0 0.0
  %3125 = vmatprep.subr.mxu0 0.0
  %3126 = vmatpush1.msra.mxu0 0.0
  %3127 = vmatprep.subr.mxu0 0.0
  %3128 = vmatpush1.msra.mxu0 0.0
  %3129 = vmatprep.subr.mxu0 0.0
  %3130 = vmatpush1.msra.mxu0 0.0
  %3131 = vmatprep.subr.mxu0 0.0
  %3132 = vmatpush1.msra.mxu0 0.0
  %3133 = vmatprep.subr.mxu0 0.0
  %3134 = vmatpush1.msra.mxu0 0.0
  %3135 = vmatprep.subr.mxu0 0.0
  %3136 = vmatpush1.msra.mxu0 0.0
  %3137 = vmatprep.subr.mxu0 0.0
  %3138 = vmatpush1.msra.mxu0 0.0
  %3139 = vmatprep.subr.mxu0 0.0
  %3140 = vmatpush1.msra.mxu0 0.0
  %3141 = vmatprep.subr.mxu0 0.0
  %3142 = vmatpush1.msra.mxu0 0.0
  %3143 = vmatprep.subr.mxu0 0.0
  %3144 = vmatpush1.msra.mxu0 0.0
  %3145 = vmatprep.subr.mxu0 0.0
  %3146 = vmatpush1.msra.mxu0 0.0
  %3147 = vmatprep.subr.mxu0 0.0
  %3148 = vmatpush1.msra.mxu0 0.0
  %3149 = vmatprep.subr.mxu0 0.0
  %3150 = vmatpush1.msra.mxu0 0.0
  %3151 = vmatprep.subr.mxu0 0.0
  %3152 = vmatpush1.msra.mxu0 0.0
  %3153 = vmatprep.subr.mxu0 0.0
  %3154 = vmatpush1.msra.mxu0 0.0
  %3155 = vmatprep.subr.mxu0 0.0
  %3156 = vmatpush1.msra.mxu0 0.0
  %3157 = vmatprep.subr.mxu0 0.0
  %3158 = vmatpush1.msra.mxu0 0.0
  %3159 = vmatprep.subr.mxu0 0.0
  %3160 = vmatpush1.msra.mxu0 0.0
  %3161 = vmatprep.subr.mxu0 0.0
  %3162 = vmatpush1.msra.mxu0 0.0
  %3163 = vmatprep.subr.mxu0 0.0
  %3164 = vmatpush1.msra.mxu0 0.0
  %3165 = vmatprep.subr.mxu0 0.0
  %3166 = vmatpush1.msra.mxu0 0.0
  %3167 = vmatprep.subr.mxu0 0.0
  %3168 = vmatpush1.msra.mxu0 0.0
  %3169 = vmatprep.subr.mxu0 0.0
  %3170 = vmatpush1.msra.mxu0 0.0
  %3171 = vmatprep.subr.mxu0 0.0
  %3172 = vmatpush1.msra.mxu0 0.0
  %3173 = vmatprep.subr.mxu0 0.0
  %3174 = vmatpush1.msra.mxu0 0.0
  %3175 = vmatprep.subr.mxu0 0.0
  %3176 = vmatpush1.msra.mxu0 0.0
  %3177 = vmatprep.subr.mxu0 0.0
  %3178 = vmatpush1.msra.mxu0 0.0
  %3179 = vmatprep.mubr.f32.mxu0 0.0
  %3180 = vmatmul.mubr.f32.gmra.mrb[0].mxu0 %v3092
  %v3181 = vpop.f32.mrb[0].mxu0
  %v3182 = vadd.f32 %v3089, %v3181
  %v3183 = vpop.f32.mrb[0].mxu0
  %3184 = vmatprep.mubr.f32.mxu0 0.0
  %3185 = vmatmul.mubr.f32.gmra.mrb[0].mxu0 %v3095
  %v3186 = vpop.f32.mrb[0].mxu0
  %v3187 = vadd.f32 %v3089, %v3186
  %v3188 = vpop.f32.mrb[0].mxu0
  %3189 = vmatprep.mubr.f32.mxu0 0.0
  %3190 = vmatmul.mubr.f32.gmra.mrb[0].mxu0 %v3098
  %v3191 = vpop.f32.mrb[0].mxu0
  %v3192 = vadd.f32 %v3089, %v3191
  %v3193 = vpop.f32.mrb[0].mxu0
  %3194 = vmatprep.mubr.f32.mxu0 0.0
  %3195 = vmatmul.mubr.f32.gmra.mrb[0].mxu0 %v3101
  %v3196 = vpop.f32.mrb[0].mxu0
  %v3197 = vadd.f32 %v3089, %v3196
  %v3198 = vpop.f32.mrb[0].mxu0
  %3199 = vmatprep.mubr.f32.mxu0 0.0
  %3200 = vmatmul.mubr.f32.gmra.mrb[0].mxu0 %v3104
  %v3201 = vpop.f32.mrb[0].mxu0
  %v3202 = vadd.f32 %v3089, %v3201
  %v3203 = vpop.f32.mrb[0].mxu0
  %3204 = vmatprep.mubr.f32.mxu0 0.0
  %3205 = vmatmul.mubr.f32.gmra.mrb[0].mxu0 %v3107
  %v3206 = vpop.f32.mrb[0].mxu0
  %v3207 = vadd.f32 %v3089, %v3206
  %v3208 = vpop.f32.mrb[0].mxu0
  %3209 = vmatprep.mubr.f32.mxu0 0.0
  %3210 = vmatmul.mubr.f32.gmra.mrb[0].mxu0 %v3110
  %v3211 = vpop.f32.mrb[0].mxu0
  %v3212 = vadd.f32 %v3089, %v3211
  %v3213 = vpop.f32.mrb[0].mxu0
  %3214 = vmatprep.mubr.f32.mxu0 0.0
  %3215 = vmatmul.mubr.f32.gmra.mrb[0].mxu0 %v3113
  %v3216 = vpop.f32.mrb[0].mxu0
  %v3217 = vadd.f32 %v3089, %v3216
  %v3218 = vpop.f32.mrb[0].mxu0
  %3219 = vdwg.mxu0
  %3220 = vst.msk [vmem:[#allocation3] sm:$0xff] %vm181, %v3182
  %3221 = vst.msk [vmem:[#allocation3 + $0x8] sm:$0xff] %vm181, %v3187
  %3222 = vst.msk [vmem:[#allocation3 + $0x10] sm:$0xff] %vm181, %v3192
  %3223 = vst.msk [vmem:[#allocation3 + $0x18] sm:$0xff] %vm181, %v3197
  %3224 = vst.msk [vmem:[#allocation3 + $0x20] sm:$0xff] %vm181, %v3202
  %3225 = vst.msk [vmem:[#allocation3 + $0x28] sm:$0xff] %vm181, %v3207
  %3226 = vst.msk [vmem:[#allocation3 + $0x30] sm:$0xff] %vm181, %v3212
  %3227 = vst.msk [vmem:[#allocation3 + $0x38] sm:$0xff] %vm181, %v3217
  %3228 = vmatprep.subr.mxu0 0.0
  %3229 = vmatpush1.msra.mxu0 %v3071
  %3230 = vmatprep.subr.mxu0 0.0
  %3231 = vmatpush1.msra.mxu0 %v3072
  %3232 = vmatprep.subr.mxu0 0.0
  %3233 = vmatpush1.msra.mxu0 0.0
  %3234 = vmatprep.subr.mxu0 0.0
  %3235 = vmatpush1.msra.mxu0 0.0
  %3236 = vmatprep.subr.mxu0 0.0
  %3237 = vmatpush1.msra.mxu0 0.0
  %3238 = vmatprep.subr.mxu0 0.0
  %3239 = vmatpush1.msra.mxu0 0.0
  %3240 = vmatprep.subr.mxu0 0.0
  %3241 = vmatpush1.msra.mxu0 0.0
  %3242 = vmatprep.subr.mxu0 0.0
  %3243 = vmatpush1.msra.mxu0 0.0
  %3244 = vmatprep.subr.mxu0 0.0
  %3245 = vmatpush1.msra.mxu0 0.0
  %3246 = vmatprep.subr.mxu0 0.0
  %3247 = vmatpush1.msra.mxu0 0.0
  %3248 = vmatprep.subr.mxu0 0.0
  %3249 = vmatpush1.msra.mxu0 0.0
  %3250 = vmatprep.subr.mxu0 0.0
  %3251 = vmatpush1.msra.mxu0 0.0
  %3252 = vmatprep.subr.mxu0 0.0
  %3253 = vmatpush1.msra.mxu0 0.0
  %3254 = vmatprep.subr.mxu0 0.0
  %3255 = vmatpush1.msra.mxu0 0.0
  %3256 = vmatprep.subr.mxu0 0.0
  %3257 = vmatpush1.msra.mxu0 0.0
  %3258 = vmatprep.subr.mxu0 0.0
  %3259 = vmatpush1.msra.mxu0 0.0
  %3260 = vmatprep.subr.mxu0 0.0
  %3261 = vmatpush1.msra.mxu0 0.0
  %3262 = vmatprep.subr.mxu0 0.0
  %3263 = vmatpush1.msra.mxu0 0.0
  %3264 = vmatprep.subr.mxu0 0.0
  %3265 = vmatpush1.msra.mxu0 0.0
  %3266 = vmatprep.subr.mxu0 0.0
  %3267 = vmatpush1.msra.mxu0 0.0
  %3268 = vmatprep.subr.mxu0 0.0
  %3269 = vmatpush1.msra.mxu0 0.0
  %3270 = vmatprep.subr.mxu0 0.0
  %3271 = vmatpush1.msra.mxu0 0.0
  %3272 = vmatprep.subr.mxu0 0.0
  %3273 = vmatpush1.msra.mxu0 0.0
  %3274 = vmatprep.subr.mxu0 0.0
  %3275 = vmatpush1.msra.mxu0 0.0
  %3276 = vmatprep.subr.mxu0 0.0
  %3277 = vmatpush1.msra.mxu0 0.0
  %3278 = vmatprep.subr.mxu0 0.0
  %3279 = vmatpush1.msra.mxu0 0.0
  %3280 = vmatprep.subr.mxu0 0.0
  %3281 = vmatpush1.msra.mxu0 0.0
  %3282 = vmatprep.subr.mxu0 0.0
  %3283 = vmatpush1.msra.mxu0 0.0
  %3284 = vmatprep.subr.mxu0 0.0
  %3285 = vmatpush1.msra.mxu0 0.0
  %3286 = vmatprep.subr.mxu0 0.0
  %3287 = vmatpush1.msra.mxu0 0.0
  %3288 = vmatprep.subr.mxu0 0.0
  %3289 = vmatpush1.msra.mxu0 0.0
  %3290 = vmatprep.subr.mxu0 0.0
  %3291 = vmatpush1.msra.mxu0 0.0
  %3292 = vmatprep.mubr.f32.mxu0 0.0
  %3293 = vmatmul.mubr.f32.gmra.mrb[0].mxu0 %v191
  %v3294 = vpop.f32.mrb[0].mxu0
  %v3295 = vadd.f32 0.0, %v3294
  %v3296 = vpop.f32.mrb[0].mxu0
  %3297 = vdwg.mxu0
  %v3298 = vld [vmem:[#allocation3] sm:$0xff]
  %v3299 = vadd.f32 %v3298, %v3295
  %v3300 = vxor.u32 %v3299, 2147483648
  %v3301 = vmul.f32 %v3300, 1.442695
  %v3302 = vpow.pop %v3301
  %v3303 = vadd.f32 %v3302, 1.0
  %v3304 = vrcp.pop %v3303
  %v3305 = vmul.f32 1.0, %v3304
  %3306 = vrot.lane.b32.xlu0 %v3079, 32
  %v3307 = vpop.permute.xlu0 %3306
  %v3309 = vadd.f32 %v3295, %v3307
  %3311 = vrot.lane.b32.xlu0 %v3309, 96
  %v3312 = vpop.permute.xlu0 %3311
  %v3314 = vmul.f32 %v3305, %v3312
  %3316 = vrot.lane.b32.xlu0 %v3314, 32
  %v3317 = vpop.permute.xlu0 %3316
  %v3319 = vadd.f32 %v3298, %v3317
  %v3320 = vtanh.pop %v3319
  %v3321 = vsub.f32 1.0, %v3305
  %3323 = vrot.lane.b32.xlu0 %v3320, 112
  %v3324 = vpop.permute.xlu0 %3323
  %v3326 = vmul.f32 %v3321, %v3324
  %v3327 = vmul.f32 %v3305, 0.0
  %v3328 = vadd.f32 %v3326, %v3327
  %3330 = vrot.lane.b32.xlu0 %v3328, 112
  %v3331 = vpop.permute.xlu0 %3330
  %3333 = vst.msk [vmem:[#allocation2] sm:$0xff] %vm51, %v3331
  %v3334 = vsel %vm51, %v3331, 0
  %3336 = vmatprep.subr.mxu0 0.0
  %3337 = vmatpush1.msra.mxu0 %v3071
  %3338 = vmatprep.subr.mxu0 0.0
  %3339 = vmatpush1.msra.mxu0 %v3072
  %3340 = vmatprep.subr.mxu0 0.0
  %3341 = vmatpush1.msra.mxu0 0.0
  %3342 = vmatprep.subr.mxu0 0.0
  %3343 = vmatpush1.msra.mxu0 0.0
  %3344 = vmatprep.subr.mxu0 0.0
  %3345 = vmatpush1.msra.mxu0 0.0
  %3346 = vmatprep.subr.mxu0 0.0
  %3347 = vmatpush1.msra.mxu0 0.0
  %3348 = vmatprep.subr.mxu0 0.0
  %3349 = vmatpush1.msra.mxu0 0.0
  %3350 = vmatprep.subr.mxu0 0.0
  %3351 = vmatpush1.msra.mxu0 0.0
  %3352 = vmatprep.subr.mxu0 0.0
  %3353 = vmatpush1.msra.mxu0 0.0
  %3354 = vmatprep.subr.mxu0 0.0
  %3355 = vmatpush1.msra.mxu0 0.0
  %3356 = vmatprep.subr.mxu0 0.0
  %3357 = vmatpush1.msra.mxu0 0.0
  %3358 = vmatprep.subr.mxu0 0.0
  %3359 = vmatpush1.msra.mxu0 0.0
  %3360 = vmatprep.subr.mxu0 0.0
  %3361 = vmatpush1.msra.mxu0 0.0
  %3362 = vmatprep.subr.mxu0 0.0
  %3363 = vmatpush1.msra.mxu0 0.0
  %3364 = vmatprep.subr.mxu0 0.0
  %3365 = vmatpush1.msra.mxu0 0.0
  %3366 = vmatprep.subr.mxu0 0.0
  %3367 = vmatpush1.msra.mxu0 0.0
  %3368 = vmatprep.subr.mxu0 0.0
  %3369 = vmatpush1.msra.mxu0 0.0
  %3370 = vmatprep.subr.mxu0 0.0
  %3371 = vmatpush1.msra.mxu0 0.0
  %3372 = vmatprep.subr.mxu0 0.0
  %3373 = vmatpush1.msra.mxu0 0.0
  %3374 = vmatprep.subr.mxu0 0.0
  %3375 = vmatpush1.msra.mxu0 0.0
  %3376 = vmatprep.subr.mxu0 0.0
  %3377 = vmatpush1.msra.mxu0 0.0
  %3378 = vmatprep.subr.mxu0 0.0
  %3379 = vmatpush1.msra.mxu0 0.0
  %3380 = vmatprep.subr.mxu0 0.0
  %3381 = vmatpush1.msra.mxu0 0.0
  %3382 = vmatprep.subr.mxu0 0.0
  %3383 = vmatpush1.msra.mxu0 0.0
  %3384 = vmatprep.subr.mxu0 0.0
  %3385 = vmatpush1.msra.mxu0 0.0
  %3386 = vmatprep.subr.mxu0 0.0
  %3387 = vmatpush1.msra.mxu0 0.0
  %3388 = vmatprep.subr.mxu0 0.0
  %3389 = vmatpush1.msra.mxu0 0.0
  %3390 = vmatprep.subr.mxu0 0.0
  %3391 = vmatpush1.msra.mxu0 0.0
  %3392 = vmatprep.subr.mxu0 0.0
  %3393 = vmatpush1.msra.mxu0 0.0
  %3394 = vmatprep.subr.mxu0 0.0
  %3395 = vmatpush1.msra.mxu0 0.0
  %3396 = vmatprep.subr.mxu0 0.0
  %3397 = vmatpush1.msra.mxu0 0.0
  %3398 = vmatprep.subr.mxu0 0.0
  %3399 = vmatpush1.msra.mxu0 0.0
  %3400 = vmatprep.mubr.f32.mxu0 0.0
  %3401 = vmatmul.mubr.f32.gmra.mrb[0].mxu0 %v3334
  %v3402 = vpop.f32.mrb[0].mxu0
  %v3403 = vadd.f32 0.0, %v3402
  %v3404 = vpop.f32.mrb[0].mxu0
  %3405 = vdwg.mxu0
  %v3406 = vld [vmem:[%s371] sm:$0xff]
  %v3407 = vadd.f32 %v3406, %v3403
  %v3408 = vxor.u32 %v3407, 2147483648
  %v3409 = vmul.f32 %v3408, 1.442695
  %v3410 = vpow.pop %v3409
  %v3411 = vadd.f32 %v3410, 1.0
  %v3412 = vrcp.pop %v3411
  %v3413 = vmul.f32 1.0, %v3412
  %v3414 = vadd.f32 %v3403, %v3307
  %3416 = vrot.lane.b32.xlu0 %v3414, 96
  %v3417 = vpop.permute.xlu0 %3416
  %v3419 = vmul.f32 %v3413, %v3417
  %3421 = vrot.lane.b32.xlu0 %v3419, 32
  %v3422 = vpop.permute.xlu0 %3421
  %v3424 = vadd.f32 %v3406, %v3422
  %v3425 = vtanh.pop %v3424
  %v3426 = vsub.f32 1.0, %v3413
  %3428 = vrot.lane.b32.xlu0 %v3425, 112
  %v3429 = vpop.permute.xlu0 %3428
  %v3431 = vmul.f32 %v3426, %v3429
  %v3432 = vmul.f32 %v3413, %v3328
  %v3433 = vadd.f32 %v3431, %v3432
  %3435 = vrot.lane.b32.xlu0 %v3433, 112
  %v3436 = vpop.permute.xlu0 %3435
  %3438 = vst.msk [vmem:[%s404] sm:$0xff] %vm51, %v3436
  %v3439 = vsel %vm51, %v3436, 0
  %3441 = vmatprep.subr.mxu0 0.0
  %3442 = vmatpush1.msra.mxu0 %v3071
  %3443 = vmatprep.subr.mxu0 0.0
  %3444 = vmatpush1.msra.mxu0 %v3072
  %3445 = vmatprep.subr.mxu0 0.0
  %3446 = vmatpush1.msra.mxu0 0.0
  %3447 = vmatprep.subr.mxu0 0.0
  %3448 = vmatpush1.msra.mxu0 0.0
  %3449 = vmatprep.subr.mxu0 0.0
  %3450 = vmatpush1.msra.mxu0 0.0
  %3451 = vmatprep.subr.mxu0 0.0
  %3452 = vmatpush1.msra.mxu0 0.0
  %3453 = vmatprep.subr.mxu0 0.0
  %3454 = vmatpush1.msra.mxu0 0.0
  %3455 = vmatprep.subr.mxu0 0.0
  %3456 = vmatpush1.msra.mxu0 0.0
  %3457 = vmatprep.subr.mxu0 0.0
  %3458 = vmatpush1.msra.mxu0 0.0
  %3459 = vmatprep.subr.mxu0 0.0
  %3460 = vmatpush1.msra.mxu0 0.0
  %3461 = vmatprep.subr.mxu0 0.0
  %3462 = vmatpush1.msra.mxu0 0.0
  %3463 = vmatprep.subr.mxu0 0.0
  %3464 = vmatpush1.msra.mxu0 0.0
  %3465 = vmatprep.subr.mxu0 0.0
  %3466 = vmatpush1.msra.mxu0 0.0
  %3467 = vmatprep.subr.mxu0 0.0
  %3468 = vmatpush1.msra.mxu0 0.0
  %3469 = vmatprep.subr.mxu0 0.0
  %3470 = vmatpush1.msra.mxu0 0.0
  %3471 = vmatprep.subr.mxu0 0.0
  %3472 = vmatpush1.msra.mxu0 0.0
  %3473 = vmatprep.subr.mxu0 0.0
  %3474 = vmatpush1.msra.mxu0 0.0
  %3475 = vmatprep.subr.mxu0 0.0
  %3476 = vmatpush1.msra.mxu0 0.0
  %3477 = vmatprep.subr.mxu0 0.0
  %3478 = vmatpush1.msra.mxu0 0.0
  %3479 = vmatprep.subr.mxu0 0.0
  %3480 = vmatpush1.msra.mxu0 0.0
  %3481 = vmatprep.subr.mxu0 0.0
  %3482 = vmatpush1.msra.mxu0 0.0
  %3483 = vmatprep.subr.mxu0 0.0
  %3484 = vmatpush1.msra.mxu0 0.0
  %3485 = vmatprep.subr.mxu0 0.0
  %3486 = vmatpush1.msra.mxu0 0.0
  %3487 = vmatprep.subr.mxu0 0.0
  %3488 = vmatpush1.msra.mxu0 0.0
  %3489 = vmatprep.subr.mxu0 0.0
  %3490 = vmatpush1.msra.mxu0 0.0
  %3491 = vmatprep.subr.mxu0 0.0
  %3492 = vmatpush1.msra.mxu0 0.0
  %3493 = vmatprep.subr.mxu0 0.0
  %3494 = vmatpush1.msra.mxu0 0.0
  %3495 = vmatprep.subr.mxu0 0.0
  %3496 = vmatpush1.msra.mxu0 0.0
  %3497 = vmatprep.subr.mxu0 0.0
  %3498 = vmatpush1.msra.mxu0 0.0
  %3499 = vmatprep.subr.mxu0 0.0
  %3500 = vmatpush1.msra.mxu0 0.0
  %3501 = vmatprep.subr.mxu0 0.0
  %3502 = vmatpush1.msra.mxu0 0.0
  %3503 = vmatprep.subr.mxu0 0.0
  %3504 = vmatpush1.msra.mxu0 0.0
  %3505 = vmatprep.mubr.f32.mxu0 0.0
  %3506 = vmatmul.mubr.f32.gmra.mrb[0].mxu0 %v3439
  %v3507 = vpop.f32.mrb[0].mxu0
  %v3508 = vadd.f32 0.0, %v3507
  %v3509 = vpop.f32.mrb[0].mxu0
  %3510 = vdwg.mxu0
  %v3511 = vld [vmem:[%s478] sm:$0xff]
  %v3512 = vadd.f32 %v3511, %v3508
  %v3513 = vxor.u32 %v3512, 2147483648
  %v3514 = vmul.f32 %v3513, 1.442695
  %v3515 = vpow.pop %v3514
  %v3516 = vadd.f32 %v3515, 1.0
  %v3517 = vrcp.pop %v3516
  %v3518 = vmul.f32 1.0, %v3517
  %v3519 = vadd.f32 %v3508, %v3307
  %3521 = vrot.lane.b32.xlu0 %v3519, 96
  %v3522 = vpop.permute.xlu0 %3521
  %v3524 = vmul.f32 %v3518, %v3522
  %3526 = vrot.lane.b32.xlu0 %v3524, 32
  %v3527 = vpop.permute.xlu0 %3526
  %v3529 = vadd.f32 %v3511, %v3527
  %v3530 = vtanh.pop %v3529
  %v3531 = vsub.f32 1.0, %v3518
  %3533 = vrot.lane.b32.xlu0 %v3530, 112
  %v3534 = vpop.permute.xlu0 %3533
  %v3536 = vmul.f32 %v3531, %v3534
  %v3537 = vmul.f32 %v3518, %v3433
  %v3538 = vadd.f32 %v3536, %v3537
  %3540 = vrot.lane.b32.xlu0 %v3538, 112
  %v3541 = vpop.permute.xlu0 %3540
  %3543 = vst.msk [vmem:[%s511] sm:$0xff] %vm51, %v3541
  %v3544 = vsel %vm51, %v3541, 0
  %3546 = vmatprep.subr.mxu0 0.0
  %3547 = vmatpush1.msra.mxu0 %v3071
  %3548 = vmatprep.subr.mxu0 0.0
  %3549 = vmatpush1.msra.mxu0 %v3072
  %3550 = vmatprep.subr.mxu0 0.0
  %3551 = vmatpush1.msra.mxu0 0.0
  %3552 = vmatprep.subr.mxu0 0.0
  %3553 = vmatpush1.msra.mxu0 0.0
  %3554 = vmatprep.subr.mxu0 0.0
  %3555 = vmatpush1.msra.mxu0 0.0
  %3556 = vmatprep.subr.mxu0 0.0
  %3557 = vmatpush1.msra.mxu0 0.0
  %3558 = vmatprep.subr.mxu0 0.0
  %3559 = vmatpush1.msra.mxu0 0.0
  %3560 = vmatprep.subr.mxu0 0.0
  %3561 = vmatpush1.msra.mxu0 0.0
  %3562 = vmatprep.subr.mxu0 0.0
  %3563 = vmatpush1.msra.mxu0 0.0
  %3564 = vmatprep.subr.mxu0 0.0
  %3565 = vmatpush1.msra.mxu0 0.0
  %3566 = vmatprep.subr.mxu0 0.0
  %3567 = vmatpush1.msra.mxu0 0.0
  %3568 = vmatprep.subr.mxu0 0.0
  %3569 = vmatpush1.msra.mxu0 0.0
  %3570 = vmatprep.subr.mxu0 0.0
  %3571 = vmatpush1.msra.mxu0 0.0
  %3572 = vmatprep.subr.mxu0 0.0
  %3573 = vmatpush1.msra.mxu0 0.0
  %3574 = vmatprep.subr.mxu0 0.0
  %3575 = vmatpush1.msra.mxu0 0.0
  %3576 = vmatprep.subr.mxu0 0.0
  %3577 = vmatpush1.msra.mxu0 0.0
  %3578 = vmatprep.subr.mxu0 0.0
  %3579 = vmatpush1.msra.mxu0 0.0
  %3580 = vmatprep.subr.mxu0 0.0
  %3581 = vmatpush1.msra.mxu0 0.0
  %3582 = vmatprep.subr.mxu0 0.0
  %3583 = vmatpush1.msra.mxu0 0.0
  %3584 = vmatprep.subr.mxu0 0.0
  %3585 = vmatpush1.msra.mxu0 0.0
  %3586 = vmatprep.subr.mxu0 0.0
  %3587 = vmatpush1.msra.mxu0 0.0
  %3588 = vmatprep.subr.mxu0 0.0
  %3589 = vmatpush1.msra.mxu0 0.0
  %3590 = vmatprep.subr.mxu0 0.0
  %3591 = vmatpush1.msra.mxu0 0.0
  %3592 = vmatprep.subr.mxu0 0.0
  %3593 = vmatpush1.msra.mxu0 0.0
  %3594 = vmatprep.subr.mxu0 0.0
  %3595 = vmatpush1.msra.mxu0 0.0
  %3596 = vmatprep.subr.mxu0 0.0
  %3597 = vmatpush1.msra.mxu0 0.0
  %3598 = vmatprep.subr.mxu0 0.0
  %3599 = vmatpush1.msra.mxu0 0.0
  %3600 = vmatprep.subr.mxu0 0.0
  %3601 = vmatpush1.msra.mxu0 0.0
  %3602 = vmatprep.subr.mxu0 0.0
  %3603 = vmatpush1.msra.mxu0 0.0
  %3604 = vmatprep.subr.mxu0 0.0
  %3605 = vmatpush1.msra.mxu0 0.0
  %3606 = vmatprep.subr.mxu0 0.0
  %3607 = vmatpush1.msra.mxu0 0.0
  %3608 = vmatprep.subr.mxu0 0.0
  %3609 = vmatpush1.msra.mxu0 0.0
  %3610 = vmatprep.mubr.f32.mxu0 0.0
  %3611 = vmatmul.mubr.f32.gmra.mrb[0].mxu0 %v3544
  %v3612 = vpop.f32.mrb[0].mxu0
  %v3613 = vadd.f32 0.0, %v3612
  %v3614 = vpop.f32.mrb[0].mxu0
  %3615 = vdwg.mxu0
  %v3616 = vld [vmem:[%s585] sm:$0xff]
  %v3617 = vadd.f32 %v3616, %v3613
  %v3618 = vxor.u32 %v3617, 2147483648
  %v3619 = vmul.f32 %v3618, 1.442695
  %v3620 = vpow.pop %v3619
  %v3621 = vadd.f32 %v3620, 1.0
  %v3622 = vrcp.pop %v3621
  %v3623 = vmul.f32 1.0, %v3622
  %v3624 = vadd.f32 %v3613, %v3307
  %3626 = vrot.lane.b32.xlu0 %v3624, 96
  %v3627 = vpop.permute.xlu0 %3626
  %v3629 = vmul.f32 %v3623, %v3627
  %3631 = vrot.lane.b32.xlu0 %v3629, 32
  %v3632 = vpop.permute.xlu0 %3631
  %v3634 = vadd.f32 %v3616, %v3632
  %v3635 = vtanh.pop %v3634
  %v3636 = vsub.f32 1.0, %v3623
  %3638 = vrot.lane.b32.xlu0 %v3635, 112
  %v3639 = vpop.permute.xlu0 %3638
  %v3641 = vmul.f32 %v3636, %v3639
  %v3642 = vmul.f32 %v3623, %v3538
  %v3643 = vadd.f32 %v3641, %v3642
  %3645 = vrot.lane.b32.xlu0 %v3643, 112
  %v3646 = vpop.permute.xlu0 %3645
  %3648 = vst.msk [vmem:[%s618] sm:$0xff] %vm51, %v3646
  %v3649 = vsel %vm51, %v3646, 0
  %3651 = vmatprep.subr.mxu0 0.0
  %3652 = vmatpush1.msra.mxu0 %v3071
  %3653 = vmatprep.subr.mxu0 0.0
  %3654 = vmatpush1.msra.mxu0 %v3072
  %3655 = vmatprep.subr.mxu0 0.0
  %3656 = vmatpush1.msra.mxu0 0.0
  %3657 = vmatprep.subr.mxu0 0.0
  %3658 = vmatpush1.msra.mxu0 0.0
  %3659 = vmatprep.subr.mxu0 0.0
  %3660 = vmatpush1.msra.mxu0 0.0
  %3661 = vmatprep.subr.mxu0 0.0
  %3662 = vmatpush1.msra.mxu0 0.0
  %3663 = vmatprep.subr.mxu0 0.0
  %3664 = vmatpush1.msra.mxu0 0.0
  %3665 = vmatprep.subr.mxu0 0.0
  %3666 = vmatpush1.msra.mxu0 0.0
  %3667 = vmatprep.subr.mxu0 0.0
  %3668 = vmatpush1.msra.mxu0 0.0
  %3669 = vmatprep.subr.mxu0 0.0
  %3670 = vmatpush1.msra.mxu0 0.0
  %3671 = vmatprep.subr.mxu0 0.0
  %3672 = vmatpush1.msra.mxu0 0.0
  %3673 = vmatprep.subr.mxu0 0.0
  %3674 = vmatpush1.msra.mxu0 0.0
  %3675 = vmatprep.subr.mxu0 0.0
  %3676 = vmatpush1.msra.mxu0 0.0
  %3677 = vmatprep.subr.mxu0 0.0
  %3678 = vmatpush1.msra.mxu0 0.0
  %3679 = vmatprep.subr.mxu0 0.0
  %3680 = vmatpush1.msra.mxu0 0.0
  %3681 = vmatprep.subr.mxu0 0.0
  %3682 = vmatpush1.msra.mxu0 0.0
  %3683 = vmatprep.subr.mxu0 0.0
  %3684 = vmatpush1.msra.mxu0 0.0
  %3685 = vmatprep.subr.mxu0 0.0
  %3686 = vmatpush1.msra.mxu0 0.0
  %3687 = vmatprep.subr.mxu0 0.0
  %3688 = vmatpush1.msra.mxu0 0.0
  %3689 = vmatprep.subr.mxu0 0.0
  %3690 = vmatpush1.msra.mxu0 0.0
  %3691 = vmatprep.subr.mxu0 0.0
  %3692 = vmatpush1.msra.mxu0 0.0
  %3693 = vmatprep.subr.mxu0 0.0
  %3694 = vmatpush1.msra.mxu0 0.0
  %3695 = vmatprep.subr.mxu0 0.0
  %3696 = vmatpush1.msra.mxu0 0.0
  %3697 = vmatprep.subr.mxu0 0.0
  %3698 = vmatpush1.msra.mxu0 0.0
  %3699 = vmatprep.subr.mxu0 0.0
  %3700 = vmatpush1.msra.mxu0 0.0
  %3701 = vmatprep.subr.mxu0 0.0
  %3702 = vmatpush1.msra.mxu0 0.0
  %3703 = vmatprep.subr.mxu0 0.0
  %3704 = vmatpush1.msra.mxu0 0.0
  %3705 = vmatprep.subr.mxu0 0.0
  %3706 = vmatpush1.msra.mxu0 0.0
  %3707 = vmatprep.subr.mxu0 0.0
  %3708 = vmatpush1.msra.mxu0 0.0
  %3709 = vmatprep.subr.mxu0 0.0
  %3710 = vmatpush1.msra.mxu0 0.0
  %3711 = vmatprep.subr.mxu0 0.0
  %3712 = vmatpush1.msra.mxu0 0.0
  %3713 = vmatprep.subr.mxu0 0.0
  %3714 = vmatpush1.msra.mxu0 0.0
  %3715 = vmatprep.mubr.f32.mxu0 0.0
  %3716 = vmatmul.mubr.f32.gmra.mrb[0].mxu0 %v3649
  %v3717 = vpop.f32.mrb[0].mxu0
  %v3718 = vadd.f32 0.0, %v3717
  %v3719 = vpop.f32.mrb[0].mxu0
  %3720 = vdwg.mxu0
  %v3721 = vld [vmem:[%s692] sm:$0xff]
  %v3722 = vadd.f32 %v3721, %v3718
  %v3723 = vxor.u32 %v3722, 2147483648
  %v3724 = vmul.f32 %v3723, 1.442695
  %v3725 = vpow.pop %v3724
  %v3726 = vadd.f32 %v3725, 1.0
  %v3727 = vrcp.pop %v3726
  %v3728 = vmul.f32 1.0, %v3727
  %v3729 = vadd.f32 %v3718, %v3307
  %3731 = vrot.lane.b32.xlu0 %v3729, 96
  %v3732 = vpop.permute.xlu0 %3731
  %v3734 = vmul.f32 %v3728, %v3732
  %3736 = vrot.lane.b32.xlu0 %v3734, 32
  %v3737 = vpop.permute.xlu0 %3736
  %v3739 = vadd.f32 %v3721, %v3737
  %v3740 = vtanh.pop %v3739
  %v3741 = vsub.f32 1.0, %v3728
  %3743 = vrot.lane.b32.xlu0 %v3740, 112
  %v3744 = vpop.permute.xlu0 %3743
  %v3746 = vmul.f32 %v3741, %v3744
  %v3747 = vmul.f32 %v3728, %v3643
  %v3748 = vadd.f32 %v3746, %v3747
  %3750 = vrot.lane.b32.xlu0 %v3748, 112
  %v3751 = vpop.permute.xlu0 %3750
  %3753 = vst.msk [vmem:[%s725] sm:$0xff] %vm51, %v3751
  %v3754 = vsel %vm51, %v3751, 0
  %3756 = vmatprep.subr.mxu0 0.0
  %3757 = vmatpush1.msra.mxu0 %v3071
  %3758 = vmatprep.subr.mxu0 0.0
  %3759 = vmatpush1.msra.mxu0 %v3072
  %3760 = vmatprep.subr.mxu0 0.0
  %3761 = vmatpush1.msra.mxu0 0.0
  %3762 = vmatprep.subr.mxu0 0.0
  %3763 = vmatpush1.msra.mxu0 0.0
  %3764 = vmatprep.subr.mxu0 0.0
  %3765 = vmatpush1.msra.mxu0 0.0
  %3766 = vmatprep.subr.mxu0 0.0
  %3767 = vmatpush1.msra.mxu0 0.0
  %3768 = vmatprep.subr.mxu0 0.0
  %3769 = vmatpush1.msra.mxu0 0.0
  %3770 = vmatprep.subr.mxu0 0.0
  %3771 = vmatpush1.msra.mxu0 0.0
  %3772 = vmatprep.subr.mxu0 0.0
  %3773 = vmatpush1.msra.mxu0 0.0
  %3774 = vmatprep.subr.mxu0 0.0
  %3775 = vmatpush1.msra.mxu0 0.0
  %3776 = vmatprep.subr.mxu0 0.0
  %3777 = vmatpush1.msra.mxu0 0.0
  %3778 = vmatprep.subr.mxu0 0.0
  %3779 = vmatpush1.msra.mxu0 0.0
  %3780 = vmatprep.subr.mxu0 0.0
  %3781 = vmatpush1.msra.mxu0 0.0
  %3782 = vmatprep.subr.mxu0 0.0
  %3783 = vmatpush1.msra.mxu0 0.0
  %3784 = vmatprep.subr.mxu0 0.0
  %3785 = vmatpush1.msra.mxu0 0.0
  %3786 = vmatprep.subr.mxu0 0.0
  %3787 = vmatpush1.msra.mxu0 0.0
  %3788 = vmatprep.subr.mxu0 0.0
  %3789 = vmatpush1.msra.mxu0 0.0
  %3790 = vmatprep.subr.mxu0 0.0
  %3791 = vmatpush1.msra.mxu0 0.0
  %3792 = vmatprep.subr.mxu0 0.0
  %3793 = vmatpush1.msra.mxu0 0.0
  %3794 = vmatprep.subr.mxu0 0.0
  %3795 = vmatpush1.msra.mxu0 0.0
  %3796 = vmatprep.subr.mxu0 0.0
  %3797 = vmatpush1.msra.mxu0 0.0
  %3798 = vmatprep.subr.mxu0 0.0
  %3799 = vmatpush1.msra.mxu0 0.0
  %3800 = vmatprep.subr.mxu0 0.0
  %3801 = vmatpush1.msra.mxu0 0.0
  %3802 = vmatprep.subr.mxu0 0.0
  %3803 = vmatpush1.msra.mxu0 0.0
  %3804 = vmatprep.subr.mxu0 0.0
  %3805 = vmatpush1.msra.mxu0 0.0
  %3806 = vmatprep.subr.mxu0 0.0
  %3807 = vmatpush1.msra.mxu0 0.0
  %3808 = vmatprep.subr.mxu0 0.0
  %3809 = vmatpush1.msra.mxu0 0.0
  %3810 = vmatprep.subr.mxu0 0.0
  %3811 = vmatpush1.msra.mxu0 0.0
  %3812 = vmatprep.subr.mxu0 0.0
  %3813 = vmatpush1.msra.mxu0 0.0
  %3814 = vmatprep.subr.mxu0 0.0
  %3815 = vmatpush1.msra.mxu0 0.0
  %3816 = vmatprep.subr.mxu0 0.0
  %3817 = vmatpush1.msra.mxu0 0.0
  %3818 = vmatprep.subr.mxu0 0.0
  %3819 = vmatpush1.msra.mxu0 0.0
  %3820 = vmatprep.mubr.f32.mxu0 0.0
  %3821 = vmatmul.mubr.f32.gmra.mrb[0].mxu0 %v3754
  %v3822 = vpop.f32.mrb[0].mxu0
  %v3823 = vadd.f32 0.0, %v3822
  %v3824 = vpop.f32.mrb[0].mxu0
  %3825 = vdwg.mxu0
  %v3826 = vld [vmem:[%s799] sm:$0xff]
  %v3827 = vadd.f32 %v3826, %v3823
  %v3828 = vxor.u32 %v3827, 2147483648
  %v3829 = vmul.f32 %v3828, 1.442695
  %v3830 = vpow.pop %v3829
  %v3831 = vadd.f32 %v3830, 1.0
  %v3832 = vrcp.pop %v3831
  %v3833 = vmul.f32 1.0, %v3832
  %v3834 = vadd.f32 %v3823, %v3307
  %3836 = vrot.lane.b32.xlu0 %v3834, 96
  %v3837 = vpop.permute.xlu0 %3836
  %v3839 = vmul.f32 %v3833, %v3837
  %3841 = vrot.lane.b32.xlu0 %v3839, 32
  %v3842 = vpop.permute.xlu0 %3841
  %v3844 = vadd.f32 %v3826, %v3842
  %v3845 = vtanh.pop %v3844
  %v3846 = vsub.f32 1.0, %v3833
  %3848 = vrot.lane.b32.xlu0 %v3845, 112
  %v3849 = vpop.permute.xlu0 %3848
  %v3851 = vmul.f32 %v3846, %v3849
  %v3852 = vmul.f32 %v3833, %v3748
  %v3853 = vadd.f32 %v3851, %v3852
  %3855 = vrot.lane.b32.xlu0 %v3853, 112
  %v3856 = vpop.permute.xlu0 %3855
  %3858 = vst.msk [vmem:[%s832] sm:$0xff] %vm51, %v3856
  %v3859 = vsel %vm51, %v3856, 0
  %3861 = vmatprep.subr.mxu0 0.0
  %3862 = vmatpush1.msra.mxu0 %v3071
  %3863 = vmatprep.subr.mxu0 0.0
  %3864 = vmatpush1.msra.mxu0 %v3072
  %3865 = vmatprep.subr.mxu0 0.0
  %3866 = vmatpush1.msra.mxu0 0.0
  %3867 = vmatprep.subr.mxu0 0.0
  %3868 = vmatpush1.msra.mxu0 0.0
  %3869 = vmatprep.subr.mxu0 0.0
  %3870 = vmatpush1.msra.mxu0 0.0
  %3871 = vmatprep.subr.mxu0 0.0
  %3872 = vmatpush1.msra.mxu0 0.0
  %3873 = vmatprep.subr.mxu0 0.0
  %3874 = vmatpush1.msra.mxu0 0.0
  %3875 = vmatprep.subr.mxu0 0.0
  %3876 = vmatpush1.msra.mxu0 0.0
  %3877 = vmatprep.subr.mxu0 0.0
  %3878 = vmatpush1.msra.mxu0 0.0
  %3879 = vmatprep.subr.mxu0 0.0
  %3880 = vmatpush1.msra.mxu0 0.0
  %3881 = vmatprep.subr.mxu0 0.0
  %3882 = vmatpush1.msra.mxu0 0.0
  %3883 = vmatprep.subr.mxu0 0.0
  %3884 = vmatpush1.msra.mxu0 0.0
  %3885 = vmatprep.subr.mxu0 0.0
  %3886 = vmatpush1.msra.mxu0 0.0
  %3887 = vmatprep.subr.mxu0 0.0
  %3888 = vmatpush1.msra.mxu0 0.0
  %3889 = vmatprep.subr.mxu0 0.0
  %3890 = vmatpush1.msra.mxu0 0.0
  %3891 = vmatprep.subr.mxu0 0.0
  %3892 = vmatpush1.msra.mxu0 0.0
  %3893 = vmatprep.subr.mxu0 0.0
  %3894 = vmatpush1.msra.mxu0 0.0
  %3895 = vmatprep.subr.mxu0 0.0
  %3896 = vmatpush1.msra.mxu0 0.0
  %3897 = vmatprep.subr.mxu0 0.0
  %3898 = vmatpush1.msra.mxu0 0.0
  %3899 = vmatprep.subr.mxu0 0.0
  %3900 = vmatpush1.msra.mxu0 0.0
  %3901 = vmatprep.subr.mxu0 0.0
  %3902 = vmatpush1.msra.mxu0 0.0
  %3903 = vmatprep.subr.mxu0 0.0
  %3904 = vmatpush1.msra.mxu0 0.0
  %3905 = vmatprep.subr.mxu0 0.0
  %3906 = vmatpush1.msra.mxu0 0.0
  %3907 = vmatprep.subr.mxu0 0.0
  %3908 = vmatpush1.msra.mxu0 0.0
  %3909 = vmatprep.subr.mxu0 0.0
  %3910 = vmatpush1.msra.mxu0 0.0
  %3911 = vmatprep.subr.mxu0 0.0
  %3912 = vmatpush1.msra.mxu0 0.0
  %3913 = vmatprep.subr.mxu0 0.0
  %3914 = vmatpush1.msra.mxu0 0.0
  %3915 = vmatprep.subr.mxu0 0.0
  %3916 = vmatpush1.msra.mxu0 0.0
  %3917 = vmatprep.subr.mxu0 0.0
  %3918 = vmatpush1.msra.mxu0 0.0
  %3919 = vmatprep.subr.mxu0 0.0
  %3920 = vmatpush1.msra.mxu0 0.0
  %3921 = vmatprep.subr.mxu0 0.0
  %3922 = vmatpush1.msra.mxu0 0.0
  %3923 = vmatprep.subr.mxu0 0.0
  %3924 = vmatpush1.msra.mxu0 0.0
  %3925 = vmatprep.mubr.f32.mxu0 0.0
  %3926 = vmatmul.mubr.f32.gmra.mrb[0].mxu0 %v3859
  %v3927 = vpop.f32.mrb[0].mxu0
  %v3928 = vadd.f32 0.0, %v3927
  %v3929 = vpop.f32.mrb[0].mxu0
  %3930 = vdwg.mxu0
  %v3931 = vld [vmem:[%s906] sm:$0xff]
  %v3932 = vadd.f32 %v3931, %v3928
  %v3933 = vxor.u32 %v3932, 2147483648
  %v3934 = vmul.f32 %v3933, 1.442695
  %v3935 = vpow.pop %v3934
  %v3936 = vadd.f32 %v3935, 1.0
  %v3937 = vrcp.pop %v3936
  %v3938 = vmul.f32 1.0, %v3937
  %v3939 = vadd.f32 %v3928, %v3307
  %3941 = vrot.lane.b32.xlu0 %v3939, 96
  %v3942 = vpop.permute.xlu0 %3941
  %v3944 = vmul.f32 %v3938, %v3942
  %3946 = vrot.lane.b32.xlu0 %v3944, 32
  %v3947 = vpop.permute.xlu0 %3946
  %v3949 = vadd.f32 %v3931, %v3947
  %v3950 = vtanh.pop %v3949
  %v3951 = vsub.f32 1.0, %v3938
  %3953 = vrot.lane.b32.xlu0 %v3950, 112
  %v3954 = vpop.permute.xlu0 %3953
  %v3956 = vmul.f32 %v3951, %v3954
  %v3957 = vmul.f32 %v3938, %v3853
  %v3958 = vadd.f32 %v3956, %v3957
  %3960 = vrot.lane.b32.xlu0 %v3958, 112
  %v3961 = vpop.permute.xlu0 %3960
  %3963 = vst.msk [vmem:[%s939] sm:$0xff] %vm51, %v3961
  %v3964 = vsel %vm51, %v3961, 0
  %3966 = vmatprep.subr.mxu0 0.0
  %3967 = vmatpush1.msra.mxu0 %v3071
  %3968 = vmatprep.subr.mxu0 0.0
  %3969 = vmatpush1.msra.mxu0 %v3072
  %3970 = vmatprep.subr.mxu0 0.0
  %3971 = vmatpush1.msra.mxu0 0.0
  %3972 = vmatprep.subr.mxu0 0.0
  %3973 = vmatpush1.msra.mxu0 0.0
  %3974 = vmatprep.subr.mxu0 0.0
  %3975 = vmatpush1.msra.mxu0 0.0
  %3976 = vmatprep.subr.mxu0 0.0
  %3977 = vmatpush1.msra.mxu0 0.0
  %3978 = vmatprep.subr.mxu0 0.0
  %3979 = vmatpush1.msra.mxu0 0.0
  %3980 = vmatprep.subr.mxu0 0.0
  %3981 = vmatpush1.msra.mxu0 0.0
  %3982 = vmatprep.subr.mxu0 0.0
  %3983 = vmatpush1.msra.mxu0 0.0
  %3984 = vmatprep.subr.mxu0 0.0
  %3985 = vmatpush1.msra.mxu0 0.0
  %3986 = vmatprep.subr.mxu0 0.0
  %3987 = vmatpush1.msra.mxu0 0.0
  %3988 = vmatprep.subr.mxu0 0.0
  %3989 = vmatpush1.msra.mxu0 0.0
  %3990 = vmatprep.subr.mxu0 0.0
  %3991 = vmatpush1.msra.mxu0 0.0
  %3992 = vmatprep.subr.mxu0 0.0
  %3993 = vmatpush1.msra.mxu0 0.0
  %3994 = vmatprep.subr.mxu0 0.0
  %3995 = vmatpush1.msra.mxu0 0.0
  %3996 = vmatprep.subr.mxu0 0.0
  %3997 = vmatpush1.msra.mxu0 0.0
  %3998 = vmatprep.subr.mxu0 0.0
  %3999 = vmatpush1.msra.mxu0 0.0
  %4000 = vmatprep.subr.mxu0 0.0
  %4001 = vmatpush1.msra.mxu0 0.0
  %4002 = vmatprep.subr.mxu0 0.0
  %4003 = vmatpush1.msra.mxu0 0.0
  %4004 = vmatprep.subr.mxu0 0.0
  %4005 = vmatpush1.msra.mxu0 0.0
  %4006 = vmatprep.subr.mxu0 0.0
  %4007 = vmatpush1.msra.mxu0 0.0
  %4008 = vmatprep.subr.mxu0 0.0
  %4009 = vmatpush1.msra.mxu0 0.0
  %4010 = vmatprep.subr.mxu0 0.0
  %4011 = vmatpush1.msra.mxu0 0.0
  %4012 = vmatprep.subr.mxu0 0.0
  %4013 = vmatpush1.msra.mxu0 0.0
  %4014 = vmatprep.subr.mxu0 0.0
  %4015 = vmatpush1.msra.mxu0 0.0
  %4016 = vmatprep.subr.mxu0 0.0
  %4017 = vmatpush1.msra.mxu0 0.0
  %4018 = vmatprep.subr.mxu0 0.0
  %4019 = vmatpush1.msra.mxu0 0.0
  %4020 = vmatprep.subr.mxu0 0.0
  %4021 = vmatpush1.msra.mxu0 0.0
  %4022 = vmatprep.subr.mxu0 0.0
  %4023 = vmatpush1.msra.mxu0 0.0
  %4024 = vmatprep.subr.mxu0 0.0
  %4025 = vmatpush1.msra.mxu0 0.0
  %4026 = vmatprep.subr.mxu0 0.0
  %4027 = vmatpush1.msra.mxu0 0.0
  %4028 = vmatprep.subr.mxu0 0.0
  %4029 = vmatpush1.msra.mxu0 0.0
  %4030 = vmatprep.mubr.f32.mxu0 0.0
  %4031 = vmatmul.mubr.f32.gmra.mrb[0].mxu0 %v3964
  %v4032 = vpop.f32.mrb[0].mxu0
  %v4033 = vadd.f32 0.0, %v4032
  %v4034 = vpop.f32.mrb[0].mxu0
  %4035 = vdwg.mxu0
  %v4036 = vld [vmem:[%s1013] sm:$0xff]
  %v4037 = vadd.f32 %v4036, %v4033
  %v4038 = vxor.u32 %v4037, 2147483648
  %v4039 = vmul.f32 %v4038, 1.442695
  %v4040 = vpow.pop %v4039
  %v4041 = vadd.f32 %v4040, 1.0
  %v4042 = vrcp.pop %v4041
  %v4043 = vmul.f32 1.0, %v4042
  %v4044 = vadd.f32 %v4033, %v3307
  %4046 = vrot.lane.b32.xlu0 %v4044, 96
  %v4047 = vpop.permute.xlu0 %4046
  %v4049 = vmul.f32 %v4043, %v4047
  %4051 = vrot.lane.b32.xlu0 %v4049, 32
  %v4052 = vpop.permute.xlu0 %4051
  %v4054 = vadd.f32 %v4036, %v4052
  %v4055 = vtanh.pop %v4054
  %v4056 = vsub.f32 1.0, %v4043
  %4058 = vrot.lane.b32.xlu0 %v4055, 112
  %v4059 = vpop.permute.xlu0 %4058
  %v4061 = vmul.f32 %v4056, %v4059
  %v4062 = vmul.f32 %v4043, %v3958
  %v4063 = vadd.f32 %v4061, %v4062
  %4065 = vrot.lane.b32.xlu0 %v4063, 112
  %v4066 = vpop.permute.xlu0 %4065
  %4068 = vst.msk [vmem:[%s1046] sm:$0xff] %vm51, %v4066
  %v4069 = vld [vmem:[#allocation2] sm:$0xff]
  %v4070 = vld [vmem:[#allocation2 + $0x8] sm:$0xff]
  %v4071 = vld [vmem:[#allocation2 + $0x10] sm:$0xff]
  %v4072 = vld [vmem:[#allocation2 + $0x18] sm:$0xff]
  %v4073 = vld [vmem:[#allocation2 + $0x20] sm:$0xff]
  %v4074 = vld [vmem:[#allocation2 + $0x28] sm:$0xff]
  %v4075 = vld [vmem:[#allocation2 + $0x30] sm:$0xff]
  %v4076 = vld [vmem:[#allocation2 + $0x38] sm:$0xff]
  %v4077 = vld [vmem:[%s5] sm:$0xff]
  %v4078 = vld [vmem:[%s5 + $0x8] sm:$0xff]
  %v4079 = vld [vmem:[%s6] sm:$0x1]
  %v4081 = vlaneseq
  %v4082 = vshrl.u32 %v4081, 7
  %v4083 = vsub.s32 0, %v4082
  %v4084 = vrot.slane %v4079, %v4083
  %v4087 = vsel %vm51, %v4069, 0
  %v4090 = vsel %vm51, %v4070, 0
  %v4093 = vsel %vm51, %v4071, 0
  %v4096 = vsel %vm51, %v4072, 0
  %v4099 = vsel %vm51, %v4073, 0
  %v4102 = vsel %vm51, %v4074, 0
  %v4105 = vsel %vm51, %v4075, 0
  %v4108 = vsel %vm51, %v4076, 0
  %4110 = vmatprep.subr.mxu0 0.0
  %4111 = vmatpush1.msra.mxu0 %v4077
  %4112 = vmatprep.subr.mxu0 0.0
  %4113 = vmatpush1.msra.mxu0 %v4078
  %4114 = vmatprep.subr.mxu0 0.0
  %4115 = vmatpush1.msra.mxu0 0.0
  %4116 = vmatprep.subr.mxu0 0.0
  %4117 = vmatpush1.msra.mxu0 0.0
  %4118 = vmatprep.subr.mxu0 0.0
  %4119 = vmatpush1.msra.mxu0 0.0
  %4120 = vmatprep.subr.mxu0 0.0
  %4121 = vmatpush1.msra.mxu0 0.0
  %4122 = vmatprep.subr.mxu0 0.0
  %4123 = vmatpush1.msra.mxu0 0.0
  %4124 = vmatprep.subr.mxu0 0.0
  %4125 = vmatpush1.msra.mxu0 0.0
  %4126 = vmatprep.subr.mxu0 0.0
  %4127 = vmatpush1.msra.mxu0 0.0
  %4128 = vmatprep.subr.mxu0 0.0
  %4129 = vmatpush1.msra.mxu0 0.0
  %4130 = vmatprep.subr.mxu0 0.0
  %4131 = vmatpush1.msra.mxu0 0.0
  %4132 = vmatprep.subr.mxu0 0.0
  %4133 = vmatpush1.msra.mxu0 0.0
  %4134 = vmatprep.subr.mxu0 0.0
  %4135 = vmatpush1.msra.mxu0 0.0
  %4136 = vmatprep.subr.mxu0 0.0
  %4137 = vmatpush1.msra.mxu0 0.0
  %4138 = vmatprep.subr.mxu0 0.0
  %4139 = vmatpush1.msra.mxu0 0.0
  %4140 = vmatprep.subr.mxu0 0.0
  %4141 = vmatpush1.msra.mxu0 0.0
  %4142 = vmatprep.subr.mxu0 0.0
  %4143 = vmatpush1.msra.mxu0 0.0
  %4144 = vmatprep.subr.mxu0 0.0
  %4145 = vmatpush1.msra.mxu0 0.0
  %4146 = vmatprep.subr.mxu0 0.0
  %4147 = vmatpush1.msra.mxu0 0.0
  %4148 = vmatprep.subr.mxu0 0.0
  %4149 = vmatpush1.msra.mxu0 0.0
  %4150 = vmatprep.subr.mxu0 0.0
  %4151 = vmatpush1.msra.mxu0 0.0
  %4152 = vmatprep.subr.mxu0 0.0
  %4153 = vmatpush1.msra.mxu0 0.0
  %4154 = vmatprep.subr.mxu0 0.0
  %4155 = vmatpush1.msra.mxu0 0.0
  %4156 = vmatprep.subr.mxu0 0.0
  %4157 = vmatpush1.msra.mxu0 0.0
  %4158 = vmatprep.subr.mxu0 0.0
  %4159 = vmatpush1.msra.mxu0 0.0
  %4160 = vmatprep.subr.mxu0 0.0
  %4161 = vmatpush1.msra.mxu0 0.0
  %4162 = vmatprep.subr.mxu0 0.0
  %4163 = vmatpush1.msra.mxu0 0.0
  %4164 = vmatprep.subr.mxu0 0.0
  %4165 = vmatpush1.msra.mxu0 0.0
  %4166 = vmatprep.subr.mxu0 0.0
  %4167 = vmatpush1.msra.mxu0 0.0
  %4168 = vmatprep.subr.mxu0 0.0
  %4169 = vmatpush1.msra.mxu0 0.0
  %4170 = vmatprep.subr.mxu0 0.0
  %4171 = vmatpush1.msra.mxu0 0.0
  %4172 = vmatprep.subr.mxu0 0.0
  %4173 = vmatpush1.msra.mxu0 0.0
  %4174 = vmatprep.mubr.f32.mxu0 0.0
  %4175 = vmatmul.mubr.f32.gmra.mrb[0].mxu0 %v4087
  %v4176 = vpop.f32.mrb[0].mxu0
  %v4177 = vadd.f32 %v4084, %v4176
  %v4178 = vpop.f32.mrb[0].mxu0
  %4179 = vmatprep.mubr.f32.mxu0 0.0
  %4180 = vmatmul.mubr.f32.gmra.mrb[0].mxu0 %v4090
  %v4181 = vpop.f32.mrb[0].mxu0
  %v4182 = vadd.f32 %v4084, %v4181
  %v4183 = vpop.f32.mrb[0].mxu0
  %4184 = vmatprep.mubr.f32.mxu0 0.0
  %4185 = vmatmul.mubr.f32.gmra.mrb[0].mxu0 %v4093
  %v4186 = vpop.f32.mrb[0].mxu0
  %v4187 = vadd.f32 %v4084, %v4186
  %v4188 = vpop.f32.mrb[0].mxu0
  %4189 = vmatprep.mubr.f32.mxu0 0.0
  %4190 = vmatmul.mubr.f32.gmra.mrb[0].mxu0 %v4096
  %v4191 = vpop.f32.mrb[0].mxu0
  %v4192 = vadd.f32 %v4084, %v4191
  %v4193 = vpop.f32.mrb[0].mxu0
  %4194 = vmatprep.mubr.f32.mxu0 0.0
  %4195 = vmatmul.mubr.f32.gmra.mrb[0].mxu0 %v4099
  %v4196 = vpop.f32.mrb[0].mxu0
  %v4197 = vadd.f32 %v4084, %v4196
  %v4198 = vpop.f32.mrb[0].mxu0
  %4199 = vmatprep.mubr.f32.mxu0 0.0
  %4200 = vmatmul.mubr.f32.gmra.mrb[0].mxu0 %v4102
  %v4201 = vpop.f32.mrb[0].mxu0
  %v4202 = vadd.f32 %v4084, %v4201
  %v4203 = vpop.f32.mrb[0].mxu0
  %4204 = vmatprep.mubr.f32.mxu0 0.0
  %4205 = vmatmul.mubr.f32.gmra.mrb[0].mxu0 %v4105
  %v4206 = vpop.f32.mrb[0].mxu0
  %v4207 = vadd.f32 %v4084, %v4206
  %v4208 = vpop.f32.mrb[0].mxu0
  %4209 = vmatprep.mubr.f32.mxu0 0.0
  %4210 = vmatmul.mubr.f32.gmra.mrb[0].mxu0 %v4108
  %v4211 = vpop.f32.mrb[0].mxu0
  %v4212 = vadd.f32 %v4084, %v4211
  %v4213 = vpop.f32.mrb[0].mxu0
  %4214 = vdwg.mxu0
  %4215 = vst [vmem:[%s7] sm:$0xff] %v4177
  %4216 = vst [vmem:[%s7 + $0x8] sm:$0xff] %v4182
  %4217 = vst [vmem:[%s7 + $0x10] sm:$0xff] %v4187
  %4218 = vst [vmem:[%s7 + $0x18] sm:$0xff] %v4192
  %4219 = vst [vmem:[%s7 + $0x20] sm:$0xff] %v4197
  %4220 = vst [vmem:[%s7 + $0x28] sm:$0xff] %v4202
  %4221 = vst [vmem:[%s7 + $0x30] sm:$0xff] %v4207
  %4222 = vst [vmem:[%s7 + $0x38] sm:$0xff] %v4212
  // Predicated region
  $region30: #{gru_model_forward.1} parent=0 // pred_check
    _
  $region31: #{gru_model_forward.1} parent=0 // pred_check_branch
    %4224 = sbr.rel (0) target = $region33
  $region32: #{gru_model_forward.1} parent=0 // pred_region
    _
  $region33: #{gru_model_forward.1} parent=0 // pred_fallthru
    _
  // Predicated region
  $region34: #{gru_model_forward.1} parent=0 // pred_check
    _
  $region35: #{gru_model_forward.1} parent=0 // pred_check_branch
    %4226 = sbr.rel (0) target = $region37
  $region36: #{gru_model_forward.1} parent=0 // pred_region
    _
  $region37: #{gru_model_forward.1} parent=0 // pred_fallthru
    _

</llo_original>
